<compile_context>
chip_gen: v7x
topology: tpu7x:2x2x1
jax: 0.10.0
libtpu: 0.0.40
codegen_flags: <defaults>
</compile_context>

<pallas_src>
import jax
import jax.numpy as jnp
from jax.experimental import pallas as pl
from jax.experimental.pallas import tpu as pltpu


# -------------------------------------------------------------------------
# One-time hardware probe (conservative defaults if the query is unavailable).
# -------------------------------------------------------------------------
def _probe_chip():
    vmem_bytes = 64 * 1024 * 1024   # conservative default: v7x per-TC VMEM
    num_cores = 1
    try:
        info = pltpu.get_tpu_info()
        v = getattr(info, "vmem_capacity_bytes", None)
        if v:
            vmem_bytes = int(v)
        for name in ("num_cores", "cores_per_chip", "num_tensorcores",
                     "tensor_cores_per_chip"):
            c = getattr(info, name, None)
            if isinstance(c, int) and c > 0:
                num_cores = c
                break
    except Exception:
        # Hardware probe only; keep conservative defaults (safe on every chip).
        pass
    return vmem_bytes, num_cores


_VMEM_CAPACITY, _NUM_CORES = _probe_chip()


# -------------------------------------------------------------------------
# Kernel body.
# Grid = (M tiles [parallel], d_ff chunks [arbitrary / reduction, last]).
# -------------------------------------------------------------------------
def ffn_kernel(x_ref, w1_ref, b1_ref, w2_ref, b2_ref, o_ref, acc_ref):
    # x_ref:  (tm, d_model)        block (i, 0)  -- resident across k
    # w1_ref: (d_model, tkf)       block (0, k)  -- streamed column tile
    # b1_ref: (1, tkf)             block (0, k)
    # w2_ref: (tkf, d_model)       block (k, 0)  -- streamed row tile
    # b2_ref: (1, d_model)         block (0, 0)
    # o_ref:  (tm, d_model)        block (i, 0)  -- resident across k
    # acc_ref: VMEM (tm, d_model) f32 scratch accumulator
    k = pl.program_id(1)

    @pl.when(k == 0)
    def _init():
        acc_ref[...] = jnp.zeros_like(acc_ref)

    # ReLU distributes over d_ff chunks: y = sum_k relu(x@W1[:,k] + b1[k]) @ W2[k,:]
    h = jnp.dot(x_ref[...], w1_ref[...], preferred_element_type=jnp.float32)
    h = jnp.maximum(h + b1_ref[...].astype(jnp.float32), 0.0)
    acc_ref[...] += jnp.dot(h.astype(w2_ref.dtype), w2_ref[...],
                            preferred_element_type=jnp.float32)

    @pl.when(k == pl.num_programs(1) - 1)
    def _finalize():
        o_ref[...] = (acc_ref[...]
                      + b2_ref[...].astype(jnp.float32)).astype(o_ref.dtype)


# -------------------------------------------------------------------------
# Tile selection / VMEM budgeting.
# -------------------------------------------------------------------------
def _round_up(v, m):
    return ((v + m - 1) // m) * m


def _pick_tm(M, tm, pack, num_cores):
    """Clamp the row tile to M, keep it aligned to the dtype's sublane packing,
    and (only on >=2-TC chips) keep the grid at >= 2 M-steps so the 'parallel'
    axis can be sharded across TensorCores."""
    tm = min(tm, M)
    if tm != M and tm % pack != 0:
        tm = max(pack, (tm // pack) * pack)
    if num_cores >= 2 and M >= 512 and pl.cdiv(M, tm) < 2:
        tm = max(pack, min(tm, _round_up(pl.cdiv(M, 2), max(pack, 128))))
    return tm


def _tkf_candidates(d_ff, target):
    """d_ff chunk sizes: multiples of 128 that divide d_ff exactly (no masking
    needed for the accumulation), largest first, capped at `target`."""
    if d_ff % 128 != 0:
        return [d_ff]                      # fall back to a full-extent block
    cands = [c for c in range(128, min(target, d_ff) + 1, 128) if d_ff % c == 0]
    return sorted(cands, reverse=True) or [d_ff]


def _vmem_estimate(tm, tkf, d_model, x_isz, w_isz, out_isz, b_isz):
    return (
        2 * tm * d_model * x_isz            # x tile (double-buffered)
        + 2 * tm * d_model * out_isz        # out tile (double-buffered)
        + 2 * d_model * tkf * w_isz         # W1 column tile (double-buffered)
        + 2 * tkf * d_model * w_isz         # W2 row tile (double-buffered)
        + 2 * tkf * b_isz                   # b1 slice
        + 2 * d_model * b_isz               # b2
        + tm * d_model * 4                  # f32 accumulator scratch
        + tm * tkf * 4                      # f32 h = relu(x@W1+b1) chunk
        + tm * tkf * w_isz                  # h cast staging for matmul2
        + tm * d_model * 4                  # pre-cast f32 output tile
    )


def _fit_tiles(d_model, d_ff, tm, tkf_target, pack,
               x_isz, w_isz, out_isz, b_isz, budget):
    def est(tm_, tkf_):
        return _vmem_estimate(tm_, tkf_, d_model, x_isz, w_isz, out_isz, b_isz)

    cands = _tkf_candidates(d_ff, tkf_target)
    tkf = cands[-1]
    for c in cands:
        if est(tm, c) <= budget:
            return tm, c, est(tm, c)
    # Smallest tkf still over budget: shrink the row tile as well.
    while tm > pack and est(tm, tkf) > budget:
        tm = max(pack, ((tm // 2) // pack) * pack)
    return tm, tkf, est(tm, tkf)


# -------------------------------------------------------------------------
# pallas_call wrapper.
# -------------------------------------------------------------------------
def _ffn_call(x2, w1, b1_2d, w2, b2_2d, out_dtype, *, tm, tkf, vmem_limit):
    M, d_model = x2.shape
    d_ff = w1.shape[1]
    n_m = pl.cdiv(M, tm)
    n_k = pl.cdiv(d_ff, tkf)

    flops = 4 * M * d_model * d_ff   # two matmuls, 2*M*K*N each
    bytes_accessed = int(
        M * d_model * x2.dtype.itemsize
        + n_m * (d_model * d_ff * w1.dtype.itemsize      # W1 re-streamed per M tile
                 + d_ff * d_model * w2.dtype.itemsize    # W2 re-streamed per M tile
                 + d_ff * b1_2d.dtype.itemsize)
        + d_model * b2_2d.dtype.itemsize
        + M * d_model * jnp.dtype(out_dtype).itemsize)

    return pl.pallas_call(
        ffn_kernel,
        out_shape=jax.ShapeDtypeStruct((M, d_model), out_dtype),
        grid_spec=pltpu.PrefetchScalarGridSpec(
            num_scalar_prefetch=0,
            grid=(n_m, n_k),                               # reduction axis last
            in_specs=[
                pl.BlockSpec((tm, d_model), lambda i, k: (i, 0)),   # x tile
                pl.BlockSpec((d_model, tkf), lambda i, k: (0, k)),  # W1 columns
                pl.BlockSpec((1, tkf), lambda i, k: (0, k)),        # b1 slice
                pl.BlockSpec((tkf, d_model), lambda i, k: (k, 0)),  # W2 rows
                pl.BlockSpec((1, d_model), lambda i, k: (0, 0)),    # b2
            ],
            out_specs=pl.BlockSpec((tm, d_model), lambda i, k: (i, 0)),
            scratch_shapes=[pltpu.VMEM((tm, d_model), jnp.float32)],
        ),
        compiler_params=pltpu.CompilerParams(
            dimension_semantics=("parallel", "arbitrary"),
            vmem_limit_bytes=vmem_limit,
        ),
        cost_estimate=pl.CostEstimate(
            flops=flops, transcendentals=0, bytes_accessed=bytes_accessed),
    )(x2, w1, b1_2d, w2, b2_2d)


def feed_forward(x, w1, b1, w2, b2, *, tm=512, tkf=1024, compute_dtype=None):
    """x: (batch, seq, d_model). w1: (d_model, d_ff), b1: (d_ff,),
       w2: (d_ff, d_model), b2: (d_model,).  Weights are (in, out) = nn.Linear.weight.T.
       compute_dtype (optional): cast x/W1/W2 once outside the kernel (e.g. bf16
       for the MXU fast path on v6e/v7x); accumulation stays f32 and the output
       keeps x's original dtype."""
    batch, seq, d_model = x.shape
    d_ff = w1.shape[1]
    M = batch * seq
    out_dtype = x.dtype

    x2 = x.reshape(M, d_model)
    if compute_dtype is not None:
        x2 = x2.astype(compute_dtype)
        w1 = w1.astype(compute_dtype)
        w2 = w2.astype(compute_dtype)
    b1_2d = b1.reshape(1, d_ff)
    b2_2d = b2.reshape(1, d_model)

    budget = int(0.8 * _VMEM_CAPACITY)
    x_isz = x2.dtype.itemsize
    pack = max(8, 32 // x_isz)                      # f32->8, bf16->16, int8->32
    tm_eff = _pick_tm(M, tm, pack, _NUM_CORES)
    tm_eff, tkf_eff, vmem_needed = _fit_tiles(
        d_model, d_ff, tm_eff, tkf, pack,
        x_isz, w1.dtype.itemsize, jnp.dtype(out_dtype).itemsize,
        b1_2d.dtype.itemsize, budget)
    vmem_limit = int(min(max(int(vmem_needed * 1.25), vmem_needed + (2 << 20)),
                         budget))

    out2 = _ffn_call(x2, w1, b1_2d, w2, b2_2d, out_dtype,
                     tm=tm_eff, tkf=tkf_eff, vmem_limit=vmem_limit)
    return out2.reshape(batch, seq, d_model)


if __name__ == "__main__":
    d_model = 512
    d_ff = 2048

    key = jax.random.PRNGKey(0)
    kx, kw1, kb1, kw2, kb2 = jax.random.split(key, 5)

    # Deterministic synthetic parameters (nn.Linear init bounds, stored as (in, out)).
    bound1 = 1.0 / (d_model ** 0.5)
    bound2 = 1.0 / (d_ff ** 0.5)
    w1 = jax.random.uniform(kw1, (d_model, d_ff), jnp.float32, -bound1, bound1)
    b1 = jax.random.uniform(kb1, (d_ff,), jnp.float32, -bound1, bound1)
    w2 = jax.random.uniform(kw2, (d_ff, d_model), jnp.float32, -bound2, bound2)
    b2 = jax.random.uniform(kb2, (d_model,), jnp.float32, -bound2, bound2)

    def ref_fn(xx):
        return jnp.maximum(xx @ w1 + b1, 0.0) @ w2 + b2

    # --- check 1: small shape (batch=2, seq=8), f32, multi-step d_ff reduction ---
    batch, seq = 2, 8
    x = jax.random.normal(kx, (batch, seq, d_model), jnp.float32)
    out = jax.block_until_ready(feed_forward(x, w1, b1, w2, b2))
    ref = ref_fn(x)
    assert out.shape == (batch, seq, d_model)
    assert jnp.allclose(out, ref, atol=5e-4, rtol=5e-4), "f32 small mismatch"

    # --- check 2: larger M exercises multiple M tiles x multiple d_ff chunks ---
    batch2, seq2 = 4, 256                     # M = 1024
    xl = jax.random.normal(jax.random.PRNGKey(1), (batch2, seq2, d_model),
                           jnp.float32)
    outl = jax.block_until_ready(feed_forward(xl, w1, b1, w2, b2))
    assert jnp.allclose(outl, ref_fn(xl), atol=1e-3, rtol=1e-3), "f32 tiled mismatch"

    # --- check 3: bf16 activations/weights (v6e/v7x MXU fast path), f32 accumulation ---
    out_bf16 = jax.block_until_ready(
        feed_forward(x.astype(jnp.bfloat16),
                     w1.astype(jnp.bfloat16), b1,
                     w2.astype(jnp.bfloat16), b2))
    assert out_bf16.dtype == jnp.bfloat16
    assert jnp.allclose(out_bf16.astype(jnp.float32), ref,
                        atol=5e-2, rtol=5e-2), "bf16 mismatch"

    print("KERNEL_OK")
</pallas_src>

<mosaic_0001>
module attributes {stable_mosaic.version = 11 : i64} {
  func.func @ffn_kernel(%arg0: i32, %arg1: i32, %arg2: memref<16x512xf32, #tpu.memory_space<vmem>>, %arg3: memref<512x1024xf32, #tpu.memory_space<vmem>>, %arg4: memref<1x1024xf32, #tpu.memory_space<vmem>>, %arg5: memref<1024x512xf32, #tpu.memory_space<vmem>>, %arg6: memref<1x512xf32, #tpu.memory_space<vmem>>, %arg7: memref<16x512xf32, #tpu.memory_space<vmem>>, %arg8: memref<16x512xf32, #tpu.memory_space<vmem>>) attributes {dimension_semantics = [#tpu.dimension_semantics<parallel>, #tpu.dimension_semantics<arbitrary>], iteration_bounds = array<i64: 1, 2>, scalar_prefetch = 0 : i64, scratch_operands = 1 : i64, tpu.core_type = #tpu.core_type<tc>, window_params = [{transform_indices = @transform_0, window_bounds = array<i64: 16, 512>}, {transform_indices = @transform_1, window_bounds = array<i64: 512, 1024>}, {transform_indices = @transform_2, window_bounds = array<i64: 1, 1024>}, {transform_indices = @transform_3, window_bounds = array<i64: 1024, 512>}, {pipeline_mode = #tpu.pipeline_mode<synchronous>, transform_indices = @transform_4, window_bounds = array<i64: 1, 512>}, {transform_indices = @transform_5, window_bounds = array<i64: 16, 512>}]} {
    %c0_i32 = arith.constant 0 : i32
    %0 = arith.cmpi eq, %arg1, %c0_i32 : i32
    %1 = arith.extui %0 : i1 to i32
    %c0_i32_0 = arith.constant 0 : i32
    %2 = arith.cmpi ne, %1, %c0_i32_0 : i32
    scf.if %2 {
      %cst_15 = arith.constant 0.000000e+00 : f32
      %19 = vector.broadcast %cst_15 : f32 to vector<16x512xf32>
      %c0_16 = arith.constant 0 : index
      %c0_17 = arith.constant 0 : index
      %20 = vector.load %arg8[%c0_16, %c0_17] : memref<16x512xf32, #tpu.memory_space<vmem>>, vector<16x512xf32>
      tpu.vector_store %arg8[%c0_16, %c0_17], %19 {strides = array<i32>} : memref<16x512xf32, #tpu.memory_space<vmem>>, vector<16x512xf32>,
    } else {
    }
    %c0 = arith.constant 0 : index
    %c0_1 = arith.constant 0 : index
    %3 = vector.load %arg2[%c0, %c0_1] : memref<16x512xf32, #tpu.memory_space<vmem>>, vector<16x512xf32>
    %c0_2 = arith.constant 0 : index
    %c0_3 = arith.constant 0 : index
    %4 = vector.load %arg3[%c0_2, %c0_3] : memref<512x1024xf32, #tpu.memory_space<vmem>>, vector<512x1024xf32>
    %cst = arith.constant dense<0.000000e+00> : vector<16x1024xf32>
    %5 = tpu.matmul %3, %4, %cst {dimension_numbers = #tpu.dot_dimension_numbers<[1], [0], [0], [1], [0, 0, 1, 1], [], []>} : vector<16x512xf32>, vector<512x1024xf32>, vector<16x1024xf32> -> vector<16x1024xf32>
    %c0_4 = arith.constant 0 : index
    %c0_5 = arith.constant 0 : index
    %6 = vector.load %arg4[%c0_4, %c0_5] : memref<1x1024xf32, #tpu.memory_space<vmem>>, vector<1x1024xf32>
    %7 = vector.broadcast %6 : vector<1x1024xf32> to vector<16x1024xf32>
    %8 = arith.addf %5, %7 : vector<16x1024xf32>
    %cst_6 = arith.constant 0.000000e+00 : f32
    %9 = vector.broadcast %cst_6 : f32 to vector<16x1024xf32>
    %10 = arith.maximumf %8, %9 : vector<16x1024xf32>
    %c0_7 = arith.constant 0 : index
    %c0_8 = arith.constant 0 : index
    %11 = vector.load %arg8[%c0_7, %c0_8] : memref<16x512xf32, #tpu.memory_space<vmem>>, vector<16x512xf32>
    %c0_9 = arith.constant 0 : index
    %c0_10 = arith.constant 0 : index
    %12 = vector.load %arg5[%c0_9, %c0_10] : memref<1024x512xf32, #tpu.memory_space<vmem>>, vector<1024x512xf32>
    %cst_11 = arith.constant dense<0.000000e+00> : vector<16x512xf32>
    %13 = tpu.matmul %10, %12, %cst_11 {dimension_numbers = #tpu.dot_dimension_numbers<[1], [0], [0], [1], [0, 0, 1, 1], [], []>} : vector<16x1024xf32>, vector<1024x512xf32>, vector<16x512xf32> -> vector<16x512xf32>
    %14 = arith.addf %11, %13 : vector<16x512xf32>
    %c0_12 = arith.constant 0 : index
    %c0_13 = arith.constant 0 : index
    %15 = vector.load %arg8[%c0_12, %c0_13] : memref<16x512xf32, #tpu.memory_space<vmem>>, vector<16x512xf32>
    tpu.vector_store %arg8[%c0_12, %c0_13], %14 {strides = array<i32>} : memref<16x512xf32, #tpu.memory_space<vmem>>, vector<16x512xf32>,
    %c1_i32 = arith.constant 1 : i32
    %16 = arith.cmpi eq, %arg1, %c1_i32 : i32
    %17 = arith.extui %16 : i1 to i32
    %c0_i32_14 = arith.constant 0 : i32
    %18 = arith.cmpi ne, %17, %c0_i32_14 : i32
    scf.if %18 {
      %c0_15 = arith.constant 0 : index
      %c0_16 = arith.constant 0 : index
      %19 = vector.load %arg8[%c0_15, %c0_16] : memref<16x512xf32, #tpu.memory_space<vmem>>, vector<16x512xf32>
      %c0_17 = arith.constant 0 : index
      %c0_18 = arith.constant 0 : index
      %20 = vector.load %arg6[%c0_17, %c0_18] : memref<1x512xf32, #tpu.memory_space<vmem>>, vector<1x512xf32>
      %21 = vector.broadcast %20 : vector<1x512xf32> to vector<16x512xf32>
      %22 = arith.addf %19, %21 : vector<16x512xf32>
      %c0_19 = arith.constant 0 : index
      %c0_20 = arith.constant 0 : index
      %23 = vector.load %arg7[%c0_19, %c0_20] : memref<16x512xf32, #tpu.memory_space<vmem>>, vector<16x512xf32>
      tpu.vector_store %arg7[%c0_19, %c0_20], %22 {strides = array<i32>} : memref<16x512xf32, #tpu.memory_space<vmem>>, vector<16x512xf32>,
    } else {
    }
    return
  }
  func.func @transform_0(%arg0: i32, %arg1: i32) -> (i32, i32) {
    %c0_i32 = arith.constant 0 : i32
    %c0_i32_0 = arith.constant 0 : i32
    return %arg0, %c0_i32 : i32, i32
  }
  func.func @transform_1(%arg0: i32, %arg1: i32) -> (i32, i32) {
    %c0_i32 = arith.constant 0 : i32
    %c0_i32_0 = arith.constant 0 : i32
    return %c0_i32, %arg1 : i32, i32
  }
  func.func @transform_2(%arg0: i32, %arg1: i32) -> (i32, i32) {
    %c0_i32 = arith.constant 0 : i32
    %c0_i32_0 = arith.constant 0 : i32
    return %c0_i32, %arg1 : i32, i32
  }
  func.func @transform_3(%arg0: i32, %arg1: i32) -> (i32, i32) {
    %c0_i32 = arith.constant 0 : i32
    %c0_i32_0 = arith.constant 0 : i32
    return %arg1, %c0_i32 : i32, i32
  }
  func.func @transform_4(%arg0: i32, %arg1: i32) -> (i32, i32) {
    %c0_i32 = arith.constant 0 : i32
    %c0_i32_0 = arith.constant 0 : i32
    %c0_i32_1 = arith.constant 0 : i32
    return %c0_i32, %c0_i32_0 : i32, i32
  }
  func.func @transform_5(%arg0: i32, %arg1: i32) -> (i32, i32) {
    %c0_i32 = arith.constant 0 : i32
    %c0_i32_0 = arith.constant 0 : i32
    return %arg0, %c0_i32 : i32, i32
  }
}

</mosaic_0001>

<llo_original>
// kernel: tpu_custom_call.1
$region0: #{tpu_custom_call.1}
  #allocation0 [shape = 'u32[]', space=smem, size = 0x4, offset = 0x4, fixed_abs, tag = 'smem constant byte address 0x4 - core index']
  #allocation1 [shape = 'u32[144,128]{1,0:T(1,128)}', space=vmem, size = 0x12000, scoped, tag = 'internal scratch']
  #allocation2 [shape = 'f32[16,512]{1,0:T(8,128)}', space=vmem, size = 0x8000, scoped, tag = 'scratch operand']
  %s0 = inlined_call_operand.hbm [shape: f32[16,512], index: 0, kind: input, shape index: {}]
  %s1 = inlined_call_operand.hbm [shape: f32[512,2048], index: 1, kind: input, shape index: {}]
  %s2 = inlined_call_operand.hbm [shape: f32[1,2048], index: 2, kind: input, shape index: {}]
  %s3 = inlined_call_operand.hbm [shape: f32[2048,512], index: 3, kind: input, shape index: {}]
  %s4 = inlined_call_operand.hbm [shape: f32[1,512], index: 4, kind: input, shape index: {}]
  %s5 = inlined_call_operand.hbm [shape: f32[16,512], index: 5, kind: output, shape index: {}]
  %s6 = sld [smem:[#allocation0]]
  $region81: #{tpu_custom_call.1} parent=0
    _
  %s8 = ssub.s32 1, %s6
  %s9 = scalar_select 0, %s8, %s6
  $region1: #{tpu_custom_call.1} parent=0
    #allocation3 [shape = 'u8[32768]{0}', space=vmem, size = 0x8000, scoped, tag = 'input window, operand 0, single buffered']
    #allocation4 [shape = 's32[2]{0}', space=sflag, size = 0x8, scoped, tag = 'scoped memory for tpu_custom_call.1']
    #allocation5 [shape = 's32[2]{0}', space=sflag, size = 0x8, scoped, tag = 'scoped memory for tpu_custom_call.1']
    #allocation6 [shape = 'u8[4194304]{0}', space=vmem, size = 0x400000, scoped, tag = 'input window, operand 1']
    #allocation7 [shape = 's32[2]{0}', space=sflag, size = 0x8, scoped, tag = 'scoped memory for tpu_custom_call.1']
    #allocation8 [shape = 'u8[8192]{0}', space=vmem, size = 0x2000, scoped, tag = 'input window, operand 2']
    #allocation9 [shape = 'u8[4194304]{0}', space=vmem, size = 0x400000, scoped, tag = 'input window, operand 3']
    #allocation10 [shape = 's32[2]{0}', space=sflag, size = 0x8, scoped, tag = 'scoped memory for tpu_custom_call.1']
    #allocation11 [shape = 'u8[2048]{0}', space=vmem, size = 0x800, scoped, tag = 'input window, operand 4, single buffered']
    #allocation12 [shape = 'u8[32768]{0}', space=vmem, size = 0x8000, scoped, tag = 'output window, operand 0, single buffered']
    %10 = vsyncpa [#allocation4], 0
    %11 = vsyncpa [#allocation7], 0
    %s12 = scalar_lea.sflag [#allocation7], 1
    %13 = vsyncpa %s12, 0
    %14 = vsyncpa [#allocation10], 0
    %s15 = scalar_lea.sflag [#allocation10], 1
    %16 = vsyncpa %s15, 0
    %17 = vsyncpa [#allocation5], 0
    loop: start=0, step=1, limit=4
    $region2: #{tpu_custom_call.1} parent=1 // loop_pre_header
      _
    $region3: #{tpu_custom_call.1} parent=1 // loop_header
      %s19 = sphi 0, %s23
      %p20 = scmp.ge.s32.totalorder %s19, 4
      %s26 = sphi 0, %s38
      %s27 = sphi 0, %s34
      %s28 = sphi 0, %s26
      %s29 = sphi 0, %s27
      %s30 = sphi 0, %s28
      %s31 = sphi 0, %s29
      %s41 = sphi 0, %s43
      %s44 = sphi 0, %s41
      %s45 = sphi 0, %s44
      %s61 = sphi 0, %s45
      %s67 = sphi 0, %s69
      %s70 = sphi 0, %s67
      %s71 = sphi 0, %s70
      %s87 = sphi 0, %s71
      %s93 = sphi 0, %s95
      %s96 = sphi 0, %s93
      %s97 = sphi 0, %s96
      %s113 = sphi 0, %s97
      %s119 = sphi 0, %s121
      %s122 = sphi 0, %s119
      %s123 = sphi 0, %s122
      %s139 = sphi 0, %s123
      %s143 = sphi 0, %s143
      %s145 = sphi 0, %s143
      %s146 = sphi 0, %s145
      %s160 = sphi 0, %s146
      %s166 = sphi 0, %s168
      %s169 = sphi 0, %s166
      %s170 = sphi 0, %s169
      %s186 = sphi 0, %s170
    $region4: #{tpu_custom_call.1} parent=1 // loop_header_branch
      %22 = sbr.rel (%p20) target = $region8
    $region5: #{tpu_custom_call.1} parent=1 // loop_body
      %s24 = ssub.s32 %s19, 1
      %s25 = ssub.s32 %s19, 2
      %s32 = sadd.s32 1, %s27
      %p33 = scmp.ge.s32.totalorder %s32, 2
      %s34 = scalar_select %p33, 0, %s32
      %s35 = sadd.s32 1, %s26
      %s36 = scalar_select %p33, %s35, %s26
      %p37 = scmp.ge.s32.totalorder %s36, 1
      %s38 = scalar_select %p37, 0, %s36
      %s39 = ssub.s32 %s26, %s38
      %p40 = scmp.eq.s32.totalorder %s39, 0
      %s42 = sadd.s32 %s41, 1
      %s43 = scalar_select %p40, %s41, %s42
      %p46 = pneg %p40
      %p47 = scmp.eq.s32.totalorder %s19, 1
      %p48 = por %p46, %p47
      %p49 = scmp.ne.s32.totalorder %s41, %s44
      %p50 = scmp.eq.s32.totalorder %s19, 0
      %p51 = por %p49, %p50
      %p52 = scmp.ne.s32.totalorder %s41, %s44
      %p53 = scmp.eq.s32.totalorder %s24, 1
      %p54 = por %p52, %p53
      %p55 = scmp.ne.s32.totalorder %s44, %s45
      %p56 = scmp.eq.s32.totalorder %s24, 0
      %p57 = por %p55, %p56
      %p58 = scmp.ne.s32.totalorder %s44, %s45
      %p59 = scmp.eq.s32.totalorder %s25, 1
      %p60 = por %p58, %p59
      %p62 = scmp.ne.s32.totalorder %s45, %s61
      %p63 = scmp.eq.s32.totalorder %s25, 0
      %p64 = por %p62, %p63
      %s65 = ssub.s32 %s27, %s34
      %p66 = scmp.eq.s32.totalorder %s65, 0
      %s68 = sadd.s32 %s67, 1
      %s69 = scalar_select %p66, %s67, %s68
      %p72 = pneg %p66
      %p73 = scmp.eq.s32.totalorder %s19, 1
      %p74 = por %p72, %p73
      %p75 = scmp.ne.s32.totalorder %s67, %s70
      %p76 = scmp.eq.s32.totalorder %s19, 0
      %p77 = por %p75, %p76
      %p78 = scmp.ne.s32.totalorder %s67, %s70
      %p79 = scmp.eq.s32.totalorder %s24, 1
      %p80 = por %p78, %p79
      %p81 = scmp.ne.s32.totalorder %s70, %s71
      %p82 = scmp.eq.s32.totalorder %s24, 0
      %p83 = por %p81, %p82
      %p84 = scmp.ne.s32.totalorder %s70, %s71
      %p85 = scmp.eq.s32.totalorder %s25, 1
      %p86 = por %p84, %p85
      %p88 = scmp.ne.s32.totalorder %s71, %s87
      %p89 = scmp.eq.s32.totalorder %s25, 0
      %p90 = por %p88, %p89
      %s91 = ssub.s32 %s27, %s34
      %p92 = scmp.eq.s32.totalorder %s91, 0
      %s94 = sadd.s32 %s93, 1
      %s95 = scalar_select %p92, %s93, %s94
      %p98 = pneg %p92
      %p99 = scmp.eq.s32.totalorder %s19, 1
      %p100 = por %p98, %p99
      %p101 = scmp.ne.s32.totalorder %s93, %s96
      %p102 = scmp.eq.s32.totalorder %s19, 0
      %p103 = por %p101, %p102
      %p104 = scmp.ne.s32.totalorder %s93, %s96
      %p105 = scmp.eq.s32.totalorder %s24, 1
      %p106 = por %p104, %p105
      %p107 = scmp.ne.s32.totalorder %s96, %s97
      %p108 = scmp.eq.s32.totalorder %s24, 0
      %p109 = por %p107, %p108
      %p110 = scmp.ne.s32.totalorder %s96, %s97
      %p111 = scmp.eq.s32.totalorder %s25, 1
      %p112 = por %p110, %p111
      %p114 = scmp.ne.s32.totalorder %s97, %s113
      %p115 = scmp.eq.s32.totalorder %s25, 0
      %p116 = por %p114, %p115
      %s117 = ssub.s32 %s27, %s34
      %p118 = scmp.eq.s32.totalorder %s117, 0
      %s120 = sadd.s32 %s119, 1
      %s121 = scalar_select %p118, %s119, %s120
      %p124 = pneg %p118
      %p125 = scmp.eq.s32.totalorder %s19, 1
      %p126 = por %p124, %p125
      %p127 = scmp.ne.s32.totalorder %s119, %s122
      %p128 = scmp.eq.s32.totalorder %s19, 0
      %p129 = por %p127, %p128
      %p130 = scmp.ne.s32.totalorder %s119, %s122
      %p131 = scmp.eq.s32.totalorder %s24, 1
      %p132 = por %p130, %p131
      %p133 = scmp.ne.s32.totalorder %s122, %s123
      %p134 = scmp.eq.s32.totalorder %s24, 0
      %p135 = por %p133, %p134
      %p136 = scmp.ne.s32.totalorder %s122, %s123
      %p137 = scmp.eq.s32.totalorder %s25, 1
      %p138 = por %p136, %p137
      %p140 = scmp.ne.s32.totalorder %s123, %s139
      %p141 = scmp.eq.s32.totalorder %s25, 0
      %p142 = por %p140, %p141
      %s144 = sadd.s32 %s143, 1
      %p147 = scmp.eq.s32.totalorder %s19, 1
      %p148 = scmp.ne.s32.totalorder %s143, %s145
      %p149 = scmp.eq.s32.totalorder %s19, 0
      %p150 = por %p148, %p149
      %p151 = scmp.ne.s32.totalorder %s143, %s145
      %p152 = scmp.eq.s32.totalorder %s24, 1
      %p153 = por %p151, %p152
      %p154 = scmp.ne.s32.totalorder %s145, %s146
      %p155 = scmp.eq.s32.totalorder %s24, 0
      %p156 = por %p154, %p155
      %p157 = scmp.ne.s32.totalorder %s145, %s146
      %p158 = scmp.eq.s32.totalorder %s25, 1
      %p159 = por %p157, %p158
      %p161 = scmp.ne.s32.totalorder %s146, %s160
      %p162 = scmp.eq.s32.totalorder %s25, 0
      %p163 = por %p161, %p162
      %s164 = ssub.s32 %s26, %s38
      %p165 = scmp.eq.s32.totalorder %s164, 0
      %s167 = sadd.s32 %s166, 1
      %s168 = scalar_select %p165, %s166, %s167
      %p171 = pneg %p165
      %p172 = scmp.eq.s32.totalorder %s19, 1
      %p173 = por %p171, %p172
      %p174 = scmp.ne.s32.totalorder %s166, %s169
      %p175 = scmp.eq.s32.totalorder %s19, 0
      %p176 = por %p174, %p175
      %p177 = scmp.ne.s32.totalorder %s166, %s169
      %p178 = scmp.eq.s32.totalorder %s24, 1
      %p179 = por %p177, %p178
      %p180 = scmp.ne.s32.totalorder %s169, %s170
      %p181 = scmp.eq.s32.totalorder %s24, 0
      %p182 = por %p180, %p181
      %p183 = scmp.ne.s32.totalorder %s169, %s170
      %p184 = scmp.eq.s32.totalorder %s25, 1
      %p185 = por %p183, %p184
      %p187 = scmp.ne.s32.totalorder %s170, %s186
      %p188 = scmp.eq.s32.totalorder %s25, 0
      %p189 = por %p187, %p188
      %p190 = scmp.le.s32.totalorder 1, %s19
      %p191 = scmp.lt.s32.totalorder %s19, 3
      %p192 = pnand %p190, %p191
      %p193 = pneg %p192
      // Predicated region
      $region9: #{tpu_custom_call.1} parent=5 // pred_check
        _
      $region10: #{tpu_custom_call.1} parent=5 // pred_check_branch
        %195 = sbr.rel (%p192) target = $region12
      $region11: #{tpu_custom_call.1} parent=5 // pred_region
        %s196 = ssub.s32 %s19, 1
        // Predicated region
        $region13: #{tpu_custom_call.1} parent=11 // pred_check
          %p197 = pneg %p57
        $region14: #{tpu_custom_call.1} parent=11 // pred_check_branch
          %199 = sbr.rel (%p197) target = $region16
        $region15: #{tpu_custom_call.1} parent=11 // pred_region
          %s200 = smul.u32 2, %s28
          %s202 = ssub.s32 1024, 1024
          %203 = vsyncadd [#allocation4], %s202
          %s204 = smul.addr %s200, 4
          %s205 = smul.addr %s204, 128
          %s206 = scalar_lea.hbm %s0, %s205
          %s207 = sshll.u32 [#allocation3], 4
          %s208 = int_to_ptr.vmem [resolvable:$true] %s207
          %213 = dma.hbm_to_vmem [thread:$0]  %s206, 1024, %s208, [#allocation4], 512, 512, 32
        $region16: #{tpu_custom_call.1} parent=11 // pred_fallthru
          _
        // Predicated region
        $region17: #{tpu_custom_call.1} parent=11 // pred_check
          %p214 = pneg %p156
        $region18: #{tpu_custom_call.1} parent=11 // pred_check_branch
          %216 = sbr.rel (%p214) target = $region20
        $region19: #{tpu_custom_call.1} parent=11 // pred_region
          %s218 = ssub.s32 64, 64
          %219 = vsyncadd [#allocation10], %s218
          %s221 = sshll.u32 [#allocation11], 4
          %s222 = int_to_ptr.vmem [resolvable:$true] %s221
          %224 = dma.hbm_to_vmem [thread:$0]  %s4, 64, %s222, [#allocation10]
        $region20: #{tpu_custom_call.1} parent=11 // pred_fallthru
          _
      $region12: #{tpu_custom_call.1} parent=5 // pred_fallthru
        _
      %p225 = scmp.lt.s32.totalorder %s19, 2
      // Predicated region
      $region21: #{tpu_custom_call.1} parent=5 // pred_check
        %p226 = pneg %p225
      $region22: #{tpu_custom_call.1} parent=5 // pred_check_branch
        %228 = sbr.rel (%p226) target = $region24
      $region23: #{tpu_custom_call.1} parent=5 // pred_region
        // Predicated region
        $region25: #{tpu_custom_call.1} parent=23 // pred_check
          %p229 = pneg %p77
        $region26: #{tpu_custom_call.1} parent=23 // pred_check_branch
          %231 = sbr.rel (%p229) target = $region28
        $region27: #{tpu_custom_call.1} parent=23 // pred_region
          %s232 = sand.u32 %s19, 1
          %s233 = scalar_lea.sflag [#allocation7], %s232
          %s234 = sand.u32 %s67, 1
          %s235 = smul.addr %s234, 4096
          %s236 = scalar_lea.vmem [#allocation6], %s235
          %s237 = smul.u32 8, %s27
          %s239 = ssub.s32 65536, 65536
          %240 = vsyncadd %s233, %s239
          %s241 = smul.addr %s237, 128
          %s242 = scalar_lea.hbm %s1, %s241
          %s243 = sshll.u32 %s236, 4
          %s244 = int_to_ptr.vmem [resolvable:$true] %s243
          %249 = dma.hbm_to_vmem [thread:$0]  %s242, 65536, %s244, %s233, 2048, 1024, 64
        $region28: #{tpu_custom_call.1} parent=23 // pred_fallthru
          _
        // Predicated region
        $region29: #{tpu_custom_call.1} parent=23 // pred_check
          %p250 = pneg %p103
        $region30: #{tpu_custom_call.1} parent=23 // pred_check_branch
          %252 = sbr.rel (%p250) target = $region32
        $region31: #{tpu_custom_call.1} parent=23 // pred_region
          %s253 = sand.u32 %s19, 1
          %s254 = scalar_lea.sflag [#allocation7], %s253
          %s255 = sand.u32 %s93, 1
          %s256 = smul.addr %s255, 8
          %s257 = scalar_lea.vmem [#allocation8], %s256
          %s258 = smul.u32 8, %s27
          %s260 = ssub.s32 128, 128
          %261 = vsyncadd %s254, %s260
          %s262 = smul.addr %s258, 16
          %s263 = scalar_lea.hbm %s2, %s262
          %s265 = sshll.u32 %s257, 4
          %s266 = int_to_ptr.vmem [resolvable:$true] %s265
          %268 = dma.hbm_to_vmem [thread:$0]  %s263, 128, %s266, %s254
        $region32: #{tpu_custom_call.1} parent=23 // pred_fallthru
          _
        // Predicated region
        $region33: #{tpu_custom_call.1} parent=23 // pred_check
          %p269 = pneg %p129
        $region34: #{tpu_custom_call.1} parent=23 // pred_check_branch
          %271 = sbr.rel (%p269) target = $region36
        $region35: #{tpu_custom_call.1} parent=23 // pred_region
          %s272 = sand.u32 %s19, 1
          %s273 = scalar_lea.sflag [#allocation10], %s272
          %s274 = sand.u32 %s119, 1
          %s275 = smul.addr %s274, 4096
          %s276 = scalar_lea.vmem [#allocation9], %s275
          %s277 = smul.u32 128, %s27
          %s279 = ssub.s32 65536, 65536
          %280 = vsyncadd %s273, %s279
          %s281 = smul.addr %s277, 4
          %s282 = smul.addr %s281, 128
          %s283 = scalar_lea.hbm %s3, %s282
          %s284 = sshll.u32 %s276, 4
          %s285 = int_to_ptr.vmem [resolvable:$true] %s284
          %290 = dma.hbm_to_vmem [thread:$0]  %s283, 65536, %s285, %s273, 512, 512, 32
        $region36: #{tpu_custom_call.1} parent=23 // pred_fallthru
          _
      $region24: #{tpu_custom_call.1} parent=5 // pred_fallthru
        _
      %p291 = scmp.le.s32.totalorder 1, %s19
      %p292 = scmp.lt.s32.totalorder %s19, 3
      %p293 = pnand %p291, %p292
      %p294 = pneg %p293
      // Predicated region
      $region37: #{tpu_custom_call.1} parent=5 // pred_check
        _
      $region38: #{tpu_custom_call.1} parent=5 // pred_check_branch
        %296 = sbr.rel (%p293) target = $region40
      $region39: #{tpu_custom_call.1} parent=5 // pred_region
        %s297 = ssub.s32 %s19, 1
        // Predicated region
        $region41: #{tpu_custom_call.1} parent=39 // pred_check
          %p298 = pneg %p57
        $region42: #{tpu_custom_call.1} parent=39 // pred_check_branch
          %300 = sbr.rel (%p298) target = $region44
        $region43: #{tpu_custom_call.1} parent=39 // pred_region
          %301 = dma.done [#allocation4], 1024
        $region44: #{tpu_custom_call.1} parent=39 // pred_fallthru
          _
        %s302 = sand.u32 %s24, 1
        %s303 = scalar_lea.sflag [#allocation7], %s302
        %s304 = sand.u32 %s70, 1
        %s305 = smul.addr %s304, 4096
        %s306 = scalar_lea.vmem [#allocation6], %s305
        // Predicated region
        $region45: #{tpu_custom_call.1} parent=39 // pred_check
          %p307 = pneg %p83
        $region46: #{tpu_custom_call.1} parent=39 // pred_check_branch
          %309 = sbr.rel (%p307) target = $region48
        $region47: #{tpu_custom_call.1} parent=39 // pred_region
          %310 = dma.done %s303, 65536
        $region48: #{tpu_custom_call.1} parent=39 // pred_fallthru
          _
        %s311 = sand.u32 %s24, 1
        %s312 = scalar_lea.sflag [#allocation7], %s311
        %s313 = sand.u32 %s96, 1
        %s314 = smul.addr %s313, 8
        %s315 = scalar_lea.vmem [#allocation8], %s314
        // Predicated region
        $region49: #{tpu_custom_call.1} parent=39 // pred_check
          %p316 = pneg %p109
        $region50: #{tpu_custom_call.1} parent=39 // pred_check_branch
          %318 = sbr.rel (%p316) target = $region52
        $region51: #{tpu_custom_call.1} parent=39 // pred_region
          %319 = dma.done %s312, 128
        $region52: #{tpu_custom_call.1} parent=39 // pred_fallthru
          _
        %s320 = sand.u32 %s24, 1
        %s321 = scalar_lea.sflag [#allocation10], %s320
        %s322 = sand.u32 %s122, 1
        %s323 = smul.addr %s322, 4096
        %s324 = scalar_lea.vmem [#allocation9], %s323
        // Predicated region
        $region53: #{tpu_custom_call.1} parent=39 // pred_check
          %p325 = pneg %p135
        $region54: #{tpu_custom_call.1} parent=39 // pred_check_branch
          %327 = sbr.rel (%p325) target = $region56
        $region55: #{tpu_custom_call.1} parent=39 // pred_region
          %328 = dma.done %s321, 65536
        $region56: #{tpu_custom_call.1} parent=39 // pred_fallthru
          _
        // Predicated region
        $region57: #{tpu_custom_call.1} parent=39 // pred_check
          %p329 = pneg %p156
        $region58: #{tpu_custom_call.1} parent=39 // pred_check_branch
          %331 = sbr.rel (%p329) target = $region60
        $region59: #{tpu_custom_call.1} parent=39 // pred_region
          %332 = dma.done [#allocation10], 64
        $region60: #{tpu_custom_call.1} parent=39 // pred_fallthru
          _
        %p333 = pneg %p57
        %p334 = pneg %p54
        %s335 = sand.u32 %s24, 1
        %s336 = scalar_lea.sflag [#allocation7], %s335
        %s337 = sand.u32 %s70, 1
        %s338 = smul.addr %s337, 4096
        %s339 = scalar_lea.vmem [#allocation6], %s338
        %p340 = pneg %p83
        %p341 = pneg %p80
        %s342 = sand.u32 %s24, 1
        %s343 = scalar_lea.sflag [#allocation7], %s342
        %s344 = sand.u32 %s96, 1
        %s345 = smul.addr %s344, 8
        %s346 = scalar_lea.vmem [#allocation8], %s345
        %p347 = pneg %p109
        %p348 = pneg %p106
        %s349 = sand.u32 %s24, 1
        %s350 = scalar_lea.sflag [#allocation10], %s349
        %s351 = sand.u32 %s122, 1
        %s352 = smul.addr %s351, 4096
        %s353 = scalar_lea.vmem [#allocation9], %s352
        %p354 = pneg %p135
        %p355 = pneg %p132
        %p356 = pneg %p156
        %p357 = pneg %p153
        %p358 = pneg %p182
        %p359 = pneg %p179
        %s360 = smul.u32 2, %s28
        %s361 = smul.u32 8, %s29
        %s362 = smul.u32 8, %s29
        %s363 = smul.u32 128, %s29
        %s364 = smul.u32 2, %s28
        %p365 = scmp.eq.s32.totalorder %s29, 0
        // Predicated region
        $region61: #{tpu_custom_call.1} parent=39 // pred_check
          %p366 = pneg %p365
        $region62: #{tpu_custom_call.1} parent=39 // pred_check_branch
          %368 = sbr.rel (%p366) target = $region64
        $region63: #{tpu_custom_call.1} parent=39 // pred_region
          %369 = vst [vmem:[#allocation2] sm:$0xff] 0.0
          %370 = vst [vmem:[#allocation2 + $0x8] sm:$0xff] 0.0
          %371 = vst [vmem:[#allocation2 + $0x10] sm:$0xff] 0.0
          %372 = vst [vmem:[#allocation2 + $0x18] sm:$0xff] 0.0
          %373 = vst [vmem:[#allocation2 + $0x20] sm:$0xff] 0.0
          %374 = vst [vmem:[#allocation2 + $0x28] sm:$0xff] 0.0
          %375 = vst [vmem:[#allocation2 + $0x30] sm:$0xff] 0.0
          %376 = vst [vmem:[#allocation2 + $0x38] sm:$0xff] 0.0
        $region64: #{tpu_custom_call.1} parent=39 // pred_fallthru
          _
        %v377 = vld [vmem:[#allocation3] sm:$0xff]
        %v378 = vld [vmem:[#allocation3 + $0x8] sm:$0xff]
        %v379 = vld [vmem:[#allocation3 + $0x10] sm:$0xff]
        %v380 = vld [vmem:[#allocation3 + $0x18] sm:$0xff]
        %v381 = vld [vmem:[#allocation3 + $0x20] sm:$0xff]
        %v382 = vld [vmem:[#allocation3 + $0x28] sm:$0xff]
        %v383 = vld [vmem:[#allocation3 + $0x30] sm:$0xff]
        %v384 = vld [vmem:[#allocation3 + $0x38] sm:$0xff]
        %v385 = vld [vmem:[%s306] sm:$0xff]
        %v386 = vld [vmem:[%s306 + $0x8] sm:$0xff]
        %v387 = vld [vmem:[%s306 + $0x10] sm:$0xff]
        %v388 = vld [vmem:[%s306 + $0x18] sm:$0xff]
        %v389 = vld [vmem:[%s306 + $0x20] sm:$0xff]
        %v390 = vld [vmem:[%s306 + $0x28] sm:$0xff]
        %v391 = vld [vmem:[%s306 + $0x30] sm:$0xff]
        %v392 = vld [vmem:[%s306 + $0x38] sm:$0xff]
        %v393 = vld [vmem:[%s306 + $0x40] sm:$0xff]
        %v394 = vld [vmem:[%s306 + $0x48] sm:$0xff]
        %v395 = vld [vmem:[%s306 + $0x50] sm:$0xff]
        %v396 = vld [vmem:[%s306 + $0x58] sm:$0xff]
        %v397 = vld [vmem:[%s306 + $0x60] sm:$0xff]
        %v398 = vld [vmem:[%s306 + $0x68] sm:$0xff]
        %v399 = vld [vmem:[%s306 + $0x70] sm:$0xff]
        %v400 = vld [vmem:[%s306 + $0x78] sm:$0xff]
        %v401 = vld [vmem:[%s306 + $0x80] sm:$0xff]
        %v402 = vld [vmem:[%s306 + $0x88] sm:$0xff]
        %v403 = vld [vmem:[%s306 + $0x90] sm:$0xff]
        %v404 = vld [vmem:[%s306 + $0x98] sm:$0xff]
        %v405 = vld [vmem:[%s306 + $0xa0] sm:$0xff]
        %v406 = vld [vmem:[%s306 + $0xa8] sm:$0xff]
        %v407 = vld [vmem:[%s306 + $0xb0] sm:$0xff]
        %v408 = vld [vmem:[%s306 + $0xb8] sm:$0xff]
        %v409 = vld [vmem:[%s306 + $0xc0] sm:$0xff]
        %v410 = vld [vmem:[%s306 + $0xc8] sm:$0xff]
        %v411 = vld [vmem:[%s306 + $0xd0] sm:$0xff]
        %v412 = vld [vmem:[%s306 + $0xd8] sm:$0xff]
        %v413 = vld [vmem:[%s306 + $0xe0] sm:$0xff]
        %v414 = vld [vmem:[%s306 + $0xe8] sm:$0xff]
        %v415 = vld [vmem:[%s306 + $0xf0] sm:$0xff]
        %v416 = vld [vmem:[%s306 + $0xf8] sm:$0xff]
        %v417 = vld [vmem:[%s306 + $0x100] sm:$0xff]
        %v418 = vld [vmem:[%s306 + $0x108] sm:$0xff]
        %v419 = vld [vmem:[%s306 + $0x110] sm:$0xff]
        %v420 = vld [vmem:[%s306 + $0x118] sm:$0xff]
        %v421 = vld [vmem:[%s306 + $0x120] sm:$0xff]
        %v422 = vld [vmem:[%s306 + $0x128] sm:$0xff]
        %v423 = vld [vmem:[%s306 + $0x130] sm:$0xff]
        %v424 = vld [vmem:[%s306 + $0x138] sm:$0xff]
        %v425 = vld [vmem:[%s306 + $0x140] sm:$0xff]
        %v426 = vld [vmem:[%s306 + $0x148] sm:$0xff]
        %v427 = vld [vmem:[%s306 + $0x150] sm:$0xff]
        %v428 = vld [vmem:[%s306 + $0x158] sm:$0xff]
        %v429 = vld [vmem:[%s306 + $0x160] sm:$0xff]
        %v430 = vld [vmem:[%s306 + $0x168] sm:$0xff]
        %v431 = vld [vmem:[%s306 + $0x170] sm:$0xff]
        %v432 = vld [vmem:[%s306 + $0x178] sm:$0xff]
        %v433 = vld [vmem:[%s306 + $0x180] sm:$0xff]
        %v434 = vld [vmem:[%s306 + $0x188] sm:$0xff]
        %v435 = vld [vmem:[%s306 + $0x190] sm:$0xff]
        %v436 = vld [vmem:[%s306 + $0x198] sm:$0xff]
        %v437 = vld [vmem:[%s306 + $0x1a0] sm:$0xff]
        %v438 = vld [vmem:[%s306 + $0x1a8] sm:$0xff]
        %v439 = vld [vmem:[%s306 + $0x1b0] sm:$0xff]
        %v440 = vld [vmem:[%s306 + $0x1b8] sm:$0xff]
        %v441 = vld [vmem:[%s306 + $0x1c0] sm:$0xff]
        %v442 = vld [vmem:[%s306 + $0x1c8] sm:$0xff]
        %v443 = vld [vmem:[%s306 + $0x1d0] sm:$0xff]
        %v444 = vld [vmem:[%s306 + $0x1d8] sm:$0xff]
        %v445 = vld [vmem:[%s306 + $0x1e0] sm:$0xff]
        %v446 = vld [vmem:[%s306 + $0x1e8] sm:$0xff]
        %v447 = vld [vmem:[%s306 + $0x1f0] sm:$0xff]
        %v448 = vld [vmem:[%s306 + $0x1f8] sm:$0xff]
        %v449 = vld [vmem:[%s306 + $0x200] sm:$0xff]
        %v450 = vld [vmem:[%s306 + $0x208] sm:$0xff]
        %v451 = vld [vmem:[%s306 + $0x210] sm:$0xff]
        %v452 = vld [vmem:[%s306 + $0x218] sm:$0xff]
        %v453 = vld [vmem:[%s306 + $0x220] sm:$0xff]
        %v454 = vld [vmem:[%s306 + $0x228] sm:$0xff]
        %v455 = vld [vmem:[%s306 + $0x230] sm:$0xff]
        %v456 = vld [vmem:[%s306 + $0x238] sm:$0xff]
        %v457 = vld [vmem:[%s306 + $0x240] sm:$0xff]
        %v458 = vld [vmem:[%s306 + $0x248] sm:$0xff]
        %v459 = vld [vmem:[%s306 + $0x250] sm:$0xff]
        %v460 = vld [vmem:[%s306 + $0x258] sm:$0xff]
        %v461 = vld [vmem:[%s306 + $0x260] sm:$0xff]
        %v462 = vld [vmem:[%s306 + $0x268] sm:$0xff]
        %v463 = vld [vmem:[%s306 + $0x270] sm:$0xff]
        %v464 = vld [vmem:[%s306 + $0x278] sm:$0xff]
        %v465 = vld [vmem:[%s306 + $0x280] sm:$0xff]
        %v466 = vld [vmem:[%s306 + $0x288] sm:$0xff]
        %v467 = vld [vmem:[%s306 + $0x290] sm:$0xff]
        %v468 = vld [vmem:[%s306 + $0x298] sm:$0xff]
        %v469 = vld [vmem:[%s306 + $0x2a0] sm:$0xff]
        %v470 = vld [vmem:[%s306 + $0x2a8] sm:$0xff]
        %v471 = vld [vmem:[%s306 + $0x2b0] sm:$0xff]
        %v472 = vld [vmem:[%s306 + $0x2b8] sm:$0xff]
        %v473 = vld [vmem:[%s306 + $0x2c0] sm:$0xff]
        %v474 = vld [vmem:[%s306 + $0x2c8] sm:$0xff]
        %v475 = vld [vmem:[%s306 + $0x2d0] sm:$0xff]
        %v476 = vld [vmem:[%s306 + $0x2d8] sm:$0xff]
        %v477 = vld [vmem:[%s306 + $0x2e0] sm:$0xff]
        %v478 = vld [vmem:[%s306 + $0x2e8] sm:$0xff]
        %v479 = vld [vmem:[%s306 + $0x2f0] sm:$0xff]
        %v480 = vld [vmem:[%s306 + $0x2f8] sm:$0xff]
        %v481 = vld [vmem:[%s306 + $0x300] sm:$0xff]
        %v482 = vld [vmem:[%s306 + $0x308] sm:$0xff]
        %v483 = vld [vmem:[%s306 + $0x310] sm:$0xff]
        %v484 = vld [vmem:[%s306 + $0x318] sm:$0xff]
        %v485 = vld [vmem:[%s306 + $0x320] sm:$0xff]
        %v486 = vld [vmem:[%s306 + $0x328] sm:$0xff]
        %v487 = vld [vmem:[%s306 + $0x330] sm:$0xff]
        %v488 = vld [vmem:[%s306 + $0x338] sm:$0xff]
        %v489 = vld [vmem:[%s306 + $0x340] sm:$0xff]
        %v490 = vld [vmem:[%s306 + $0x348] sm:$0xff]
        %v491 = vld [vmem:[%s306 + $0x350] sm:$0xff]
        %v492 = vld [vmem:[%s306 + $0x358] sm:$0xff]
        %v493 = vld [vmem:[%s306 + $0x360] sm:$0xff]
        %v494 = vld [vmem:[%s306 + $0x368] sm:$0xff]
        %v495 = vld [vmem:[%s306 + $0x370] sm:$0xff]
        %v496 = vld [vmem:[%s306 + $0x378] sm:$0xff]
        %v497 = vld [vmem:[%s306 + $0x380] sm:$0xff]
        %v498 = vld [vmem:[%s306 + $0x388] sm:$0xff]
        %v499 = vld [vmem:[%s306 + $0x390] sm:$0xff]
        %v500 = vld [vmem:[%s306 + $0x398] sm:$0xff]
        %v501 = vld [vmem:[%s306 + $0x3a0] sm:$0xff]
        %v502 = vld [vmem:[%s306 + $0x3a8] sm:$0xff]
        %v503 = vld [vmem:[%s306 + $0x3b0] sm:$0xff]
        %v504 = vld [vmem:[%s306 + $0x3b8] sm:$0xff]
        %v505 = vld [vmem:[%s306 + $0x3c0] sm:$0xff]
        %v506 = vld [vmem:[%s306 + $0x3c8] sm:$0xff]
        %v507 = vld [vmem:[%s306 + $0x3d0] sm:$0xff]
        %v508 = vld [vmem:[%s306 + $0x3d8] sm:$0xff]
        %v509 = vld [vmem:[%s306 + $0x3e0] sm:$0xff]
        %v510 = vld [vmem:[%s306 + $0x3e8] sm:$0xff]
        %v511 = vld [vmem:[%s306 + $0x3f0] sm:$0xff]
        %v512 = vld [vmem:[%s306 + $0x3f8] sm:$0xff]
        %v513 = vld [vmem:[%s306 + $0x400] sm:$0xff]
        %v514 = vld [vmem:[%s306 + $0x408] sm:$0xff]
        %v515 = vld [vmem:[%s306 + $0x410] sm:$0xff]
        %v516 = vld [vmem:[%s306 + $0x418] sm:$0xff]
        %v517 = vld [vmem:[%s306 + $0x420] sm:$0xff]
        %v518 = vld [vmem:[%s306 + $0x428] sm:$0xff]
        %v519 = vld [vmem:[%s306 + $0x430] sm:$0xff]
        %v520 = vld [vmem:[%s306 + $0x438] sm:$0xff]
        %v521 = vld [vmem:[%s306 + $0x440] sm:$0xff]
        %v522 = vld [vmem:[%s306 + $0x448] sm:$0xff]
        %v523 = vld [vmem:[%s306 + $0x450] sm:$0xff]
        %v524 = vld [vmem:[%s306 + $0x458] sm:$0xff]
        %v525 = vld [vmem:[%s306 + $0x460] sm:$0xff]
        %v526 = vld [vmem:[%s306 + $0x468] sm:$0xff]
        %v527 = vld [vmem:[%s306 + $0x470] sm:$0xff]
        %v528 = vld [vmem:[%s306 + $0x478] sm:$0xff]
        %v529 = vld [vmem:[%s306 + $0x480] sm:$0xff]
        %v530 = vld [vmem:[%s306 + $0x488] sm:$0xff]
        %v531 = vld [vmem:[%s306 + $0x490] sm:$0xff]
        %v532 = vld [vmem:[%s306 + $0x498] sm:$0xff]
        %v533 = vld [vmem:[%s306 + $0x4a0] sm:$0xff]
        %v534 = vld [vmem:[%s306 + $0x4a8] sm:$0xff]
        %v535 = vld [vmem:[%s306 + $0x4b0] sm:$0xff]
        %v536 = vld [vmem:[%s306 + $0x4b8] sm:$0xff]
        %v537 = vld [vmem:[%s306 + $0x4c0] sm:$0xff]
        %v538 = vld [vmem:[%s306 + $0x4c8] sm:$0xff]
        %v539 = vld [vmem:[%s306 + $0x4d0] sm:$0xff]
        %v540 = vld [vmem:[%s306 + $0x4d8] sm:$0xff]
        %v541 = vld [vmem:[%s306 + $0x4e0] sm:$0xff]
        %v542 = vld [vmem:[%s306 + $0x4e8] sm:$0xff]
        %v543 = vld [vmem:[%s306 + $0x4f0] sm:$0xff]
        %v544 = vld [vmem:[%s306 + $0x4f8] sm:$0xff]
        %v545 = vld [vmem:[%s306 + $0x500] sm:$0xff]
        %v546 = vld [vmem:[%s306 + $0x508] sm:$0xff]
        %v547 = vld [vmem:[%s306 + $0x510] sm:$0xff]
        %v548 = vld [vmem:[%s306 + $0x518] sm:$0xff]
        %v549 = vld [vmem:[%s306 + $0x520] sm:$0xff]
        %v550 = vld [vmem:[%s306 + $0x528] sm:$0xff]
        %v551 = vld [vmem:[%s306 + $0x530] sm:$0xff]
        %v552 = vld [vmem:[%s306 + $0x538] sm:$0xff]
        %v553 = vld [vmem:[%s306 + $0x540] sm:$0xff]
        %v554 = vld [vmem:[%s306 + $0x548] sm:$0xff]
        %v555 = vld [vmem:[%s306 + $0x550] sm:$0xff]
        %v556 = vld [vmem:[%s306 + $0x558] sm:$0xff]
        %v557 = vld [vmem:[%s306 + $0x560] sm:$0xff]
        %v558 = vld [vmem:[%s306 + $0x568] sm:$0xff]
        %v559 = vld [vmem:[%s306 + $0x570] sm:$0xff]
        %v560 = vld [vmem:[%s306 + $0x578] sm:$0xff]
        %v561 = vld [vmem:[%s306 + $0x580] sm:$0xff]
        %v562 = vld [vmem:[%s306 + $0x588] sm:$0xff]
        %v563 = vld [vmem:[%s306 + $0x590] sm:$0xff]
        %v564 = vld [vmem:[%s306 + $0x598] sm:$0xff]
        %v565 = vld [vmem:[%s306 + $0x5a0] sm:$0xff]
        %v566 = vld [vmem:[%s306 + $0x5a8] sm:$0xff]
        %v567 = vld [vmem:[%s306 + $0x5b0] sm:$0xff]
        %v568 = vld [vmem:[%s306 + $0x5b8] sm:$0xff]
        %v569 = vld [vmem:[%s306 + $0x5c0] sm:$0xff]
        %v570 = vld [vmem:[%s306 + $0x5c8] sm:$0xff]
        %v571 = vld [vmem:[%s306 + $0x5d0] sm:$0xff]
        %v572 = vld [vmem:[%s306 + $0x5d8] sm:$0xff]
        %v573 = vld [vmem:[%s306 + $0x5e0] sm:$0xff]
        %v574 = vld [vmem:[%s306 + $0x5e8] sm:$0xff]
        %v575 = vld [vmem:[%s306 + $0x5f0] sm:$0xff]
        %v576 = vld [vmem:[%s306 + $0x5f8] sm:$0xff]
        %v577 = vld [vmem:[%s306 + $0x600] sm:$0xff]
        %v578 = vld [vmem:[%s306 + $0x608] sm:$0xff]
        %v579 = vld [vmem:[%s306 + $0x610] sm:$0xff]
        %v580 = vld [vmem:[%s306 + $0x618] sm:$0xff]
        %v581 = vld [vmem:[%s306 + $0x620] sm:$0xff]
        %v582 = vld [vmem:[%s306 + $0x628] sm:$0xff]
        %v583 = vld [vmem:[%s306 + $0x630] sm:$0xff]
        %v584 = vld [vmem:[%s306 + $0x638] sm:$0xff]
        %v585 = vld [vmem:[%s306 + $0x640] sm:$0xff]
        %v586 = vld [vmem:[%s306 + $0x648] sm:$0xff]
        %v587 = vld [vmem:[%s306 + $0x650] sm:$0xff]
        %v588 = vld [vmem:[%s306 + $0x658] sm:$0xff]
        %v589 = vld [vmem:[%s306 + $0x660] sm:$0xff]
        %v590 = vld [vmem:[%s306 + $0x668] sm:$0xff]
        %v591 = vld [vmem:[%s306 + $0x670] sm:$0xff]
        %v592 = vld [vmem:[%s306 + $0x678] sm:$0xff]
        %v593 = vld [vmem:[%s306 + $0x680] sm:$0xff]
        %v594 = vld [vmem:[%s306 + $0x688] sm:$0xff]
        %v595 = vld [vmem:[%s306 + $0x690] sm:$0xff]
        %v596 = vld [vmem:[%s306 + $0x698] sm:$0xff]
        %v597 = vld [vmem:[%s306 + $0x6a0] sm:$0xff]
        %v598 = vld [vmem:[%s306 + $0x6a8] sm:$0xff]
        %v599 = vld [vmem:[%s306 + $0x6b0] sm:$0xff]
        %v600 = vld [vmem:[%s306 + $0x6b8] sm:$0xff]
        %v601 = vld [vmem:[%s306 + $0x6c0] sm:$0xff]
        %v602 = vld [vmem:[%s306 + $0x6c8] sm:$0xff]
        %v603 = vld [vmem:[%s306 + $0x6d0] sm:$0xff]
        %v604 = vld [vmem:[%s306 + $0x6d8] sm:$0xff]
        %v605 = vld [vmem:[%s306 + $0x6e0] sm:$0xff]
        %v606 = vld [vmem:[%s306 + $0x6e8] sm:$0xff]
        %v607 = vld [vmem:[%s306 + $0x6f0] sm:$0xff]
        %v608 = vld [vmem:[%s306 + $0x6f8] sm:$0xff]
        %v609 = vld [vmem:[%s306 + $0x700] sm:$0xff]
        %v610 = vld [vmem:[%s306 + $0x708] sm:$0xff]
        %v611 = vld [vmem:[%s306 + $0x710] sm:$0xff]
        %v612 = vld [vmem:[%s306 + $0x718] sm:$0xff]
        %v613 = vld [vmem:[%s306 + $0x720] sm:$0xff]
        %v614 = vld [vmem:[%s306 + $0x728] sm:$0xff]
        %v615 = vld [vmem:[%s306 + $0x730] sm:$0xff]
        %v616 = vld [vmem:[%s306 + $0x738] sm:$0xff]
        %v617 = vld [vmem:[%s306 + $0x740] sm:$0xff]
        %v618 = vld [vmem:[%s306 + $0x748] sm:$0xff]
        %v619 = vld [vmem:[%s306 + $0x750] sm:$0xff]
        %v620 = vld [vmem:[%s306 + $0x758] sm:$0xff]
        %v621 = vld [vmem:[%s306 + $0x760] sm:$0xff]
        %v622 = vld [vmem:[%s306 + $0x768] sm:$0xff]
        %v623 = vld [vmem:[%s306 + $0x770] sm:$0xff]
        %v624 = vld [vmem:[%s306 + $0x778] sm:$0xff]
        %v625 = vld [vmem:[%s306 + $0x780] sm:$0xff]
        %v626 = vld [vmem:[%s306 + $0x788] sm:$0xff]
        %v627 = vld [vmem:[%s306 + $0x790] sm:$0xff]
        %v628 = vld [vmem:[%s306 + $0x798] sm:$0xff]
        %v629 = vld [vmem:[%s306 + $0x7a0] sm:$0xff]
        %v630 = vld [vmem:[%s306 + $0x7a8] sm:$0xff]
        %v631 = vld [vmem:[%s306 + $0x7b0] sm:$0xff]
        %v632 = vld [vmem:[%s306 + $0x7b8] sm:$0xff]
        %v633 = vld [vmem:[%s306 + $0x7c0] sm:$0xff]
        %v634 = vld [vmem:[%s306 + $0x7c8] sm:$0xff]
        %v635 = vld [vmem:[%s306 + $0x7d0] sm:$0xff]
        %v636 = vld [vmem:[%s306 + $0x7d8] sm:$0xff]
        %v637 = vld [vmem:[%s306 + $0x7e0] sm:$0xff]
        %v638 = vld [vmem:[%s306 + $0x7e8] sm:$0xff]
        %v639 = vld [vmem:[%s306 + $0x7f0] sm:$0xff]
        %v640 = vld [vmem:[%s306 + $0x7f8] sm:$0xff]
        %v641 = vld [vmem:[%s306 + $0x800] sm:$0xff]
        %v642 = vld [vmem:[%s306 + $0x808] sm:$0xff]
        %v643 = vld [vmem:[%s306 + $0x810] sm:$0xff]
        %v644 = vld [vmem:[%s306 + $0x818] sm:$0xff]
        %v645 = vld [vmem:[%s306 + $0x820] sm:$0xff]
        %v646 = vld [vmem:[%s306 + $0x828] sm:$0xff]
        %v647 = vld [vmem:[%s306 + $0x830] sm:$0xff]
        %v648 = vld [vmem:[%s306 + $0x838] sm:$0xff]
        %v649 = vld [vmem:[%s306 + $0x840] sm:$0xff]
        %v650 = vld [vmem:[%s306 + $0x848] sm:$0xff]
        %v651 = vld [vmem:[%s306 + $0x850] sm:$0xff]
        %v652 = vld [vmem:[%s306 + $0x858] sm:$0xff]
        %v653 = vld [vmem:[%s306 + $0x860] sm:$0xff]
        %v654 = vld [vmem:[%s306 + $0x868] sm:$0xff]
        %v655 = vld [vmem:[%s306 + $0x870] sm:$0xff]
        %v656 = vld [vmem:[%s306 + $0x878] sm:$0xff]
        %v657 = vld [vmem:[%s306 + $0x880] sm:$0xff]
        %v658 = vld [vmem:[%s306 + $0x888] sm:$0xff]
        %v659 = vld [vmem:[%s306 + $0x890] sm:$0xff]
        %v660 = vld [vmem:[%s306 + $0x898] sm:$0xff]
        %v661 = vld [vmem:[%s306 + $0x8a0] sm:$0xff]
        %v662 = vld [vmem:[%s306 + $0x8a8] sm:$0xff]
        %v663 = vld [vmem:[%s306 + $0x8b0] sm:$0xff]
        %v664 = vld [vmem:[%s306 + $0x8b8] sm:$0xff]
        %v665 = vld [vmem:[%s306 + $0x8c0] sm:$0xff]
        %v666 = vld [vmem:[%s306 + $0x8c8] sm:$0xff]
        %v667 = vld [vmem:[%s306 + $0x8d0] sm:$0xff]
        %v668 = vld [vmem:[%s306 + $0x8d8] sm:$0xff]
        %v669 = vld [vmem:[%s306 + $0x8e0] sm:$0xff]
        %v670 = vld [vmem:[%s306 + $0x8e8] sm:$0xff]
        %v671 = vld [vmem:[%s306 + $0x8f0] sm:$0xff]
        %v672 = vld [vmem:[%s306 + $0x8f8] sm:$0xff]
        %v673 = vld [vmem:[%s306 + $0x900] sm:$0xff]
        %v674 = vld [vmem:[%s306 + $0x908] sm:$0xff]
        %v675 = vld [vmem:[%s306 + $0x910] sm:$0xff]
        %v676 = vld [vmem:[%s306 + $0x918] sm:$0xff]
        %v677 = vld [vmem:[%s306 + $0x920] sm:$0xff]
        %v678 = vld [vmem:[%s306 + $0x928] sm:$0xff]
        %v679 = vld [vmem:[%s306 + $0x930] sm:$0xff]
        %v680 = vld [vmem:[%s306 + $0x938] sm:$0xff]
        %v681 = vld [vmem:[%s306 + $0x940] sm:$0xff]
        %v682 = vld [vmem:[%s306 + $0x948] sm:$0xff]
        %v683 = vld [vmem:[%s306 + $0x950] sm:$0xff]
        %v684 = vld [vmem:[%s306 + $0x958] sm:$0xff]
        %v685 = vld [vmem:[%s306 + $0x960] sm:$0xff]
        %v686 = vld [vmem:[%s306 + $0x968] sm:$0xff]
        %v687 = vld [vmem:[%s306 + $0x970] sm:$0xff]
        %v688 = vld [vmem:[%s306 + $0x978] sm:$0xff]
        %v689 = vld [vmem:[%s306 + $0x980] sm:$0xff]
        %v690 = vld [vmem:[%s306 + $0x988] sm:$0xff]
        %v691 = vld [vmem:[%s306 + $0x990] sm:$0xff]
        %v692 = vld [vmem:[%s306 + $0x998] sm:$0xff]
        %v693 = vld [vmem:[%s306 + $0x9a0] sm:$0xff]
        %v694 = vld [vmem:[%s306 + $0x9a8] sm:$0xff]
        %v695 = vld [vmem:[%s306 + $0x9b0] sm:$0xff]
        %v696 = vld [vmem:[%s306 + $0x9b8] sm:$0xff]
        %v697 = vld [vmem:[%s306 + $0x9c0] sm:$0xff]
        %v698 = vld [vmem:[%s306 + $0x9c8] sm:$0xff]
        %v699 = vld [vmem:[%s306 + $0x9d0] sm:$0xff]
        %v700 = vld [vmem:[%s306 + $0x9d8] sm:$0xff]
        %v701 = vld [vmem:[%s306 + $0x9e0] sm:$0xff]
        %v702 = vld [vmem:[%s306 + $0x9e8] sm:$0xff]
        %v703 = vld [vmem:[%s306 + $0x9f0] sm:$0xff]
        %v704 = vld [vmem:[%s306 + $0x9f8] sm:$0xff]
        %v705 = vld [vmem:[%s306 + $0xa00] sm:$0xff]
        %v706 = vld [vmem:[%s306 + $0xa08] sm:$0xff]
        %v707 = vld [vmem:[%s306 + $0xa10] sm:$0xff]
        %v708 = vld [vmem:[%s306 + $0xa18] sm:$0xff]
        %v709 = vld [vmem:[%s306 + $0xa20] sm:$0xff]
        %v710 = vld [vmem:[%s306 + $0xa28] sm:$0xff]
        %v711 = vld [vmem:[%s306 + $0xa30] sm:$0xff]
        %v712 = vld [vmem:[%s306 + $0xa38] sm:$0xff]
        %v713 = vld [vmem:[%s306 + $0xa40] sm:$0xff]
        %v714 = vld [vmem:[%s306 + $0xa48] sm:$0xff]
        %v715 = vld [vmem:[%s306 + $0xa50] sm:$0xff]
        %v716 = vld [vmem:[%s306 + $0xa58] sm:$0xff]
        %v717 = vld [vmem:[%s306 + $0xa60] sm:$0xff]
        %v718 = vld [vmem:[%s306 + $0xa68] sm:$0xff]
        %v719 = vld [vmem:[%s306 + $0xa70] sm:$0xff]
        %v720 = vld [vmem:[%s306 + $0xa78] sm:$0xff]
        %v721 = vld [vmem:[%s306 + $0xa80] sm:$0xff]
        %v722 = vld [vmem:[%s306 + $0xa88] sm:$0xff]
        %v723 = vld [vmem:[%s306 + $0xa90] sm:$0xff]
        %v724 = vld [vmem:[%s306 + $0xa98] sm:$0xff]
        %v725 = vld [vmem:[%s306 + $0xaa0] sm:$0xff]
        %v726 = vld [vmem:[%s306 + $0xaa8] sm:$0xff]
        %v727 = vld [vmem:[%s306 + $0xab0] sm:$0xff]
        %v728 = vld [vmem:[%s306 + $0xab8] sm:$0xff]
        %v729 = vld [vmem:[%s306 + $0xac0] sm:$0xff]
        %v730 = vld [vmem:[%s306 + $0xac8] sm:$0xff]
        %v731 = vld [vmem:[%s306 + $0xad0] sm:$0xff]
        %v732 = vld [vmem:[%s306 + $0xad8] sm:$0xff]
        %v733 = vld [vmem:[%s306 + $0xae0] sm:$0xff]
        %v734 = vld [vmem:[%s306 + $0xae8] sm:$0xff]
        %v735 = vld [vmem:[%s306 + $0xaf0] sm:$0xff]
        %v736 = vld [vmem:[%s306 + $0xaf8] sm:$0xff]
        %v737 = vld [vmem:[%s306 + $0xb00] sm:$0xff]
        %v738 = vld [vmem:[%s306 + $0xb08] sm:$0xff]
        %v739 = vld [vmem:[%s306 + $0xb10] sm:$0xff]
        %v740 = vld [vmem:[%s306 + $0xb18] sm:$0xff]
        %v741 = vld [vmem:[%s306 + $0xb20] sm:$0xff]
        %v742 = vld [vmem:[%s306 + $0xb28] sm:$0xff]
        %v743 = vld [vmem:[%s306 + $0xb30] sm:$0xff]
        %v744 = vld [vmem:[%s306 + $0xb38] sm:$0xff]
        %v745 = vld [vmem:[%s306 + $0xb40] sm:$0xff]
        %v746 = vld [vmem:[%s306 + $0xb48] sm:$0xff]
        %v747 = vld [vmem:[%s306 + $0xb50] sm:$0xff]
        %v748 = vld [vmem:[%s306 + $0xb58] sm:$0xff]
        %v749 = vld [vmem:[%s306 + $0xb60] sm:$0xff]
        %v750 = vld [vmem:[%s306 + $0xb68] sm:$0xff]
        %v751 = vld [vmem:[%s306 + $0xb70] sm:$0xff]
        %v752 = vld [vmem:[%s306 + $0xb78] sm:$0xff]
        %v753 = vld [vmem:[%s306 + $0xb80] sm:$0xff]
        %v754 = vld [vmem:[%s306 + $0xb88] sm:$0xff]
        %v755 = vld [vmem:[%s306 + $0xb90] sm:$0xff]
        %v756 = vld [vmem:[%s306 + $0xb98] sm:$0xff]
        %v757 = vld [vmem:[%s306 + $0xba0] sm:$0xff]
        %v758 = vld [vmem:[%s306 + $0xba8] sm:$0xff]
        %v759 = vld [vmem:[%s306 + $0xbb0] sm:$0xff]
        %v760 = vld [vmem:[%s306 + $0xbb8] sm:$0xff]
        %v761 = vld [vmem:[%s306 + $0xbc0] sm:$0xff]
        %v762 = vld [vmem:[%s306 + $0xbc8] sm:$0xff]
        %v763 = vld [vmem:[%s306 + $0xbd0] sm:$0xff]
        %v764 = vld [vmem:[%s306 + $0xbd8] sm:$0xff]
        %v765 = vld [vmem:[%s306 + $0xbe0] sm:$0xff]
        %v766 = vld [vmem:[%s306 + $0xbe8] sm:$0xff]
        %v767 = vld [vmem:[%s306 + $0xbf0] sm:$0xff]
        %v768 = vld [vmem:[%s306 + $0xbf8] sm:$0xff]
        %v769 = vld [vmem:[%s306 + $0xc00] sm:$0xff]
        %v770 = vld [vmem:[%s306 + $0xc08] sm:$0xff]
        %v771 = vld [vmem:[%s306 + $0xc10] sm:$0xff]
        %v772 = vld [vmem:[%s306 + $0xc18] sm:$0xff]
        %v773 = vld [vmem:[%s306 + $0xc20] sm:$0xff]
        %v774 = vld [vmem:[%s306 + $0xc28] sm:$0xff]
        %v775 = vld [vmem:[%s306 + $0xc30] sm:$0xff]
        %v776 = vld [vmem:[%s306 + $0xc38] sm:$0xff]
        %v777 = vld [vmem:[%s306 + $0xc40] sm:$0xff]
        %v778 = vld [vmem:[%s306 + $0xc48] sm:$0xff]
        %v779 = vld [vmem:[%s306 + $0xc50] sm:$0xff]
        %v780 = vld [vmem:[%s306 + $0xc58] sm:$0xff]
        %v781 = vld [vmem:[%s306 + $0xc60] sm:$0xff]
        %v782 = vld [vmem:[%s306 + $0xc68] sm:$0xff]
        %v783 = vld [vmem:[%s306 + $0xc70] sm:$0xff]
        %v784 = vld [vmem:[%s306 + $0xc78] sm:$0xff]
        %v785 = vld [vmem:[%s306 + $0xc80] sm:$0xff]
        %v786 = vld [vmem:[%s306 + $0xc88] sm:$0xff]
        %v787 = vld [vmem:[%s306 + $0xc90] sm:$0xff]
        %v788 = vld [vmem:[%s306 + $0xc98] sm:$0xff]
        %v789 = vld [vmem:[%s306 + $0xca0] sm:$0xff]
        %v790 = vld [vmem:[%s306 + $0xca8] sm:$0xff]
        %v791 = vld [vmem:[%s306 + $0xcb0] sm:$0xff]
        %v792 = vld [vmem:[%s306 + $0xcb8] sm:$0xff]
        %v793 = vld [vmem:[%s306 + $0xcc0] sm:$0xff]
        %v794 = vld [vmem:[%s306 + $0xcc8] sm:$0xff]
        %v795 = vld [vmem:[%s306 + $0xcd0] sm:$0xff]
        %v796 = vld [vmem:[%s306 + $0xcd8] sm:$0xff]
        %v797 = vld [vmem:[%s306 + $0xce0] sm:$0xff]
        %v798 = vld [vmem:[%s306 + $0xce8] sm:$0xff]
        %v799 = vld [vmem:[%s306 + $0xcf0] sm:$0xff]
        %v800 = vld [vmem:[%s306 + $0xcf8] sm:$0xff]
        %v801 = vld [vmem:[%s306 + $0xd00] sm:$0xff]
        %v802 = vld [vmem:[%s306 + $0xd08] sm:$0xff]
        %v803 = vld [vmem:[%s306 + $0xd10] sm:$0xff]
        %v804 = vld [vmem:[%s306 + $0xd18] sm:$0xff]
        %v805 = vld [vmem:[%s306 + $0xd20] sm:$0xff]
        %v806 = vld [vmem:[%s306 + $0xd28] sm:$0xff]
        %v807 = vld [vmem:[%s306 + $0xd30] sm:$0xff]
        %v808 = vld [vmem:[%s306 + $0xd38] sm:$0xff]
        %v809 = vld [vmem:[%s306 + $0xd40] sm:$0xff]
        %v810 = vld [vmem:[%s306 + $0xd48] sm:$0xff]
        %v811 = vld [vmem:[%s306 + $0xd50] sm:$0xff]
        %v812 = vld [vmem:[%s306 + $0xd58] sm:$0xff]
        %v813 = vld [vmem:[%s306 + $0xd60] sm:$0xff]
        %v814 = vld [vmem:[%s306 + $0xd68] sm:$0xff]
        %v815 = vld [vmem:[%s306 + $0xd70] sm:$0xff]
        %v816 = vld [vmem:[%s306 + $0xd78] sm:$0xff]
        %v817 = vld [vmem:[%s306 + $0xd80] sm:$0xff]
        %v818 = vld [vmem:[%s306 + $0xd88] sm:$0xff]
        %v819 = vld [vmem:[%s306 + $0xd90] sm:$0xff]
        %v820 = vld [vmem:[%s306 + $0xd98] sm:$0xff]
        %v821 = vld [vmem:[%s306 + $0xda0] sm:$0xff]
        %v822 = vld [vmem:[%s306 + $0xda8] sm:$0xff]
        %v823 = vld [vmem:[%s306 + $0xdb0] sm:$0xff]
        %v824 = vld [vmem:[%s306 + $0xdb8] sm:$0xff]
        %v825 = vld [vmem:[%s306 + $0xdc0] sm:$0xff]
        %v826 = vld [vmem:[%s306 + $0xdc8] sm:$0xff]
        %v827 = vld [vmem:[%s306 + $0xdd0] sm:$0xff]
        %v828 = vld [vmem:[%s306 + $0xdd8] sm:$0xff]
        %v829 = vld [vmem:[%s306 + $0xde0] sm:$0xff]
        %v830 = vld [vmem:[%s306 + $0xde8] sm:$0xff]
        %v831 = vld [vmem:[%s306 + $0xdf0] sm:$0xff]
        %v832 = vld [vmem:[%s306 + $0xdf8] sm:$0xff]
        %v833 = vld [vmem:[%s306 + $0xe00] sm:$0xff]
        %v834 = vld [vmem:[%s306 + $0xe08] sm:$0xff]
        %v835 = vld [vmem:[%s306 + $0xe10] sm:$0xff]
        %v836 = vld [vmem:[%s306 + $0xe18] sm:$0xff]
        %v837 = vld [vmem:[%s306 + $0xe20] sm:$0xff]
        %v838 = vld [vmem:[%s306 + $0xe28] sm:$0xff]
        %v839 = vld [vmem:[%s306 + $0xe30] sm:$0xff]
        %v840 = vld [vmem:[%s306 + $0xe38] sm:$0xff]
        %v841 = vld [vmem:[%s306 + $0xe40] sm:$0xff]
        %v842 = vld [vmem:[%s306 + $0xe48] sm:$0xff]
        %v843 = vld [vmem:[%s306 + $0xe50] sm:$0xff]
        %v844 = vld [vmem:[%s306 + $0xe58] sm:$0xff]
        %v845 = vld [vmem:[%s306 + $0xe60] sm:$0xff]
        %v846 = vld [vmem:[%s306 + $0xe68] sm:$0xff]
        %v847 = vld [vmem:[%s306 + $0xe70] sm:$0xff]
        %v848 = vld [vmem:[%s306 + $0xe78] sm:$0xff]
        %v849 = vld [vmem:[%s306 + $0xe80] sm:$0xff]
        %v850 = vld [vmem:[%s306 + $0xe88] sm:$0xff]
        %v851 = vld [vmem:[%s306 + $0xe90] sm:$0xff]
        %v852 = vld [vmem:[%s306 + $0xe98] sm:$0xff]
        %v853 = vld [vmem:[%s306 + $0xea0] sm:$0xff]
        %v854 = vld [vmem:[%s306 + $0xea8] sm:$0xff]
        %v855 = vld [vmem:[%s306 + $0xeb0] sm:$0xff]
        %v856 = vld [vmem:[%s306 + $0xeb8] sm:$0xff]
        %v857 = vld [vmem:[%s306 + $0xec0] sm:$0xff]
        %v858 = vld [vmem:[%s306 + $0xec8] sm:$0xff]
        %v859 = vld [vmem:[%s306 + $0xed0] sm:$0xff]
        %v860 = vld [vmem:[%s306 + $0xed8] sm:$0xff]
        %v861 = vld [vmem:[%s306 + $0xee0] sm:$0xff]
        %v862 = vld [vmem:[%s306 + $0xee8] sm:$0xff]
        %v863 = vld [vmem:[%s306 + $0xef0] sm:$0xff]
        %v864 = vld [vmem:[%s306 + $0xef8] sm:$0xff]
        %v865 = vld [vmem:[%s306 + $0xf00] sm:$0xff]
        %v866 = vld [vmem:[%s306 + $0xf08] sm:$0xff]
        %v867 = vld [vmem:[%s306 + $0xf10] sm:$0xff]
        %v868 = vld [vmem:[%s306 + $0xf18] sm:$0xff]
        %v869 = vld [vmem:[%s306 + $0xf20] sm:$0xff]
        %v870 = vld [vmem:[%s306 + $0xf28] sm:$0xff]
        %v871 = vld [vmem:[%s306 + $0xf30] sm:$0xff]
        %v872 = vld [vmem:[%s306 + $0xf38] sm:$0xff]
        %v873 = vld [vmem:[%s306 + $0xf40] sm:$0xff]
        %v874 = vld [vmem:[%s306 + $0xf48] sm:$0xff]
        %v875 = vld [vmem:[%s306 + $0xf50] sm:$0xff]
        %v876 = vld [vmem:[%s306 + $0xf58] sm:$0xff]
        %v877 = vld [vmem:[%s306 + $0xf60] sm:$0xff]
        %v878 = vld [vmem:[%s306 + $0xf68] sm:$0xff]
        %v879 = vld [vmem:[%s306 + $0xf70] sm:$0xff]
        %v880 = vld [vmem:[%s306 + $0xf78] sm:$0xff]
        %v881 = vld [vmem:[%s306 + $0xf80] sm:$0xff]
        %v882 = vld [vmem:[%s306 + $0xf88] sm:$0xff]
        %v883 = vld [vmem:[%s306 + $0xf90] sm:$0xff]
        %v884 = vld [vmem:[%s306 + $0xf98] sm:$0xff]
        %v885 = vld [vmem:[%s306 + $0xfa0] sm:$0xff]
        %v886 = vld [vmem:[%s306 + $0xfa8] sm:$0xff]
        %v887 = vld [vmem:[%s306 + $0xfb0] sm:$0xff]
        %v888 = vld [vmem:[%s306 + $0xfb8] sm:$0xff]
        %v889 = vld [vmem:[%s306 + $0xfc0] sm:$0xff]
        %v890 = vld [vmem:[%s306 + $0xfc8] sm:$0xff]
        %v891 = vld [vmem:[%s306 + $0xfd0] sm:$0xff]
        %v892 = vld [vmem:[%s306 + $0xfd8] sm:$0xff]
        %v893 = vld [vmem:[%s306 + $0xfe0] sm:$0xff]
        %v894 = vld [vmem:[%s306 + $0xfe8] sm:$0xff]
        %v895 = vld [vmem:[%s306 + $0xff0] sm:$0xff]
        %v896 = vld [vmem:[%s306 + $0xff8] sm:$0xff]
        %v897 = vld [vmem:[%s315] sm:$0xff]
        %v899 = vlaneseq
        %v900 = vshrl.u32 %v899, 7
        %v901 = vsub.s32 0, %v900
        %v902 = vrot.slane %v897, %v901
        %v903 = vlaneseq
        %v904 = vshrl.u32 %v903, 7
        %v905 = vsub.s32 1, %v904
        %v906 = vrot.slane %v897, %v905
        %v907 = vlaneseq
        %v908 = vshrl.u32 %v907, 7
        %v909 = vsub.s32 2, %v908
        %v910 = vrot.slane %v897, %v909
        %v911 = vlaneseq
        %v912 = vshrl.u32 %v911, 7
        %v913 = vsub.s32 3, %v912
        %v914 = vrot.slane %v897, %v913
        %v915 = vlaneseq
        %v916 = vshrl.u32 %v915, 7
        %v917 = vsub.s32 4, %v916
        %v918 = vrot.slane %v897, %v917
        %v919 = vlaneseq
        %v920 = vshrl.u32 %v919, 7
        %v921 = vsub.s32 5, %v920
        %v922 = vrot.slane %v897, %v921
        %v923 = vlaneseq
        %v924 = vshrl.u32 %v923, 7
        %v925 = vsub.s32 6, %v924
        %v926 = vrot.slane %v897, %v925
        %v927 = vlaneseq
        %v928 = vshrl.u32 %v927, 7
        %v929 = vsub.s32 7, %v928
        %v930 = vrot.slane %v897, %v929
        %939 = vmatprep.subr.mxu0 %v386
        %940 = vmatpush1.msra.mxu0 %v385
        %941 = vmatprep.subr.mxu0 %v394
        %942 = vmatpush1.msra.mxu0 %v393
        %943 = vmatprep.subr.mxu0 %v402
        %944 = vmatpush1.msra.mxu0 %v401
        %945 = vmatprep.subr.mxu0 %v410
        %946 = vmatpush1.msra.mxu0 %v409
        %947 = vmatprep.subr.mxu0 %v418
        %948 = vmatpush1.msra.mxu0 %v417
        %949 = vmatprep.subr.mxu0 %v426
        %950 = vmatpush1.msra.mxu0 %v425
        %951 = vmatprep.subr.mxu0 %v434
        %952 = vmatpush1.msra.mxu0 %v433
        %953 = vmatprep.subr.mxu0 %v442
        %954 = vmatpush1.msra.mxu0 %v441
        %955 = vmatprep.subr.mxu0 %v450
        %956 = vmatpush1.msra.mxu0 %v449
        %957 = vmatprep.subr.mxu0 %v458
        %958 = vmatpush1.msra.mxu0 %v457
        %959 = vmatprep.subr.mxu0 %v466
        %960 = vmatpush1.msra.mxu0 %v465
        %961 = vmatprep.subr.mxu0 %v474
        %962 = vmatpush1.msra.mxu0 %v473
        %963 = vmatprep.subr.mxu0 %v482
        %964 = vmatpush1.msra.mxu0 %v481
        %965 = vmatprep.subr.mxu0 %v490
        %966 = vmatpush1.msra.mxu0 %v489
        %967 = vmatprep.subr.mxu0 %v498
        %968 = vmatpush1.msra.mxu0 %v497
        %969 = vmatprep.subr.mxu0 %v506
        %970 = vmatpush1.msra.mxu0 %v505
        %971 = vmatprep.subr.mxu0 %v514
        %972 = vmatpush1.msra.mxu0 %v513
        %973 = vmatprep.subr.mxu0 %v522
        %974 = vmatpush1.msra.mxu0 %v521
        %975 = vmatprep.subr.mxu0 %v530
        %976 = vmatpush1.msra.mxu0 %v529
        %977 = vmatprep.subr.mxu0 %v538
        %978 = vmatpush1.msra.mxu0 %v537
        %979 = vmatprep.subr.mxu0 %v546
        %980 = vmatpush1.msra.mxu0 %v545
        %981 = vmatprep.subr.mxu0 %v554
        %982 = vmatpush1.msra.mxu0 %v553
        %983 = vmatprep.subr.mxu0 %v562
        %984 = vmatpush1.msra.mxu0 %v561
        %985 = vmatprep.subr.mxu0 %v570
        %986 = vmatpush1.msra.mxu0 %v569
        %987 = vmatprep.subr.mxu0 %v578
        %988 = vmatpush1.msra.mxu0 %v577
        %989 = vmatprep.subr.mxu0 %v586
        %990 = vmatpush1.msra.mxu0 %v585
        %991 = vmatprep.subr.mxu0 %v594
        %992 = vmatpush1.msra.mxu0 %v593
        %993 = vmatprep.subr.mxu0 %v602
        %994 = vmatpush1.msra.mxu0 %v601
        %995 = vmatprep.subr.mxu0 %v610
        %996 = vmatpush1.msra.mxu0 %v609
        %997 = vmatprep.subr.mxu0 %v618
        %998 = vmatpush1.msra.mxu0 %v617
        %999 = vmatprep.subr.mxu0 %v626
        %1000 = vmatpush1.msra.mxu0 %v625
        %1001 = vmatprep.subr.mxu0 %v634
        %1002 = vmatpush1.msra.mxu0 %v633
        %1003 = vmatprep.mubr.f32.mxu0 %v378
        %1004 = vmatmul.mubr.f32.gmra.mrb[0].mxu0 %v377
        %v1005 = vpop.f32.mrb[0].mxu0
        %v1006 = vadd.f32 %v902, %v1005
        %v1007 = vpop.f32.mrb[0].mxu0
        %v1008 = vadd.f32 %v906, %v1007
        %1009 = vmatprep.mubr.f32.mxu0 %v382
        %1010 = vmatmul.mubr.f32.gmra.mrb[0].mxu0 %v381
        %v1011 = vpop.f32.mrb[0].mxu0
        %v1012 = vadd.f32 %v902, %v1011
        %v1013 = vpop.f32.mrb[0].mxu0
        %v1014 = vadd.f32 %v906, %v1013
        %1015 = vdwg.mxu0
        %1016 = vmatprep.subr.mxu0 %v642
        %1017 = vmatpush1.msra.mxu0 %v641
        %1018 = vmatprep.subr.mxu0 %v650
        %1019 = vmatpush1.msra.mxu0 %v649
        %1020 = vmatprep.subr.mxu0 %v658
        %1021 = vmatpush1.msra.mxu0 %v657
        %1022 = vmatprep.subr.mxu0 %v666
        %1023 = vmatpush1.msra.mxu0 %v665
        %1024 = vmatprep.subr.mxu0 %v674
        %1025 = vmatpush1.msra.mxu0 %v673
        %1026 = vmatprep.subr.mxu0 %v682
        %1027 = vmatpush1.msra.mxu0 %v681
        %1028 = vmatprep.subr.mxu0 %v690
        %1029 = vmatpush1.msra.mxu0 %v689
        %1030 = vmatprep.subr.mxu0 %v698
        %1031 = vmatpush1.msra.mxu0 %v697
        %1032 = vmatprep.subr.mxu0 %v706
        %1033 = vmatpush1.msra.mxu0 %v705
        %1034 = vmatprep.subr.mxu0 %v714
        %1035 = vmatpush1.msra.mxu0 %v713
        %1036 = vmatprep.subr.mxu0 %v722
        %1037 = vmatpush1.msra.mxu0 %v721
        %1038 = vmatprep.subr.mxu0 %v730
        %1039 = vmatpush1.msra.mxu0 %v729
        %1040 = vmatprep.subr.mxu0 %v738
        %1041 = vmatpush1.msra.mxu0 %v737
        %1042 = vmatprep.subr.mxu0 %v746
        %1043 = vmatpush1.msra.mxu0 %v745
        %1044 = vmatprep.subr.mxu0 %v754
        %1045 = vmatpush1.msra.mxu0 %v753
        %1046 = vmatprep.subr.mxu0 %v762
        %1047 = vmatpush1.msra.mxu0 %v761
        %1048 = vmatprep.subr.mxu0 %v770
        %1049 = vmatpush1.msra.mxu0 %v769
        %1050 = vmatprep.subr.mxu0 %v778
        %1051 = vmatpush1.msra.mxu0 %v777
        %1052 = vmatprep.subr.mxu0 %v786
        %1053 = vmatpush1.msra.mxu0 %v785
        %1054 = vmatprep.subr.mxu0 %v794
        %1055 = vmatpush1.msra.mxu0 %v793
        %1056 = vmatprep.subr.mxu0 %v802
        %1057 = vmatpush1.msra.mxu0 %v801
        %1058 = vmatprep.subr.mxu0 %v810
        %1059 = vmatpush1.msra.mxu0 %v809
        %1060 = vmatprep.subr.mxu0 %v818
        %1061 = vmatpush1.msra.mxu0 %v817
        %1062 = vmatprep.subr.mxu0 %v826
        %1063 = vmatpush1.msra.mxu0 %v825
        %1064 = vmatprep.subr.mxu0 %v834
        %1065 = vmatpush1.msra.mxu0 %v833
        %1066 = vmatprep.subr.mxu0 %v842
        %1067 = vmatpush1.msra.mxu0 %v841
        %1068 = vmatprep.subr.mxu0 %v850
        %1069 = vmatpush1.msra.mxu0 %v849
        %1070 = vmatprep.subr.mxu0 %v858
        %1071 = vmatpush1.msra.mxu0 %v857
        %1072 = vmatprep.subr.mxu0 %v866
        %1073 = vmatpush1.msra.mxu0 %v865
        %1074 = vmatprep.subr.mxu0 %v874
        %1075 = vmatpush1.msra.mxu0 %v873
        %1076 = vmatprep.subr.mxu0 %v882
        %1077 = vmatpush1.msra.mxu0 %v881
        %1078 = vmatprep.subr.mxu0 %v890
        %1079 = vmatpush1.msra.mxu0 %v889
        %1080 = vmatprep.mubr.f32.mxu0 %v380
        %1081 = vmatmul.mubr.f32.gmra.mrb[0].mxu0 %v379
        %v1082 = vpop.f32.mrb[0].mxu0
        %v1083 = vadd.f32 %v1006, %v1082
        %v1084 = vpop.f32.mrb[0].mxu0
        %v1085 = vadd.f32 %v1008, %v1084
        %1086 = vmatprep.mubr.f32.mxu0 %v384
        %1087 = vmatmul.mubr.f32.gmra.mrb[0].mxu0 %v383
        %v1088 = vpop.f32.mrb[0].mxu0
        %v1089 = vadd.f32 %v1012, %v1088
        %v1090 = vpop.f32.mrb[0].mxu0
        %v1091 = vadd.f32 %v1014, %v1090
        %1092 = vdwg.mxu0
        %1093 = vmatprep.subr.mxu0 %v388
        %1094 = vmatpush1.msra.mxu0 %v387
        %1095 = vmatprep.subr.mxu0 %v396
        %1096 = vmatpush1.msra.mxu0 %v395
        %1097 = vmatprep.subr.mxu0 %v404
        %1098 = vmatpush1.msra.mxu0 %v403
        %1099 = vmatprep.subr.mxu0 %v412
        %1100 = vmatpush1.msra.mxu0 %v411
        %1101 = vmatprep.subr.mxu0 %v420
        %1102 = vmatpush1.msra.mxu0 %v419
        %1103 = vmatprep.subr.mxu0 %v428
        %1104 = vmatpush1.msra.mxu0 %v427
        %1105 = vmatprep.subr.mxu0 %v436
        %1106 = vmatpush1.msra.mxu0 %v435
        %1107 = vmatprep.subr.mxu0 %v444
        %1108 = vmatpush1.msra.mxu0 %v443
        %1109 = vmatprep.subr.mxu0 %v452
        %1110 = vmatpush1.msra.mxu0 %v451
        %1111 = vmatprep.subr.mxu0 %v460
        %1112 = vmatpush1.msra.mxu0 %v459
        %1113 = vmatprep.subr.mxu0 %v468
        %1114 = vmatpush1.msra.mxu0 %v467
        %1115 = vmatprep.subr.mxu0 %v476
        %1116 = vmatpush1.msra.mxu0 %v475
        %1117 = vmatprep.subr.mxu0 %v484
        %1118 = vmatpush1.msra.mxu0 %v483
        %1119 = vmatprep.subr.mxu0 %v492
        %1120 = vmatpush1.msra.mxu0 %v491
        %1121 = vmatprep.subr.mxu0 %v500
        %1122 = vmatpush1.msra.mxu0 %v499
        %1123 = vmatprep.subr.mxu0 %v508
        %1124 = vmatpush1.msra.mxu0 %v507
        %1125 = vmatprep.subr.mxu0 %v516
        %1126 = vmatpush1.msra.mxu0 %v515
        %1127 = vmatprep.subr.mxu0 %v524
        %1128 = vmatpush1.msra.mxu0 %v523
        %1129 = vmatprep.subr.mxu0 %v532
        %1130 = vmatpush1.msra.mxu0 %v531
        %1131 = vmatprep.subr.mxu0 %v540
        %1132 = vmatpush1.msra.mxu0 %v539
        %1133 = vmatprep.subr.mxu0 %v548
        %1134 = vmatpush1.msra.mxu0 %v547
        %1135 = vmatprep.subr.mxu0 %v556
        %1136 = vmatpush1.msra.mxu0 %v555
        %1137 = vmatprep.subr.mxu0 %v564
        %1138 = vmatpush1.msra.mxu0 %v563
        %1139 = vmatprep.subr.mxu0 %v572
        %1140 = vmatpush1.msra.mxu0 %v571
        %1141 = vmatprep.subr.mxu0 %v580
        %1142 = vmatpush1.msra.mxu0 %v579
        %1143 = vmatprep.subr.mxu0 %v588
        %1144 = vmatpush1.msra.mxu0 %v587
        %1145 = vmatprep.subr.mxu0 %v596
        %1146 = vmatpush1.msra.mxu0 %v595
        %1147 = vmatprep.subr.mxu0 %v604
        %1148 = vmatpush1.msra.mxu0 %v603
        %1149 = vmatprep.subr.mxu0 %v612
        %1150 = vmatpush1.msra.mxu0 %v611
        %1151 = vmatprep.subr.mxu0 %v620
        %1152 = vmatpush1.msra.mxu0 %v619
        %1153 = vmatprep.subr.mxu0 %v628
        %1154 = vmatpush1.msra.mxu0 %v627
        %1155 = vmatprep.subr.mxu0 %v636
        %1156 = vmatpush1.msra.mxu0 %v635
        %1157 = vmatprep.mubr.f32.mxu0 %v378
        %1158 = vmatmul.mubr.f32.gmra.mrb[0].mxu0 %v377
        %v1159 = vpop.f32.mrb[0].mxu0
        %v1160 = vadd.f32 %v910, %v1159
        %v1161 = vpop.f32.mrb[0].mxu0
        %v1162 = vadd.f32 %v914, %v1161
        %1163 = vmatprep.mubr.f32.mxu0 %v382
        %1164 = vmatmul.mubr.f32.gmra.mrb[0].mxu0 %v381
        %v1165 = vpop.f32.mrb[0].mxu0
        %v1166 = vadd.f32 %v910, %v1165
        %v1167 = vpop.f32.mrb[0].mxu0
        %v1168 = vadd.f32 %v914, %v1167
        %1169 = vdwg.mxu0
        %1170 = vmatprep.subr.mxu0 %v644
        %1171 = vmatpush1.msra.mxu0 %v643
        %1172 = vmatprep.subr.mxu0 %v652
        %1173 = vmatpush1.msra.mxu0 %v651
        %1174 = vmatprep.subr.mxu0 %v660
        %1175 = vmatpush1.msra.mxu0 %v659
        %1176 = vmatprep.subr.mxu0 %v668
        %1177 = vmatpush1.msra.mxu0 %v667
        %1178 = vmatprep.subr.mxu0 %v676
        %1179 = vmatpush1.msra.mxu0 %v675
        %1180 = vmatprep.subr.mxu0 %v684
        %1181 = vmatpush1.msra.mxu0 %v683
        %1182 = vmatprep.subr.mxu0 %v692
        %1183 = vmatpush1.msra.mxu0 %v691
        %1184 = vmatprep.subr.mxu0 %v700
        %1185 = vmatpush1.msra.mxu0 %v699
        %1186 = vmatprep.subr.mxu0 %v708
        %1187 = vmatpush1.msra.mxu0 %v707
        %1188 = vmatprep.subr.mxu0 %v716
        %1189 = vmatpush1.msra.mxu0 %v715
        %1190 = vmatprep.subr.mxu0 %v724
        %1191 = vmatpush1.msra.mxu0 %v723
        %1192 = vmatprep.subr.mxu0 %v732
        %1193 = vmatpush1.msra.mxu0 %v731
        %1194 = vmatprep.subr.mxu0 %v740
        %1195 = vmatpush1.msra.mxu0 %v739
        %1196 = vmatprep.subr.mxu0 %v748
        %1197 = vmatpush1.msra.mxu0 %v747
        %1198 = vmatprep.subr.mxu0 %v756
        %1199 = vmatpush1.msra.mxu0 %v755
        %1200 = vmatprep.subr.mxu0 %v764
        %1201 = vmatpush1.msra.mxu0 %v763
        %1202 = vmatprep.subr.mxu0 %v772
        %1203 = vmatpush1.msra.mxu0 %v771
        %1204 = vmatprep.subr.mxu0 %v780
        %1205 = vmatpush1.msra.mxu0 %v779
        %1206 = vmatprep.subr.mxu0 %v788
        %1207 = vmatpush1.msra.mxu0 %v787
        %1208 = vmatprep.subr.mxu0 %v796
        %1209 = vmatpush1.msra.mxu0 %v795
        %1210 = vmatprep.subr.mxu0 %v804
        %1211 = vmatpush1.msra.mxu0 %v803
        %1212 = vmatprep.subr.mxu0 %v812
        %1213 = vmatpush1.msra.mxu0 %v811
        %1214 = vmatprep.subr.mxu0 %v820
        %1215 = vmatpush1.msra.mxu0 %v819
        %1216 = vmatprep.subr.mxu0 %v828
        %1217 = vmatpush1.msra.mxu0 %v827
        %1218 = vmatprep.subr.mxu0 %v836
        %1219 = vmatpush1.msra.mxu0 %v835
        %1220 = vmatprep.subr.mxu0 %v844
        %1221 = vmatpush1.msra.mxu0 %v843
        %1222 = vmatprep.subr.mxu0 %v852
        %1223 = vmatpush1.msra.mxu0 %v851
        %1224 = vmatprep.subr.mxu0 %v860
        %1225 = vmatpush1.msra.mxu0 %v859
        %1226 = vmatprep.subr.mxu0 %v868
        %1227 = vmatpush1.msra.mxu0 %v867
        %1228 = vmatprep.subr.mxu0 %v876
        %1229 = vmatpush1.msra.mxu0 %v875
        %1230 = vmatprep.subr.mxu0 %v884
        %1231 = vmatpush1.msra.mxu0 %v883
        %1232 = vmatprep.subr.mxu0 %v892
        %1233 = vmatpush1.msra.mxu0 %v891
        %1234 = vmatprep.mubr.f32.mxu0 %v380
        %1235 = vmatmul.mubr.f32.gmra.mrb[0].mxu0 %v379
        %v1236 = vpop.f32.mrb[0].mxu0
        %v1237 = vadd.f32 %v1160, %v1236
        %v1238 = vpop.f32.mrb[0].mxu0
        %v1239 = vadd.f32 %v1162, %v1238
        %1240 = vmatprep.mubr.f32.mxu0 %v384
        %1241 = vmatmul.mubr.f32.gmra.mrb[0].mxu0 %v383
        %v1242 = vpop.f32.mrb[0].mxu0
        %v1243 = vadd.f32 %v1166, %v1242
        %v1244 = vpop.f32.mrb[0].mxu0
        %v1245 = vadd.f32 %v1168, %v1244
        %1246 = vdwg.mxu0
        %1247 = vmatprep.subr.mxu0 %v390
        %1248 = vmatpush1.msra.mxu0 %v389
        %1249 = vmatprep.subr.mxu0 %v398
        %1250 = vmatpush1.msra.mxu0 %v397
        %1251 = vmatprep.subr.mxu0 %v406
        %1252 = vmatpush1.msra.mxu0 %v405
        %1253 = vmatprep.subr.mxu0 %v414
        %1254 = vmatpush1.msra.mxu0 %v413
        %1255 = vmatprep.subr.mxu0 %v422
        %1256 = vmatpush1.msra.mxu0 %v421
        %1257 = vmatprep.subr.mxu0 %v430
        %1258 = vmatpush1.msra.mxu0 %v429
        %1259 = vmatprep.subr.mxu0 %v438
        %1260 = vmatpush1.msra.mxu0 %v437
        %1261 = vmatprep.subr.mxu0 %v446
        %1262 = vmatpush1.msra.mxu0 %v445
        %1263 = vmatprep.subr.mxu0 %v454
        %1264 = vmatpush1.msra.mxu0 %v453
        %1265 = vmatprep.subr.mxu0 %v462
        %1266 = vmatpush1.msra.mxu0 %v461
        %1267 = vmatprep.subr.mxu0 %v470
        %1268 = vmatpush1.msra.mxu0 %v469
        %1269 = vmatprep.subr.mxu0 %v478
        %1270 = vmatpush1.msra.mxu0 %v477
        %1271 = vmatprep.subr.mxu0 %v486
        %1272 = vmatpush1.msra.mxu0 %v485
        %1273 = vmatprep.subr.mxu0 %v494
        %1274 = vmatpush1.msra.mxu0 %v493
        %1275 = vmatprep.subr.mxu0 %v502
        %1276 = vmatpush1.msra.mxu0 %v501
        %1277 = vmatprep.subr.mxu0 %v510
        %1278 = vmatpush1.msra.mxu0 %v509
        %1279 = vmatprep.subr.mxu0 %v518
        %1280 = vmatpush1.msra.mxu0 %v517
        %1281 = vmatprep.subr.mxu0 %v526
        %1282 = vmatpush1.msra.mxu0 %v525
        %1283 = vmatprep.subr.mxu0 %v534
        %1284 = vmatpush1.msra.mxu0 %v533
        %1285 = vmatprep.subr.mxu0 %v542
        %1286 = vmatpush1.msra.mxu0 %v541
        %1287 = vmatprep.subr.mxu0 %v550
        %1288 = vmatpush1.msra.mxu0 %v549
        %1289 = vmatprep.subr.mxu0 %v558
        %1290 = vmatpush1.msra.mxu0 %v557
        %1291 = vmatprep.subr.mxu0 %v566
        %1292 = vmatpush1.msra.mxu0 %v565
        %1293 = vmatprep.subr.mxu0 %v574
        %1294 = vmatpush1.msra.mxu0 %v573
        %1295 = vmatprep.subr.mxu0 %v582
        %1296 = vmatpush1.msra.mxu0 %v581
        %1297 = vmatprep.subr.mxu0 %v590
        %1298 = vmatpush1.msra.mxu0 %v589
        %1299 = vmatprep.subr.mxu0 %v598
        %1300 = vmatpush1.msra.mxu0 %v597
        %1301 = vmatprep.subr.mxu0 %v606
        %1302 = vmatpush1.msra.mxu0 %v605
        %1303 = vmatprep.subr.mxu0 %v614
        %1304 = vmatpush1.msra.mxu0 %v613
        %1305 = vmatprep.subr.mxu0 %v622
        %1306 = vmatpush1.msra.mxu0 %v621
        %1307 = vmatprep.subr.mxu0 %v630
        %1308 = vmatpush1.msra.mxu0 %v629
        %1309 = vmatprep.subr.mxu0 %v638
        %1310 = vmatpush1.msra.mxu0 %v637
        %1311 = vmatprep.mubr.f32.mxu0 %v378
        %1312 = vmatmul.mubr.f32.gmra.mrb[0].mxu0 %v377
        %v1313 = vpop.f32.mrb[0].mxu0
        %v1314 = vadd.f32 %v918, %v1313
        %v1315 = vpop.f32.mrb[0].mxu0
        %v1316 = vadd.f32 %v922, %v1315
        %1317 = vmatprep.mubr.f32.mxu0 %v382
        %1318 = vmatmul.mubr.f32.gmra.mrb[0].mxu0 %v381
        %v1319 = vpop.f32.mrb[0].mxu0
        %v1320 = vadd.f32 %v918, %v1319
        %v1321 = vpop.f32.mrb[0].mxu0
        %v1322 = vadd.f32 %v922, %v1321
        %1323 = vdwg.mxu0
        %1324 = vmatprep.subr.mxu0 %v646
        %1325 = vmatpush1.msra.mxu0 %v645
        %1326 = vmatprep.subr.mxu0 %v654
        %1327 = vmatpush1.msra.mxu0 %v653
        %1328 = vmatprep.subr.mxu0 %v662
        %1329 = vmatpush1.msra.mxu0 %v661
        %1330 = vmatprep.subr.mxu0 %v670
        %1331 = vmatpush1.msra.mxu0 %v669
        %1332 = vmatprep.subr.mxu0 %v678
        %1333 = vmatpush1.msra.mxu0 %v677
        %1334 = vmatprep.subr.mxu0 %v686
        %1335 = vmatpush1.msra.mxu0 %v685
        %1336 = vmatprep.subr.mxu0 %v694
        %1337 = vmatpush1.msra.mxu0 %v693
        %1338 = vmatprep.subr.mxu0 %v702
        %1339 = vmatpush1.msra.mxu0 %v701
        %1340 = vmatprep.subr.mxu0 %v710
        %1341 = vmatpush1.msra.mxu0 %v709
        %1342 = vmatprep.subr.mxu0 %v718
        %1343 = vmatpush1.msra.mxu0 %v717
        %1344 = vmatprep.subr.mxu0 %v726
        %1345 = vmatpush1.msra.mxu0 %v725
        %1346 = vmatprep.subr.mxu0 %v734
        %1347 = vmatpush1.msra.mxu0 %v733
        %1348 = vmatprep.subr.mxu0 %v742
        %1349 = vmatpush1.msra.mxu0 %v741
        %1350 = vmatprep.subr.mxu0 %v750
        %1351 = vmatpush1.msra.mxu0 %v749
        %1352 = vmatprep.subr.mxu0 %v758
        %1353 = vmatpush1.msra.mxu0 %v757
        %1354 = vmatprep.subr.mxu0 %v766
        %1355 = vmatpush1.msra.mxu0 %v765
        %1356 = vmatprep.subr.mxu0 %v774
        %1357 = vmatpush1.msra.mxu0 %v773
        %1358 = vmatprep.subr.mxu0 %v782
        %1359 = vmatpush1.msra.mxu0 %v781
        %1360 = vmatprep.subr.mxu0 %v790
        %1361 = vmatpush1.msra.mxu0 %v789
        %1362 = vmatprep.subr.mxu0 %v798
        %1363 = vmatpush1.msra.mxu0 %v797
        %1364 = vmatprep.subr.mxu0 %v806
        %1365 = vmatpush1.msra.mxu0 %v805
        %1366 = vmatprep.subr.mxu0 %v814
        %1367 = vmatpush1.msra.mxu0 %v813
        %1368 = vmatprep.subr.mxu0 %v822
        %1369 = vmatpush1.msra.mxu0 %v821
        %1370 = vmatprep.subr.mxu0 %v830
        %1371 = vmatpush1.msra.mxu0 %v829
        %1372 = vmatprep.subr.mxu0 %v838
        %1373 = vmatpush1.msra.mxu0 %v837
        %1374 = vmatprep.subr.mxu0 %v846
        %1375 = vmatpush1.msra.mxu0 %v845
        %1376 = vmatprep.subr.mxu0 %v854
        %1377 = vmatpush1.msra.mxu0 %v853
        %1378 = vmatprep.subr.mxu0 %v862
        %1379 = vmatpush1.msra.mxu0 %v861
        %1380 = vmatprep.subr.mxu0 %v870
        %1381 = vmatpush1.msra.mxu0 %v869
        %1382 = vmatprep.subr.mxu0 %v878
        %1383 = vmatpush1.msra.mxu0 %v877
        %1384 = vmatprep.subr.mxu0 %v886
        %1385 = vmatpush1.msra.mxu0 %v885
        %1386 = vmatprep.subr.mxu0 %v894
        %1387 = vmatpush1.msra.mxu0 %v893
        %1388 = vmatprep.mubr.f32.mxu0 %v380
        %1389 = vmatmul.mubr.f32.gmra.mrb[0].mxu0 %v379
        %v1390 = vpop.f32.mrb[0].mxu0
        %v1391 = vadd.f32 %v1314, %v1390
        %v1392 = vpop.f32.mrb[0].mxu0
        %v1393 = vadd.f32 %v1316, %v1392
        %1394 = vmatprep.mubr.f32.mxu0 %v384
        %1395 = vmatmul.mubr.f32.gmra.mrb[0].mxu0 %v383
        %v1396 = vpop.f32.mrb[0].mxu0
        %v1397 = vadd.f32 %v1320, %v1396
        %v1398 = vpop.f32.mrb[0].mxu0
        %v1399 = vadd.f32 %v1322, %v1398
        %1400 = vdwg.mxu0
        %1401 = vmatprep.subr.mxu0 %v392
        %1402 = vmatpush1.msra.mxu0 %v391
        %1403 = vmatprep.subr.mxu0 %v400
        %1404 = vmatpush1.msra.mxu0 %v399
        %1405 = vmatprep.subr.mxu0 %v408
        %1406 = vmatpush1.msra.mxu0 %v407
        %1407 = vmatprep.subr.mxu0 %v416
        %1408 = vmatpush1.msra.mxu0 %v415
        %1409 = vmatprep.subr.mxu0 %v424
        %1410 = vmatpush1.msra.mxu0 %v423
        %1411 = vmatprep.subr.mxu0 %v432
        %1412 = vmatpush1.msra.mxu0 %v431
        %1413 = vmatprep.subr.mxu0 %v440
        %1414 = vmatpush1.msra.mxu0 %v439
        %1415 = vmatprep.subr.mxu0 %v448
        %1416 = vmatpush1.msra.mxu0 %v447
        %1417 = vmatprep.subr.mxu0 %v456
        %1418 = vmatpush1.msra.mxu0 %v455
        %1419 = vmatprep.subr.mxu0 %v464
        %1420 = vmatpush1.msra.mxu0 %v463
        %1421 = vmatprep.subr.mxu0 %v472
        %1422 = vmatpush1.msra.mxu0 %v471
        %1423 = vmatprep.subr.mxu0 %v480
        %1424 = vmatpush1.msra.mxu0 %v479
        %1425 = vmatprep.subr.mxu0 %v488
        %1426 = vmatpush1.msra.mxu0 %v487
        %1427 = vmatprep.subr.mxu0 %v496
        %1428 = vmatpush1.msra.mxu0 %v495
        %1429 = vmatprep.subr.mxu0 %v504
        %1430 = vmatpush1.msra.mxu0 %v503
        %1431 = vmatprep.subr.mxu0 %v512
        %1432 = vmatpush1.msra.mxu0 %v511
        %1433 = vmatprep.subr.mxu0 %v520
        %1434 = vmatpush1.msra.mxu0 %v519
        %1435 = vmatprep.subr.mxu0 %v528
        %1436 = vmatpush1.msra.mxu0 %v527
        %1437 = vmatprep.subr.mxu0 %v536
        %1438 = vmatpush1.msra.mxu0 %v535
        %1439 = vmatprep.subr.mxu0 %v544
        %1440 = vmatpush1.msra.mxu0 %v543
        %1441 = vmatprep.subr.mxu0 %v552
        %1442 = vmatpush1.msra.mxu0 %v551
        %1443 = vmatprep.subr.mxu0 %v560
        %1444 = vmatpush1.msra.mxu0 %v559
        %1445 = vmatprep.subr.mxu0 %v568
        %1446 = vmatpush1.msra.mxu0 %v567
        %1447 = vmatprep.subr.mxu0 %v576
        %1448 = vmatpush1.msra.mxu0 %v575
        %1449 = vmatprep.subr.mxu0 %v584
        %1450 = vmatpush1.msra.mxu0 %v583
        %1451 = vmatprep.subr.mxu0 %v592
        %1452 = vmatpush1.msra.mxu0 %v591
        %1453 = vmatprep.subr.mxu0 %v600
        %1454 = vmatpush1.msra.mxu0 %v599
        %1455 = vmatprep.subr.mxu0 %v608
        %1456 = vmatpush1.msra.mxu0 %v607
        %1457 = vmatprep.subr.mxu0 %v616
        %1458 = vmatpush1.msra.mxu0 %v615
        %1459 = vmatprep.subr.mxu0 %v624
        %1460 = vmatpush1.msra.mxu0 %v623
        %1461 = vmatprep.subr.mxu0 %v632
        %1462 = vmatpush1.msra.mxu0 %v631
        %1463 = vmatprep.subr.mxu0 %v640
        %1464 = vmatpush1.msra.mxu0 %v639
        %1465 = vmatprep.mubr.f32.mxu0 %v378
        %1466 = vmatmul.mubr.f32.gmra.mrb[0].mxu0 %v377
        %v1467 = vpop.f32.mrb[0].mxu0
        %v1468 = vadd.f32 %v926, %v1467
        %v1469 = vpop.f32.mrb[0].mxu0
        %v1470 = vadd.f32 %v930, %v1469
        %1471 = vmatprep.mubr.f32.mxu0 %v382
        %1472 = vmatmul.mubr.f32.gmra.mrb[0].mxu0 %v381
        %v1473 = vpop.f32.mrb[0].mxu0
        %v1474 = vadd.f32 %v926, %v1473
        %v1475 = vpop.f32.mrb[0].mxu0
        %v1476 = vadd.f32 %v930, %v1475
        %1477 = vdwg.mxu0
        %1478 = vmatprep.subr.mxu0 %v648
        %1479 = vmatpush1.msra.mxu0 %v647
        %1480 = vmatprep.subr.mxu0 %v656
        %1481 = vmatpush1.msra.mxu0 %v655
        %1482 = vmatprep.subr.mxu0 %v664
        %1483 = vmatpush1.msra.mxu0 %v663
        %1484 = vmatprep.subr.mxu0 %v672
        %1485 = vmatpush1.msra.mxu0 %v671
        %1486 = vmatprep.subr.mxu0 %v680
        %1487 = vmatpush1.msra.mxu0 %v679
        %1488 = vmatprep.subr.mxu0 %v688
        %1489 = vmatpush1.msra.mxu0 %v687
        %1490 = vmatprep.subr.mxu0 %v696
        %1491 = vmatpush1.msra.mxu0 %v695
        %1492 = vmatprep.subr.mxu0 %v704
        %1493 = vmatpush1.msra.mxu0 %v703
        %1494 = vmatprep.subr.mxu0 %v712
        %1495 = vmatpush1.msra.mxu0 %v711
        %1496 = vmatprep.subr.mxu0 %v720
        %1497 = vmatpush1.msra.mxu0 %v719
        %1498 = vmatprep.subr.mxu0 %v728
        %1499 = vmatpush1.msra.mxu0 %v727
        %1500 = vmatprep.subr.mxu0 %v736
        %1501 = vmatpush1.msra.mxu0 %v735
        %1502 = vmatprep.subr.mxu0 %v744
        %1503 = vmatpush1.msra.mxu0 %v743
        %1504 = vmatprep.subr.mxu0 %v752
        %1505 = vmatpush1.msra.mxu0 %v751
        %1506 = vmatprep.subr.mxu0 %v760
        %1507 = vmatpush1.msra.mxu0 %v759
        %1508 = vmatprep.subr.mxu0 %v768
        %1509 = vmatpush1.msra.mxu0 %v767
        %1510 = vmatprep.subr.mxu0 %v776
        %1511 = vmatpush1.msra.mxu0 %v775
        %1512 = vmatprep.subr.mxu0 %v784
        %1513 = vmatpush1.msra.mxu0 %v783
        %1514 = vmatprep.subr.mxu0 %v792
        %1515 = vmatpush1.msra.mxu0 %v791
        %1516 = vmatprep.subr.mxu0 %v800
        %1517 = vmatpush1.msra.mxu0 %v799
        %1518 = vmatprep.subr.mxu0 %v808
        %1519 = vmatpush1.msra.mxu0 %v807
        %1520 = vmatprep.subr.mxu0 %v816
        %1521 = vmatpush1.msra.mxu0 %v815
        %1522 = vmatprep.subr.mxu0 %v824
        %1523 = vmatpush1.msra.mxu0 %v823
        %1524 = vmatprep.subr.mxu0 %v832
        %1525 = vmatpush1.msra.mxu0 %v831
        %1526 = vmatprep.subr.mxu0 %v840
        %1527 = vmatpush1.msra.mxu0 %v839
        %1528 = vmatprep.subr.mxu0 %v848
        %1529 = vmatpush1.msra.mxu0 %v847
        %1530 = vmatprep.subr.mxu0 %v856
        %1531 = vmatpush1.msra.mxu0 %v855
        %1532 = vmatprep.subr.mxu0 %v864
        %1533 = vmatpush1.msra.mxu0 %v863
        %1534 = vmatprep.subr.mxu0 %v872
        %1535 = vmatpush1.msra.mxu0 %v871
        %1536 = vmatprep.subr.mxu0 %v880
        %1537 = vmatpush1.msra.mxu0 %v879
        %1538 = vmatprep.subr.mxu0 %v888
        %1539 = vmatpush1.msra.mxu0 %v887
        %1540 = vmatprep.subr.mxu0 %v896
        %1541 = vmatpush1.msra.mxu0 %v895
        %1542 = vmatprep.mubr.f32.mxu0 %v380
        %1543 = vmatmul.mubr.f32.gmra.mrb[0].mxu0 %v379
        %v1544 = vpop.f32.mrb[0].mxu0
        %v1545 = vadd.f32 %v1468, %v1544
        %v1546 = vpop.f32.mrb[0].mxu0
        %v1547 = vadd.f32 %v1470, %v1546
        %1548 = vmatprep.mubr.f32.mxu0 %v384
        %1549 = vmatmul.mubr.f32.gmra.mrb[0].mxu0 %v383
        %v1550 = vpop.f32.mrb[0].mxu0
        %v1551 = vadd.f32 %v1474, %v1550
        %v1552 = vpop.f32.mrb[0].mxu0
        %v1553 = vadd.f32 %v1476, %v1552
        %1554 = vdwg.mxu0
        %v1555 = vmax.f32 %v1083, 0.0
        %v1556 = vmax.f32 %v1085, 0.0
        %v1557 = vmax.f32 %v1237, 0.0
        %v1558 = vmax.f32 %v1239, 0.0
        %v1559 = vmax.f32 %v1391, 0.0
        %v1560 = vmax.f32 %v1393, 0.0
        %v1561 = vmax.f32 %v1545, 0.0
        %v1562 = vmax.f32 %v1547, 0.0
        %v1563 = vmax.f32 %v1089, 0.0
        %v1564 = vmax.f32 %v1091, 0.0
        %v1565 = vmax.f32 %v1243, 0.0
        %v1566 = vmax.f32 %v1245, 0.0
        %v1567 = vmax.f32 %v1397, 0.0
        %v1568 = vmax.f32 %v1399, 0.0
        %v1569 = vmax.f32 %v1551, 0.0
        %v1570 = vmax.f32 %v1553, 0.0
        %v1571 = vld [vmem:[#allocation2] sm:$0xff]
        %v1572 = vld [vmem:[#allocation2 + $0x8] sm:$0xff]
        %v1573 = vld [vmem:[#allocation2 + $0x10] sm:$0xff]
        %v1574 = vld [vmem:[#allocation2 + $0x18] sm:$0xff]
        %v1575 = vld [vmem:[#allocation2 + $0x20] sm:$0xff]
        %v1576 = vld [vmem:[#allocation2 + $0x28] sm:$0xff]
        %v1577 = vld [vmem:[#allocation2 + $0x30] sm:$0xff]
        %v1578 = vld [vmem:[#allocation2 + $0x38] sm:$0xff]
        %v1579 = vld [vmem:[%s324] sm:$0xff]
        %v1580 = vld [vmem:[%s324 + $0x8] sm:$0xff]
        %v1581 = vld [vmem:[%s324 + $0x10] sm:$0xff]
        %v1582 = vld [vmem:[%s324 + $0x18] sm:$0xff]
        %v1583 = vld [vmem:[%s324 + $0x20] sm:$0xff]
        %v1584 = vld [vmem:[%s324 + $0x28] sm:$0xff]
        %v1585 = vld [vmem:[%s324 + $0x30] sm:$0xff]
        %v1586 = vld [vmem:[%s324 + $0x38] sm:$0xff]
        %v1587 = vld [vmem:[%s324 + $0x40] sm:$0xff]
        %v1588 = vld [vmem:[%s324 + $0x48] sm:$0xff]
        %v1589 = vld [vmem:[%s324 + $0x50] sm:$0xff]
        %v1590 = vld [vmem:[%s324 + $0x58] sm:$0xff]
        %v1591 = vld [vmem:[%s324 + $0x60] sm:$0xff]
        %v1592 = vld [vmem:[%s324 + $0x68] sm:$0xff]
        %v1593 = vld [vmem:[%s324 + $0x70] sm:$0xff]
        %v1594 = vld [vmem:[%s324 + $0x78] sm:$0xff]
        %v1595 = vld [vmem:[%s324 + $0x80] sm:$0xff]
        %v1596 = vld [vmem:[%s324 + $0x88] sm:$0xff]
        %v1597 = vld [vmem:[%s324 + $0x90] sm:$0xff]
        %v1598 = vld [vmem:[%s324 + $0x98] sm:$0xff]
        %v1599 = vld [vmem:[%s324 + $0xa0] sm:$0xff]
        %v1600 = vld [vmem:[%s324 + $0xa8] sm:$0xff]
        %v1601 = vld [vmem:[%s324 + $0xb0] sm:$0xff]
        %v1602 = vld [vmem:[%s324 + $0xb8] sm:$0xff]
        %v1603 = vld [vmem:[%s324 + $0xc0] sm:$0xff]
        %v1604 = vld [vmem:[%s324 + $0xc8] sm:$0xff]
        %v1605 = vld [vmem:[%s324 + $0xd0] sm:$0xff]
        %v1606 = vld [vmem:[%s324 + $0xd8] sm:$0xff]
        %v1607 = vld [vmem:[%s324 + $0xe0] sm:$0xff]
        %v1608 = vld [vmem:[%s324 + $0xe8] sm:$0xff]
        %v1609 = vld [vmem:[%s324 + $0xf0] sm:$0xff]
        %v1610 = vld [vmem:[%s324 + $0xf8] sm:$0xff]
        %v1611 = vld [vmem:[%s324 + $0x100] sm:$0xff]
        %v1612 = vld [vmem:[%s324 + $0x108] sm:$0xff]
        %v1613 = vld [vmem:[%s324 + $0x110] sm:$0xff]
        %v1614 = vld [vmem:[%s324 + $0x118] sm:$0xff]
        %v1615 = vld [vmem:[%s324 + $0x120] sm:$0xff]
        %v1616 = vld [vmem:[%s324 + $0x128] sm:$0xff]
        %v1617 = vld [vmem:[%s324 + $0x130] sm:$0xff]
        %v1618 = vld [vmem:[%s324 + $0x138] sm:$0xff]
        %v1619 = vld [vmem:[%s324 + $0x140] sm:$0xff]
        %v1620 = vld [vmem:[%s324 + $0x148] sm:$0xff]
        %v1621 = vld [vmem:[%s324 + $0x150] sm:$0xff]
        %v1622 = vld [vmem:[%s324 + $0x158] sm:$0xff]
        %v1623 = vld [vmem:[%s324 + $0x160] sm:$0xff]
        %v1624 = vld [vmem:[%s324 + $0x168] sm:$0xff]
        %v1625 = vld [vmem:[%s324 + $0x170] sm:$0xff]
        %v1626 = vld [vmem:[%s324 + $0x178] sm:$0xff]
        %v1627 = vld [vmem:[%s324 + $0x180] sm:$0xff]
        %v1628 = vld [vmem:[%s324 + $0x188] sm:$0xff]
        %v1629 = vld [vmem:[%s324 + $0x190] sm:$0xff]
        %v1630 = vld [vmem:[%s324 + $0x198] sm:$0xff]
        %v1631 = vld [vmem:[%s324 + $0x1a0] sm:$0xff]
        %v1632 = vld [vmem:[%s324 + $0x1a8] sm:$0xff]
        %v1633 = vld [vmem:[%s324 + $0x1b0] sm:$0xff]
        %v1634 = vld [vmem:[%s324 + $0x1b8] sm:$0xff]
        %v1635 = vld [vmem:[%s324 + $0x1c0] sm:$0xff]
        %v1636 = vld [vmem:[%s324 + $0x1c8] sm:$0xff]
        %v1637 = vld [vmem:[%s324 + $0x1d0] sm:$0xff]
        %v1638 = vld [vmem:[%s324 + $0x1d8] sm:$0xff]
        %v1639 = vld [vmem:[%s324 + $0x1e0] sm:$0xff]
        %v1640 = vld [vmem:[%s324 + $0x1e8] sm:$0xff]
        %v1641 = vld [vmem:[%s324 + $0x1f0] sm:$0xff]
        %v1642 = vld [vmem:[%s324 + $0x1f8] sm:$0xff]
        %v1643 = vld [vmem:[%s324 + $0x200] sm:$0xff]
        %v1644 = vld [vmem:[%s324 + $0x208] sm:$0xff]
        %v1645 = vld [vmem:[%s324 + $0x210] sm:$0xff]
        %v1646 = vld [vmem:[%s324 + $0x218] sm:$0xff]
        %v1647 = vld [vmem:[%s324 + $0x220] sm:$0xff]
        %v1648 = vld [vmem:[%s324 + $0x228] sm:$0xff]
        %v1649 = vld [vmem:[%s324 + $0x230] sm:$0xff]
        %v1650 = vld [vmem:[%s324 + $0x238] sm:$0xff]
        %v1651 = vld [vmem:[%s324 + $0x240] sm:$0xff]
        %v1652 = vld [vmem:[%s324 + $0x248] sm:$0xff]
        %v1653 = vld [vmem:[%s324 + $0x250] sm:$0xff]
        %v1654 = vld [vmem:[%s324 + $0x258] sm:$0xff]
        %v1655 = vld [vmem:[%s324 + $0x260] sm:$0xff]
        %v1656 = vld [vmem:[%s324 + $0x268] sm:$0xff]
        %v1657 = vld [vmem:[%s324 + $0x270] sm:$0xff]
        %v1658 = vld [vmem:[%s324 + $0x278] sm:$0xff]
        %v1659 = vld [vmem:[%s324 + $0x280] sm:$0xff]
        %v1660 = vld [vmem:[%s324 + $0x288] sm:$0xff]
        %v1661 = vld [vmem:[%s324 + $0x290] sm:$0xff]
        %v1662 = vld [vmem:[%s324 + $0x298] sm:$0xff]
        %v1663 = vld [vmem:[%s324 + $0x2a0] sm:$0xff]
        %v1664 = vld [vmem:[%s324 + $0x2a8] sm:$0xff]
        %v1665 = vld [vmem:[%s324 + $0x2b0] sm:$0xff]
        %v1666 = vld [vmem:[%s324 + $0x2b8] sm:$0xff]
        %v1667 = vld [vmem:[%s324 + $0x2c0] sm:$0xff]
        %v1668 = vld [vmem:[%s324 + $0x2c8] sm:$0xff]
        %v1669 = vld [vmem:[%s324 + $0x2d0] sm:$0xff]
        %v1670 = vld [vmem:[%s324 + $0x2d8] sm:$0xff]
        %v1671 = vld [vmem:[%s324 + $0x2e0] sm:$0xff]
        %v1672 = vld [vmem:[%s324 + $0x2e8] sm:$0xff]
        %v1673 = vld [vmem:[%s324 + $0x2f0] sm:$0xff]
        %v1674 = vld [vmem:[%s324 + $0x2f8] sm:$0xff]
        %v1675 = vld [vmem:[%s324 + $0x300] sm:$0xff]
        %v1676 = vld [vmem:[%s324 + $0x308] sm:$0xff]
        %v1677 = vld [vmem:[%s324 + $0x310] sm:$0xff]
        %v1678 = vld [vmem:[%s324 + $0x318] sm:$0xff]
        %v1679 = vld [vmem:[%s324 + $0x320] sm:$0xff]
        %v1680 = vld [vmem:[%s324 + $0x328] sm:$0xff]
        %v1681 = vld [vmem:[%s324 + $0x330] sm:$0xff]
        %v1682 = vld [vmem:[%s324 + $0x338] sm:$0xff]
        %v1683 = vld [vmem:[%s324 + $0x340] sm:$0xff]
        %v1684 = vld [vmem:[%s324 + $0x348] sm:$0xff]
        %v1685 = vld [vmem:[%s324 + $0x350] sm:$0xff]
        %v1686 = vld [vmem:[%s324 + $0x358] sm:$0xff]
        %v1687 = vld [vmem:[%s324 + $0x360] sm:$0xff]
        %v1688 = vld [vmem:[%s324 + $0x368] sm:$0xff]
        %v1689 = vld [vmem:[%s324 + $0x370] sm:$0xff]
        %v1690 = vld [vmem:[%s324 + $0x378] sm:$0xff]
        %v1691 = vld [vmem:[%s324 + $0x380] sm:$0xff]
        %v1692 = vld [vmem:[%s324 + $0x388] sm:$0xff]
        %v1693 = vld [vmem:[%s324 + $0x390] sm:$0xff]
        %v1694 = vld [vmem:[%s324 + $0x398] sm:$0xff]
        %v1695 = vld [vmem:[%s324 + $0x3a0] sm:$0xff]
        %v1696 = vld [vmem:[%s324 + $0x3a8] sm:$0xff]
        %v1697 = vld [vmem:[%s324 + $0x3b0] sm:$0xff]
        %v1698 = vld [vmem:[%s324 + $0x3b8] sm:$0xff]
        %v1699 = vld [vmem:[%s324 + $0x3c0] sm:$0xff]
        %v1700 = vld [vmem:[%s324 + $0x3c8] sm:$0xff]
        %v1701 = vld [vmem:[%s324 + $0x3d0] sm:$0xff]
        %v1702 = vld [vmem:[%s324 + $0x3d8] sm:$0xff]
        %v1703 = vld [vmem:[%s324 + $0x3e0] sm:$0xff]
        %v1704 = vld [vmem:[%s324 + $0x3e8] sm:$0xff]
        %v1705 = vld [vmem:[%s324 + $0x3f0] sm:$0xff]
        %v1706 = vld [vmem:[%s324 + $0x3f8] sm:$0xff]
        %v1707 = vld [vmem:[%s324 + $0x400] sm:$0xff]
        %v1708 = vld [vmem:[%s324 + $0x408] sm:$0xff]
        %v1709 = vld [vmem:[%s324 + $0x410] sm:$0xff]
        %v1710 = vld [vmem:[%s324 + $0x418] sm:$0xff]
        %v1711 = vld [vmem:[%s324 + $0x420] sm:$0xff]
        %v1712 = vld [vmem:[%s324 + $0x428] sm:$0xff]
        %v1713 = vld [vmem:[%s324 + $0x430] sm:$0xff]
        %v1714 = vld [vmem:[%s324 + $0x438] sm:$0xff]
        %v1715 = vld [vmem:[%s324 + $0x440] sm:$0xff]
        %v1716 = vld [vmem:[%s324 + $0x448] sm:$0xff]
        %v1717 = vld [vmem:[%s324 + $0x450] sm:$0xff]
        %v1718 = vld [vmem:[%s324 + $0x458] sm:$0xff]
        %v1719 = vld [vmem:[%s324 + $0x460] sm:$0xff]
        %v1720 = vld [vmem:[%s324 + $0x468] sm:$0xff]
        %v1721 = vld [vmem:[%s324 + $0x470] sm:$0xff]
        %v1722 = vld [vmem:[%s324 + $0x478] sm:$0xff]
        %v1723 = vld [vmem:[%s324 + $0x480] sm:$0xff]
        %v1724 = vld [vmem:[%s324 + $0x488] sm:$0xff]
        %v1725 = vld [vmem:[%s324 + $0x490] sm:$0xff]
        %v1726 = vld [vmem:[%s324 + $0x498] sm:$0xff]
        %v1727 = vld [vmem:[%s324 + $0x4a0] sm:$0xff]
        %v1728 = vld [vmem:[%s324 + $0x4a8] sm:$0xff]
        %v1729 = vld [vmem:[%s324 + $0x4b0] sm:$0xff]
        %v1730 = vld [vmem:[%s324 + $0x4b8] sm:$0xff]
        %v1731 = vld [vmem:[%s324 + $0x4c0] sm:$0xff]
        %v1732 = vld [vmem:[%s324 + $0x4c8] sm:$0xff]
        %v1733 = vld [vmem:[%s324 + $0x4d0] sm:$0xff]
        %v1734 = vld [vmem:[%s324 + $0x4d8] sm:$0xff]
        %v1735 = vld [vmem:[%s324 + $0x4e0] sm:$0xff]
        %v1736 = vld [vmem:[%s324 + $0x4e8] sm:$0xff]
        %v1737 = vld [vmem:[%s324 + $0x4f0] sm:$0xff]
        %v1738 = vld [vmem:[%s324 + $0x4f8] sm:$0xff]
        %v1739 = vld [vmem:[%s324 + $0x500] sm:$0xff]
        %v1740 = vld [vmem:[%s324 + $0x508] sm:$0xff]
        %v1741 = vld [vmem:[%s324 + $0x510] sm:$0xff]
        %v1742 = vld [vmem:[%s324 + $0x518] sm:$0xff]
        %v1743 = vld [vmem:[%s324 + $0x520] sm:$0xff]
        %v1744 = vld [vmem:[%s324 + $0x528] sm:$0xff]
        %v1745 = vld [vmem:[%s324 + $0x530] sm:$0xff]
        %v1746 = vld [vmem:[%s324 + $0x538] sm:$0xff]
        %v1747 = vld [vmem:[%s324 + $0x540] sm:$0xff]
        %v1748 = vld [vmem:[%s324 + $0x548] sm:$0xff]
        %v1749 = vld [vmem:[%s324 + $0x550] sm:$0xff]
        %v1750 = vld [vmem:[%s324 + $0x558] sm:$0xff]
        %v1751 = vld [vmem:[%s324 + $0x560] sm:$0xff]
        %v1752 = vld [vmem:[%s324 + $0x568] sm:$0xff]
        %v1753 = vld [vmem:[%s324 + $0x570] sm:$0xff]
        %v1754 = vld [vmem:[%s324 + $0x578] sm:$0xff]
        %v1755 = vld [vmem:[%s324 + $0x580] sm:$0xff]
        %v1756 = vld [vmem:[%s324 + $0x588] sm:$0xff]
        %v1757 = vld [vmem:[%s324 + $0x590] sm:$0xff]
        %v1758 = vld [vmem:[%s324 + $0x598] sm:$0xff]
        %v1759 = vld [vmem:[%s324 + $0x5a0] sm:$0xff]
        %v1760 = vld [vmem:[%s324 + $0x5a8] sm:$0xff]
        %v1761 = vld [vmem:[%s324 + $0x5b0] sm:$0xff]
        %v1762 = vld [vmem:[%s324 + $0x5b8] sm:$0xff]
        %v1763 = vld [vmem:[%s324 + $0x5c0] sm:$0xff]
        %v1764 = vld [vmem:[%s324 + $0x5c8] sm:$0xff]
        %v1765 = vld [vmem:[%s324 + $0x5d0] sm:$0xff]
        %v1766 = vld [vmem:[%s324 + $0x5d8] sm:$0xff]
        %v1767 = vld [vmem:[%s324 + $0x5e0] sm:$0xff]
        %v1768 = vld [vmem:[%s324 + $0x5e8] sm:$0xff]
        %v1769 = vld [vmem:[%s324 + $0x5f0] sm:$0xff]
        %v1770 = vld [vmem:[%s324 + $0x5f8] sm:$0xff]
        %v1771 = vld [vmem:[%s324 + $0x600] sm:$0xff]
        %v1772 = vld [vmem:[%s324 + $0x608] sm:$0xff]
        %v1773 = vld [vmem:[%s324 + $0x610] sm:$0xff]
        %v1774 = vld [vmem:[%s324 + $0x618] sm:$0xff]
        %v1775 = vld [vmem:[%s324 + $0x620] sm:$0xff]
        %v1776 = vld [vmem:[%s324 + $0x628] sm:$0xff]
        %v1777 = vld [vmem:[%s324 + $0x630] sm:$0xff]
        %v1778 = vld [vmem:[%s324 + $0x638] sm:$0xff]
        %v1779 = vld [vmem:[%s324 + $0x640] sm:$0xff]
        %v1780 = vld [vmem:[%s324 + $0x648] sm:$0xff]
        %v1781 = vld [vmem:[%s324 + $0x650] sm:$0xff]
        %v1782 = vld [vmem:[%s324 + $0x658] sm:$0xff]
        %v1783 = vld [vmem:[%s324 + $0x660] sm:$0xff]
        %v1784 = vld [vmem:[%s324 + $0x668] sm:$0xff]
        %v1785 = vld [vmem:[%s324 + $0x670] sm:$0xff]
        %v1786 = vld [vmem:[%s324 + $0x678] sm:$0xff]
        %v1787 = vld [vmem:[%s324 + $0x680] sm:$0xff]
        %v1788 = vld [vmem:[%s324 + $0x688] sm:$0xff]
        %v1789 = vld [vmem:[%s324 + $0x690] sm:$0xff]
        %v1790 = vld [vmem:[%s324 + $0x698] sm:$0xff]
        %v1791 = vld [vmem:[%s324 + $0x6a0] sm:$0xff]
        %v1792 = vld [vmem:[%s324 + $0x6a8] sm:$0xff]
        %v1793 = vld [vmem:[%s324 + $0x6b0] sm:$0xff]
        %v1794 = vld [vmem:[%s324 + $0x6b8] sm:$0xff]
        %v1795 = vld [vmem:[%s324 + $0x6c0] sm:$0xff]
        %v1796 = vld [vmem:[%s324 + $0x6c8] sm:$0xff]
        %v1797 = vld [vmem:[%s324 + $0x6d0] sm:$0xff]
        %v1798 = vld [vmem:[%s324 + $0x6d8] sm:$0xff]
        %v1799 = vld [vmem:[%s324 + $0x6e0] sm:$0xff]
        %v1800 = vld [vmem:[%s324 + $0x6e8] sm:$0xff]
        %v1801 = vld [vmem:[%s324 + $0x6f0] sm:$0xff]
        %v1802 = vld [vmem:[%s324 + $0x6f8] sm:$0xff]
        %v1803 = vld [vmem:[%s324 + $0x700] sm:$0xff]
        %v1804 = vld [vmem:[%s324 + $0x708] sm:$0xff]
        %v1805 = vld [vmem:[%s324 + $0x710] sm:$0xff]
        %v1806 = vld [vmem:[%s324 + $0x718] sm:$0xff]
        %v1807 = vld [vmem:[%s324 + $0x720] sm:$0xff]
        %v1808 = vld [vmem:[%s324 + $0x728] sm:$0xff]
        %v1809 = vld [vmem:[%s324 + $0x730] sm:$0xff]
        %v1810 = vld [vmem:[%s324 + $0x738] sm:$0xff]
        %v1811 = vld [vmem:[%s324 + $0x740] sm:$0xff]
        %v1812 = vld [vmem:[%s324 + $0x748] sm:$0xff]
        %v1813 = vld [vmem:[%s324 + $0x750] sm:$0xff]
        %v1814 = vld [vmem:[%s324 + $0x758] sm:$0xff]
        %v1815 = vld [vmem:[%s324 + $0x760] sm:$0xff]
        %v1816 = vld [vmem:[%s324 + $0x768] sm:$0xff]
        %v1817 = vld [vmem:[%s324 + $0x770] sm:$0xff]
        %v1818 = vld [vmem:[%s324 + $0x778] sm:$0xff]
        %v1819 = vld [vmem:[%s324 + $0x780] sm:$0xff]
        %v1820 = vld [vmem:[%s324 + $0x788] sm:$0xff]
        %v1821 = vld [vmem:[%s324 + $0x790] sm:$0xff]
        %v1822 = vld [vmem:[%s324 + $0x798] sm:$0xff]
        %v1823 = vld [vmem:[%s324 + $0x7a0] sm:$0xff]
        %v1824 = vld [vmem:[%s324 + $0x7a8] sm:$0xff]
        %v1825 = vld [vmem:[%s324 + $0x7b0] sm:$0xff]
        %v1826 = vld [vmem:[%s324 + $0x7b8] sm:$0xff]
        %v1827 = vld [vmem:[%s324 + $0x7c0] sm:$0xff]
        %v1828 = vld [vmem:[%s324 + $0x7c8] sm:$0xff]
        %v1829 = vld [vmem:[%s324 + $0x7d0] sm:$0xff]
        %v1830 = vld [vmem:[%s324 + $0x7d8] sm:$0xff]
        %v1831 = vld [vmem:[%s324 + $0x7e0] sm:$0xff]
        %v1832 = vld [vmem:[%s324 + $0x7e8] sm:$0xff]
        %v1833 = vld [vmem:[%s324 + $0x7f0] sm:$0xff]
        %v1834 = vld [vmem:[%s324 + $0x7f8] sm:$0xff]
        %v1835 = vld [vmem:[%s324 + $0x800] sm:$0xff]
        %v1836 = vld [vmem:[%s324 + $0x808] sm:$0xff]
        %v1837 = vld [vmem:[%s324 + $0x810] sm:$0xff]
        %v1838 = vld [vmem:[%s324 + $0x818] sm:$0xff]
        %v1839 = vld [vmem:[%s324 + $0x820] sm:$0xff]
        %v1840 = vld [vmem:[%s324 + $0x828] sm:$0xff]
        %v1841 = vld [vmem:[%s324 + $0x830] sm:$0xff]
        %v1842 = vld [vmem:[%s324 + $0x838] sm:$0xff]
        %v1843 = vld [vmem:[%s324 + $0x840] sm:$0xff]
        %v1844 = vld [vmem:[%s324 + $0x848] sm:$0xff]
        %v1845 = vld [vmem:[%s324 + $0x850] sm:$0xff]
        %v1846 = vld [vmem:[%s324 + $0x858] sm:$0xff]
        %v1847 = vld [vmem:[%s324 + $0x860] sm:$0xff]
        %v1848 = vld [vmem:[%s324 + $0x868] sm:$0xff]
        %v1849 = vld [vmem:[%s324 + $0x870] sm:$0xff]
        %v1850 = vld [vmem:[%s324 + $0x878] sm:$0xff]
        %v1851 = vld [vmem:[%s324 + $0x880] sm:$0xff]
        %v1852 = vld [vmem:[%s324 + $0x888] sm:$0xff]
        %v1853 = vld [vmem:[%s324 + $0x890] sm:$0xff]
        %v1854 = vld [vmem:[%s324 + $0x898] sm:$0xff]
        %v1855 = vld [vmem:[%s324 + $0x8a0] sm:$0xff]
        %v1856 = vld [vmem:[%s324 + $0x8a8] sm:$0xff]
        %v1857 = vld [vmem:[%s324 + $0x8b0] sm:$0xff]
        %v1858 = vld [vmem:[%s324 + $0x8b8] sm:$0xff]
        %v1859 = vld [vmem:[%s324 + $0x8c0] sm:$0xff]
        %v1860 = vld [vmem:[%s324 + $0x8c8] sm:$0xff]
        %v1861 = vld [vmem:[%s324 + $0x8d0] sm:$0xff]
        %v1862 = vld [vmem:[%s324 + $0x8d8] sm:$0xff]
        %v1863 = vld [vmem:[%s324 + $0x8e0] sm:$0xff]
        %v1864 = vld [vmem:[%s324 + $0x8e8] sm:$0xff]
        %v1865 = vld [vmem:[%s324 + $0x8f0] sm:$0xff]
        %v1866 = vld [vmem:[%s324 + $0x8f8] sm:$0xff]
        %v1867 = vld [vmem:[%s324 + $0x900] sm:$0xff]
        %v1868 = vld [vmem:[%s324 + $0x908] sm:$0xff]
        %v1869 = vld [vmem:[%s324 + $0x910] sm:$0xff]
        %v1870 = vld [vmem:[%s324 + $0x918] sm:$0xff]
        %v1871 = vld [vmem:[%s324 + $0x920] sm:$0xff]
        %v1872 = vld [vmem:[%s324 + $0x928] sm:$0xff]
        %v1873 = vld [vmem:[%s324 + $0x930] sm:$0xff]
        %v1874 = vld [vmem:[%s324 + $0x938] sm:$0xff]
        %v1875 = vld [vmem:[%s324 + $0x940] sm:$0xff]
        %v1876 = vld [vmem:[%s324 + $0x948] sm:$0xff]
        %v1877 = vld [vmem:[%s324 + $0x950] sm:$0xff]
        %v1878 = vld [vmem:[%s324 + $0x958] sm:$0xff]
        %v1879 = vld [vmem:[%s324 + $0x960] sm:$0xff]
        %v1880 = vld [vmem:[%s324 + $0x968] sm:$0xff]
        %v1881 = vld [vmem:[%s324 + $0x970] sm:$0xff]
        %v1882 = vld [vmem:[%s324 + $0x978] sm:$0xff]
        %v1883 = vld [vmem:[%s324 + $0x980] sm:$0xff]
        %v1884 = vld [vmem:[%s324 + $0x988] sm:$0xff]
        %v1885 = vld [vmem:[%s324 + $0x990] sm:$0xff]
        %v1886 = vld [vmem:[%s324 + $0x998] sm:$0xff]
        %v1887 = vld [vmem:[%s324 + $0x9a0] sm:$0xff]
        %v1888 = vld [vmem:[%s324 + $0x9a8] sm:$0xff]
        %v1889 = vld [vmem:[%s324 + $0x9b0] sm:$0xff]
        %v1890 = vld [vmem:[%s324 + $0x9b8] sm:$0xff]
        %v1891 = vld [vmem:[%s324 + $0x9c0] sm:$0xff]
        %v1892 = vld [vmem:[%s324 + $0x9c8] sm:$0xff]
        %v1893 = vld [vmem:[%s324 + $0x9d0] sm:$0xff]
        %v1894 = vld [vmem:[%s324 + $0x9d8] sm:$0xff]
        %v1895 = vld [vmem:[%s324 + $0x9e0] sm:$0xff]
        %v1896 = vld [vmem:[%s324 + $0x9e8] sm:$0xff]
        %v1897 = vld [vmem:[%s324 + $0x9f0] sm:$0xff]
        %v1898 = vld [vmem:[%s324 + $0x9f8] sm:$0xff]
        %v1899 = vld [vmem:[%s324 + $0xa00] sm:$0xff]
        %v1900 = vld [vmem:[%s324 + $0xa08] sm:$0xff]
        %v1901 = vld [vmem:[%s324 + $0xa10] sm:$0xff]
        %v1902 = vld [vmem:[%s324 + $0xa18] sm:$0xff]
        %v1903 = vld [vmem:[%s324 + $0xa20] sm:$0xff]
        %v1904 = vld [vmem:[%s324 + $0xa28] sm:$0xff]
        %v1905 = vld [vmem:[%s324 + $0xa30] sm:$0xff]
        %v1906 = vld [vmem:[%s324 + $0xa38] sm:$0xff]
        %v1907 = vld [vmem:[%s324 + $0xa40] sm:$0xff]
        %v1908 = vld [vmem:[%s324 + $0xa48] sm:$0xff]
        %v1909 = vld [vmem:[%s324 + $0xa50] sm:$0xff]
        %v1910 = vld [vmem:[%s324 + $0xa58] sm:$0xff]
        %v1911 = vld [vmem:[%s324 + $0xa60] sm:$0xff]
        %v1912 = vld [vmem:[%s324 + $0xa68] sm:$0xff]
        %v1913 = vld [vmem:[%s324 + $0xa70] sm:$0xff]
        %v1914 = vld [vmem:[%s324 + $0xa78] sm:$0xff]
        %v1915 = vld [vmem:[%s324 + $0xa80] sm:$0xff]
        %v1916 = vld [vmem:[%s324 + $0xa88] sm:$0xff]
        %v1917 = vld [vmem:[%s324 + $0xa90] sm:$0xff]
        %v1918 = vld [vmem:[%s324 + $0xa98] sm:$0xff]
        %v1919 = vld [vmem:[%s324 + $0xaa0] sm:$0xff]
        %v1920 = vld [vmem:[%s324 + $0xaa8] sm:$0xff]
        %v1921 = vld [vmem:[%s324 + $0xab0] sm:$0xff]
        %v1922 = vld [vmem:[%s324 + $0xab8] sm:$0xff]
        %v1923 = vld [vmem:[%s324 + $0xac0] sm:$0xff]
        %v1924 = vld [vmem:[%s324 + $0xac8] sm:$0xff]
        %v1925 = vld [vmem:[%s324 + $0xad0] sm:$0xff]
        %v1926 = vld [vmem:[%s324 + $0xad8] sm:$0xff]
        %v1927 = vld [vmem:[%s324 + $0xae0] sm:$0xff]
        %v1928 = vld [vmem:[%s324 + $0xae8] sm:$0xff]
        %v1929 = vld [vmem:[%s324 + $0xaf0] sm:$0xff]
        %v1930 = vld [vmem:[%s324 + $0xaf8] sm:$0xff]
        %v1931 = vld [vmem:[%s324 + $0xb00] sm:$0xff]
        %v1932 = vld [vmem:[%s324 + $0xb08] sm:$0xff]
        %v1933 = vld [vmem:[%s324 + $0xb10] sm:$0xff]
        %v1934 = vld [vmem:[%s324 + $0xb18] sm:$0xff]
        %v1935 = vld [vmem:[%s324 + $0xb20] sm:$0xff]
        %v1936 = vld [vmem:[%s324 + $0xb28] sm:$0xff]
        %v1937 = vld [vmem:[%s324 + $0xb30] sm:$0xff]
        %v1938 = vld [vmem:[%s324 + $0xb38] sm:$0xff]
        %v1939 = vld [vmem:[%s324 + $0xb40] sm:$0xff]
        %v1940 = vld [vmem:[%s324 + $0xb48] sm:$0xff]
        %v1941 = vld [vmem:[%s324 + $0xb50] sm:$0xff]
        %v1942 = vld [vmem:[%s324 + $0xb58] sm:$0xff]
        %v1943 = vld [vmem:[%s324 + $0xb60] sm:$0xff]
        %v1944 = vld [vmem:[%s324 + $0xb68] sm:$0xff]
        %v1945 = vld [vmem:[%s324 + $0xb70] sm:$0xff]
        %v1946 = vld [vmem:[%s324 + $0xb78] sm:$0xff]
        %v1947 = vld [vmem:[%s324 + $0xb80] sm:$0xff]
        %v1948 = vld [vmem:[%s324 + $0xb88] sm:$0xff]
        %v1949 = vld [vmem:[%s324 + $0xb90] sm:$0xff]
        %v1950 = vld [vmem:[%s324 + $0xb98] sm:$0xff]
        %v1951 = vld [vmem:[%s324 + $0xba0] sm:$0xff]
        %v1952 = vld [vmem:[%s324 + $0xba8] sm:$0xff]
        %v1953 = vld [vmem:[%s324 + $0xbb0] sm:$0xff]
        %v1954 = vld [vmem:[%s324 + $0xbb8] sm:$0xff]
        %v1955 = vld [vmem:[%s324 + $0xbc0] sm:$0xff]
        %v1956 = vld [vmem:[%s324 + $0xbc8] sm:$0xff]
        %v1957 = vld [vmem:[%s324 + $0xbd0] sm:$0xff]
        %v1958 = vld [vmem:[%s324 + $0xbd8] sm:$0xff]
        %v1959 = vld [vmem:[%s324 + $0xbe0] sm:$0xff]
        %v1960 = vld [vmem:[%s324 + $0xbe8] sm:$0xff]
        %v1961 = vld [vmem:[%s324 + $0xbf0] sm:$0xff]
        %v1962 = vld [vmem:[%s324 + $0xbf8] sm:$0xff]
        %v1963 = vld [vmem:[%s324 + $0xc00] sm:$0xff]
        %v1964 = vld [vmem:[%s324 + $0xc08] sm:$0xff]
        %v1965 = vld [vmem:[%s324 + $0xc10] sm:$0xff]
        %v1966 = vld [vmem:[%s324 + $0xc18] sm:$0xff]
        %v1967 = vld [vmem:[%s324 + $0xc20] sm:$0xff]
        %v1968 = vld [vmem:[%s324 + $0xc28] sm:$0xff]
        %v1969 = vld [vmem:[%s324 + $0xc30] sm:$0xff]
        %v1970 = vld [vmem:[%s324 + $0xc38] sm:$0xff]
        %v1971 = vld [vmem:[%s324 + $0xc40] sm:$0xff]
        %v1972 = vld [vmem:[%s324 + $0xc48] sm:$0xff]
        %v1973 = vld [vmem:[%s324 + $0xc50] sm:$0xff]
        %v1974 = vld [vmem:[%s324 + $0xc58] sm:$0xff]
        %v1975 = vld [vmem:[%s324 + $0xc60] sm:$0xff]
        %v1976 = vld [vmem:[%s324 + $0xc68] sm:$0xff]
        %v1977 = vld [vmem:[%s324 + $0xc70] sm:$0xff]
        %v1978 = vld [vmem:[%s324 + $0xc78] sm:$0xff]
        %v1979 = vld [vmem:[%s324 + $0xc80] sm:$0xff]
        %v1980 = vld [vmem:[%s324 + $0xc88] sm:$0xff]
        %v1981 = vld [vmem:[%s324 + $0xc90] sm:$0xff]
        %v1982 = vld [vmem:[%s324 + $0xc98] sm:$0xff]
        %v1983 = vld [vmem:[%s324 + $0xca0] sm:$0xff]
        %v1984 = vld [vmem:[%s324 + $0xca8] sm:$0xff]
        %v1985 = vld [vmem:[%s324 + $0xcb0] sm:$0xff]
        %v1986 = vld [vmem:[%s324 + $0xcb8] sm:$0xff]
        %v1987 = vld [vmem:[%s324 + $0xcc0] sm:$0xff]
        %v1988 = vld [vmem:[%s324 + $0xcc8] sm:$0xff]
        %v1989 = vld [vmem:[%s324 + $0xcd0] sm:$0xff]
        %v1990 = vld [vmem:[%s324 + $0xcd8] sm:$0xff]
        %v1991 = vld [vmem:[%s324 + $0xce0] sm:$0xff]
        %v1992 = vld [vmem:[%s324 + $0xce8] sm:$0xff]
        %v1993 = vld [vmem:[%s324 + $0xcf0] sm:$0xff]
        %v1994 = vld [vmem:[%s324 + $0xcf8] sm:$0xff]
        %v1995 = vld [vmem:[%s324 + $0xd00] sm:$0xff]
        %v1996 = vld [vmem:[%s324 + $0xd08] sm:$0xff]
        %v1997 = vld [vmem:[%s324 + $0xd10] sm:$0xff]
        %v1998 = vld [vmem:[%s324 + $0xd18] sm:$0xff]
        %v1999 = vld [vmem:[%s324 + $0xd20] sm:$0xff]
        %v2000 = vld [vmem:[%s324 + $0xd28] sm:$0xff]
        %v2001 = vld [vmem:[%s324 + $0xd30] sm:$0xff]
        %v2002 = vld [vmem:[%s324 + $0xd38] sm:$0xff]
        %v2003 = vld [vmem:[%s324 + $0xd40] sm:$0xff]
        %v2004 = vld [vmem:[%s324 + $0xd48] sm:$0xff]
        %v2005 = vld [vmem:[%s324 + $0xd50] sm:$0xff]
        %v2006 = vld [vmem:[%s324 + $0xd58] sm:$0xff]
        %v2007 = vld [vmem:[%s324 + $0xd60] sm:$0xff]
        %v2008 = vld [vmem:[%s324 + $0xd68] sm:$0xff]
        %v2009 = vld [vmem:[%s324 + $0xd70] sm:$0xff]
        %v2010 = vld [vmem:[%s324 + $0xd78] sm:$0xff]
        %v2011 = vld [vmem:[%s324 + $0xd80] sm:$0xff]
        %v2012 = vld [vmem:[%s324 + $0xd88] sm:$0xff]
        %v2013 = vld [vmem:[%s324 + $0xd90] sm:$0xff]
        %v2014 = vld [vmem:[%s324 + $0xd98] sm:$0xff]
        %v2015 = vld [vmem:[%s324 + $0xda0] sm:$0xff]
        %v2016 = vld [vmem:[%s324 + $0xda8] sm:$0xff]
        %v2017 = vld [vmem:[%s324 + $0xdb0] sm:$0xff]
        %v2018 = vld [vmem:[%s324 + $0xdb8] sm:$0xff]
        %v2019 = vld [vmem:[%s324 + $0xdc0] sm:$0xff]
        %v2020 = vld [vmem:[%s324 + $0xdc8] sm:$0xff]
        %v2021 = vld [vmem:[%s324 + $0xdd0] sm:$0xff]
        %v2022 = vld [vmem:[%s324 + $0xdd8] sm:$0xff]
        %v2023 = vld [vmem:[%s324 + $0xde0] sm:$0xff]
        %v2024 = vld [vmem:[%s324 + $0xde8] sm:$0xff]
        %v2025 = vld [vmem:[%s324 + $0xdf0] sm:$0xff]
        %v2026 = vld [vmem:[%s324 + $0xdf8] sm:$0xff]
        %v2027 = vld [vmem:[%s324 + $0xe00] sm:$0xff]
        %v2028 = vld [vmem:[%s324 + $0xe08] sm:$0xff]
        %v2029 = vld [vmem:[%s324 + $0xe10] sm:$0xff]
        %v2030 = vld [vmem:[%s324 + $0xe18] sm:$0xff]
        %v2031 = vld [vmem:[%s324 + $0xe20] sm:$0xff]
        %v2032 = vld [vmem:[%s324 + $0xe28] sm:$0xff]
        %v2033 = vld [vmem:[%s324 + $0xe30] sm:$0xff]
        %v2034 = vld [vmem:[%s324 + $0xe38] sm:$0xff]
        %v2035 = vld [vmem:[%s324 + $0xe40] sm:$0xff]
        %v2036 = vld [vmem:[%s324 + $0xe48] sm:$0xff]
        %v2037 = vld [vmem:[%s324 + $0xe50] sm:$0xff]
        %v2038 = vld [vmem:[%s324 + $0xe58] sm:$0xff]
        %v2039 = vld [vmem:[%s324 + $0xe60] sm:$0xff]
        %v2040 = vld [vmem:[%s324 + $0xe68] sm:$0xff]
        %v2041 = vld [vmem:[%s324 + $0xe70] sm:$0xff]
        %v2042 = vld [vmem:[%s324 + $0xe78] sm:$0xff]
        %v2043 = vld [vmem:[%s324 + $0xe80] sm:$0xff]
        %v2044 = vld [vmem:[%s324 + $0xe88] sm:$0xff]
        %v2045 = vld [vmem:[%s324 + $0xe90] sm:$0xff]
        %v2046 = vld [vmem:[%s324 + $0xe98] sm:$0xff]
        %v2047 = vld [vmem:[%s324 + $0xea0] sm:$0xff]
        %v2048 = vld [vmem:[%s324 + $0xea8] sm:$0xff]
        %v2049 = vld [vmem:[%s324 + $0xeb0] sm:$0xff]
        %v2050 = vld [vmem:[%s324 + $0xeb8] sm:$0xff]
        %v2051 = vld [vmem:[%s324 + $0xec0] sm:$0xff]
        %v2052 = vld [vmem:[%s324 + $0xec8] sm:$0xff]
        %v2053 = vld [vmem:[%s324 + $0xed0] sm:$0xff]
        %v2054 = vld [vmem:[%s324 + $0xed8] sm:$0xff]
        %v2055 = vld [vmem:[%s324 + $0xee0] sm:$0xff]
        %v2056 = vld [vmem:[%s324 + $0xee8] sm:$0xff]
        %v2057 = vld [vmem:[%s324 + $0xef0] sm:$0xff]
        %v2058 = vld [vmem:[%s324 + $0xef8] sm:$0xff]
        %v2059 = vld [vmem:[%s324 + $0xf00] sm:$0xff]
        %v2060 = vld [vmem:[%s324 + $0xf08] sm:$0xff]
        %v2061 = vld [vmem:[%s324 + $0xf10] sm:$0xff]
        %v2062 = vld [vmem:[%s324 + $0xf18] sm:$0xff]
        %v2063 = vld [vmem:[%s324 + $0xf20] sm:$0xff]
        %v2064 = vld [vmem:[%s324 + $0xf28] sm:$0xff]
        %v2065 = vld [vmem:[%s324 + $0xf30] sm:$0xff]
        %v2066 = vld [vmem:[%s324 + $0xf38] sm:$0xff]
        %v2067 = vld [vmem:[%s324 + $0xf40] sm:$0xff]
        %v2068 = vld [vmem:[%s324 + $0xf48] sm:$0xff]
        %v2069 = vld [vmem:[%s324 + $0xf50] sm:$0xff]
        %v2070 = vld [vmem:[%s324 + $0xf58] sm:$0xff]
        %v2071 = vld [vmem:[%s324 + $0xf60] sm:$0xff]
        %v2072 = vld [vmem:[%s324 + $0xf68] sm:$0xff]
        %v2073 = vld [vmem:[%s324 + $0xf70] sm:$0xff]
        %v2074 = vld [vmem:[%s324 + $0xf78] sm:$0xff]
        %v2075 = vld [vmem:[%s324 + $0xf80] sm:$0xff]
        %v2076 = vld [vmem:[%s324 + $0xf88] sm:$0xff]
        %v2077 = vld [vmem:[%s324 + $0xf90] sm:$0xff]
        %v2078 = vld [vmem:[%s324 + $0xf98] sm:$0xff]
        %v2079 = vld [vmem:[%s324 + $0xfa0] sm:$0xff]
        %v2080 = vld [vmem:[%s324 + $0xfa8] sm:$0xff]
        %v2081 = vld [vmem:[%s324 + $0xfb0] sm:$0xff]
        %v2082 = vld [vmem:[%s324 + $0xfb8] sm:$0xff]
        %v2083 = vld [vmem:[%s324 + $0xfc0] sm:$0xff]
        %v2084 = vld [vmem:[%s324 + $0xfc8] sm:$0xff]
        %v2085 = vld [vmem:[%s324 + $0xfd0] sm:$0xff]
        %v2086 = vld [vmem:[%s324 + $0xfd8] sm:$0xff]
        %v2087 = vld [vmem:[%s324 + $0xfe0] sm:$0xff]
        %v2088 = vld [vmem:[%s324 + $0xfe8] sm:$0xff]
        %v2089 = vld [vmem:[%s324 + $0xff0] sm:$0xff]
        %v2090 = vld [vmem:[%s324 + $0xff8] sm:$0xff]
        %2091 = vmatprep.subr.mxu0 %v1580
        %2092 = vmatpush1.msra.mxu0 %v1579
        %2093 = vmatprep.subr.mxu0 %v1584
        %2094 = vmatpush1.msra.mxu0 %v1583
        %2095 = vmatprep.subr.mxu0 %v1588
        %2096 = vmatpush1.msra.mxu0 %v1587
        %2097 = vmatprep.subr.mxu0 %v1592
        %2098 = vmatpush1.msra.mxu0 %v1591
        %2099 = vmatprep.subr.mxu0 %v1596
        %2100 = vmatpush1.msra.mxu0 %v1595
        %2101 = vmatprep.subr.mxu0 %v1600
        %2102 = vmatpush1.msra.mxu0 %v1599
        %2103 = vmatprep.subr.mxu0 %v1604
        %2104 = vmatpush1.msra.mxu0 %v1603
        %2105 = vmatprep.subr.mxu0 %v1608
        %2106 = vmatpush1.msra.mxu0 %v1607
        %2107 = vmatprep.subr.mxu0 %v1612
        %2108 = vmatpush1.msra.mxu0 %v1611
        %2109 = vmatprep.subr.mxu0 %v1616
        %2110 = vmatpush1.msra.mxu0 %v1615
        %2111 = vmatprep.subr.mxu0 %v1620
        %2112 = vmatpush1.msra.mxu0 %v1619
        %2113 = vmatprep.subr.mxu0 %v1624
        %2114 = vmatpush1.msra.mxu0 %v1623
        %2115 = vmatprep.subr.mxu0 %v1628
        %2116 = vmatpush1.msra.mxu0 %v1627
        %2117 = vmatprep.subr.mxu0 %v1632
        %2118 = vmatpush1.msra.mxu0 %v1631
        %2119 = vmatprep.subr.mxu0 %v1636
        %2120 = vmatpush1.msra.mxu0 %v1635
        %2121 = vmatprep.subr.mxu0 %v1640
        %2122 = vmatpush1.msra.mxu0 %v1639
        %2123 = vmatprep.subr.mxu0 %v1644
        %2124 = vmatpush1.msra.mxu0 %v1643
        %2125 = vmatprep.subr.mxu0 %v1648
        %2126 = vmatpush1.msra.mxu0 %v1647
        %2127 = vmatprep.subr.mxu0 %v1652
        %2128 = vmatpush1.msra.mxu0 %v1651
        %2129 = vmatprep.subr.mxu0 %v1656
        %2130 = vmatpush1.msra.mxu0 %v1655
        %2131 = vmatprep.subr.mxu0 %v1660
        %2132 = vmatpush1.msra.mxu0 %v1659
        %2133 = vmatprep.subr.mxu0 %v1664
        %2134 = vmatpush1.msra.mxu0 %v1663
        %2135 = vmatprep.subr.mxu0 %v1668
        %2136 = vmatpush1.msra.mxu0 %v1667
        %2137 = vmatprep.subr.mxu0 %v1672
        %2138 = vmatpush1.msra.mxu0 %v1671
        %2139 = vmatprep.subr.mxu0 %v1676
        %2140 = vmatpush1.msra.mxu0 %v1675
        %2141 = vmatprep.subr.mxu0 %v1680
        %2142 = vmatpush1.msra.mxu0 %v1679
        %2143 = vmatprep.subr.mxu0 %v1684
        %2144 = vmatpush1.msra.mxu0 %v1683
        %2145 = vmatprep.subr.mxu0 %v1688
        %2146 = vmatpush1.msra.mxu0 %v1687
        %2147 = vmatprep.subr.mxu0 %v1692
        %2148 = vmatpush1.msra.mxu0 %v1691
        %2149 = vmatprep.subr.mxu0 %v1696
        %2150 = vmatpush1.msra.mxu0 %v1695
        %2151 = vmatprep.subr.mxu0 %v1700
        %2152 = vmatpush1.msra.mxu0 %v1699
        %2153 = vmatprep.subr.mxu0 %v1704
        %2154 = vmatpush1.msra.mxu0 %v1703
        %2155 = vmatprep.mubr.f32.mxu0 %v1556
        %2156 = vmatmul.mubr.f32.gmra.mrb[0].mxu0 %v1555
        %v2157 = vpop.f32.mrb[0].mxu0
        %v2158 = vadd.f32 0.0, %v2157
        %v2159 = vpop.f32.mrb[0].mxu0
        %v2160 = vadd.f32 0.0, %v2159
        %2161 = vmatprep.mubr.f32.mxu0 %v1564
        %2162 = vmatmul.mubr.f32.gmra.mrb[0].mxu0 %v1563
        %v2163 = vpop.f32.mrb[0].mxu0
        %v2164 = vadd.f32 0.0, %v2163
        %v2165 = vpop.f32.mrb[0].mxu0
        %v2166 = vadd.f32 0.0, %v2165
        %2167 = vdwg.mxu0
        %2168 = vmatprep.subr.mxu0 %v1708
        %2169 = vmatpush1.msra.mxu0 %v1707
        %2170 = vmatprep.subr.mxu0 %v1712
        %2171 = vmatpush1.msra.mxu0 %v1711
        %2172 = vmatprep.subr.mxu0 %v1716
        %2173 = vmatpush1.msra.mxu0 %v1715
        %2174 = vmatprep.subr.mxu0 %v1720
        %2175 = vmatpush1.msra.mxu0 %v1719
        %2176 = vmatprep.subr.mxu0 %v1724
        %2177 = vmatpush1.msra.mxu0 %v1723
        %2178 = vmatprep.subr.mxu0 %v1728
        %2179 = vmatpush1.msra.mxu0 %v1727
        %2180 = vmatprep.subr.mxu0 %v1732
        %2181 = vmatpush1.msra.mxu0 %v1731
        %2182 = vmatprep.subr.mxu0 %v1736
        %2183 = vmatpush1.msra.mxu0 %v1735
        %2184 = vmatprep.subr.mxu0 %v1740
        %2185 = vmatpush1.msra.mxu0 %v1739
        %2186 = vmatprep.subr.mxu0 %v1744
        %2187 = vmatpush1.msra.mxu0 %v1743
        %2188 = vmatprep.subr.mxu0 %v1748
        %2189 = vmatpush1.msra.mxu0 %v1747
        %2190 = vmatprep.subr.mxu0 %v1752
        %2191 = vmatpush1.msra.mxu0 %v1751
        %2192 = vmatprep.subr.mxu0 %v1756
        %2193 = vmatpush1.msra.mxu0 %v1755
        %2194 = vmatprep.subr.mxu0 %v1760
        %2195 = vmatpush1.msra.mxu0 %v1759
        %2196 = vmatprep.subr.mxu0 %v1764
        %2197 = vmatpush1.msra.mxu0 %v1763
        %2198 = vmatprep.subr.mxu0 %v1768
        %2199 = vmatpush1.msra.mxu0 %v1767
        %2200 = vmatprep.subr.mxu0 %v1772
        %2201 = vmatpush1.msra.mxu0 %v1771
        %2202 = vmatprep.subr.mxu0 %v1776
        %2203 = vmatpush1.msra.mxu0 %v1775
        %2204 = vmatprep.subr.mxu0 %v1780
        %2205 = vmatpush1.msra.mxu0 %v1779
        %2206 = vmatprep.subr.mxu0 %v1784
        %2207 = vmatpush1.msra.mxu0 %v1783
        %2208 = vmatprep.subr.mxu0 %v1788
        %2209 = vmatpush1.msra.mxu0 %v1787
        %2210 = vmatprep.subr.mxu0 %v1792
        %2211 = vmatpush1.msra.mxu0 %v1791
        %2212 = vmatprep.subr.mxu0 %v1796
        %2213 = vmatpush1.msra.mxu0 %v1795
        %2214 = vmatprep.subr.mxu0 %v1800
        %2215 = vmatpush1.msra.mxu0 %v1799
        %2216 = vmatprep.subr.mxu0 %v1804
        %2217 = vmatpush1.msra.mxu0 %v1803
        %2218 = vmatprep.subr.mxu0 %v1808
        %2219 = vmatpush1.msra.mxu0 %v1807
        %2220 = vmatprep.subr.mxu0 %v1812
        %2221 = vmatpush1.msra.mxu0 %v1811
        %2222 = vmatprep.subr.mxu0 %v1816
        %2223 = vmatpush1.msra.mxu0 %v1815
        %2224 = vmatprep.subr.mxu0 %v1820
        %2225 = vmatpush1.msra.mxu0 %v1819
        %2226 = vmatprep.subr.mxu0 %v1824
        %2227 = vmatpush1.msra.mxu0 %v1823
        %2228 = vmatprep.subr.mxu0 %v1828
        %2229 = vmatpush1.msra.mxu0 %v1827
        %2230 = vmatprep.subr.mxu0 %v1832
        %2231 = vmatpush1.msra.mxu0 %v1831
        %2232 = vmatprep.mubr.f32.mxu0 %v1558
        %2233 = vmatmul.mubr.f32.gmra.mrb[0].mxu0 %v1557
        %v2234 = vpop.f32.mrb[0].mxu0
        %v2235 = vadd.f32 %v2158, %v2234
        %v2236 = vpop.f32.mrb[0].mxu0
        %v2237 = vadd.f32 %v2160, %v2236
        %2238 = vmatprep.mubr.f32.mxu0 %v1566
        %2239 = vmatmul.mubr.f32.gmra.mrb[0].mxu0 %v1565
        %v2240 = vpop.f32.mrb[0].mxu0
        %v2241 = vadd.f32 %v2164, %v2240
        %v2242 = vpop.f32.mrb[0].mxu0
        %v2243 = vadd.f32 %v2166, %v2242
        %2244 = vdwg.mxu0
        %2245 = vmatprep.subr.mxu0 %v1836
        %2246 = vmatpush1.msra.mxu0 %v1835
        %2247 = vmatprep.subr.mxu0 %v1840
        %2248 = vmatpush1.msra.mxu0 %v1839
        %2249 = vmatprep.subr.mxu0 %v1844
        %2250 = vmatpush1.msra.mxu0 %v1843
        %2251 = vmatprep.subr.mxu0 %v1848
        %2252 = vmatpush1.msra.mxu0 %v1847
        %2253 = vmatprep.subr.mxu0 %v1852
        %2254 = vmatpush1.msra.mxu0 %v1851
        %2255 = vmatprep.subr.mxu0 %v1856
        %2256 = vmatpush1.msra.mxu0 %v1855
        %2257 = vmatprep.subr.mxu0 %v1860
        %2258 = vmatpush1.msra.mxu0 %v1859
        %2259 = vmatprep.subr.mxu0 %v1864
        %2260 = vmatpush1.msra.mxu0 %v1863
        %2261 = vmatprep.subr.mxu0 %v1868
        %2262 = vmatpush1.msra.mxu0 %v1867
        %2263 = vmatprep.subr.mxu0 %v1872
        %2264 = vmatpush1.msra.mxu0 %v1871
        %2265 = vmatprep.subr.mxu0 %v1876
        %2266 = vmatpush1.msra.mxu0 %v1875
        %2267 = vmatprep.subr.mxu0 %v1880
        %2268 = vmatpush1.msra.mxu0 %v1879
        %2269 = vmatprep.subr.mxu0 %v1884
        %2270 = vmatpush1.msra.mxu0 %v1883
        %2271 = vmatprep.subr.mxu0 %v1888
        %2272 = vmatpush1.msra.mxu0 %v1887
        %2273 = vmatprep.subr.mxu0 %v1892
        %2274 = vmatpush1.msra.mxu0 %v1891
        %2275 = vmatprep.subr.mxu0 %v1896
        %2276 = vmatpush1.msra.mxu0 %v1895
        %2277 = vmatprep.subr.mxu0 %v1900
        %2278 = vmatpush1.msra.mxu0 %v1899
        %2279 = vmatprep.subr.mxu0 %v1904
        %2280 = vmatpush1.msra.mxu0 %v1903
        %2281 = vmatprep.subr.mxu0 %v1908
        %2282 = vmatpush1.msra.mxu0 %v1907
        %2283 = vmatprep.subr.mxu0 %v1912
        %2284 = vmatpush1.msra.mxu0 %v1911
        %2285 = vmatprep.subr.mxu0 %v1916
        %2286 = vmatpush1.msra.mxu0 %v1915
        %2287 = vmatprep.subr.mxu0 %v1920
        %2288 = vmatpush1.msra.mxu0 %v1919
        %2289 = vmatprep.subr.mxu0 %v1924
        %2290 = vmatpush1.msra.mxu0 %v1923
        %2291 = vmatprep.subr.mxu0 %v1928
        %2292 = vmatpush1.msra.mxu0 %v1927
        %2293 = vmatprep.subr.mxu0 %v1932
        %2294 = vmatpush1.msra.mxu0 %v1931
        %2295 = vmatprep.subr.mxu0 %v1936
        %2296 = vmatpush1.msra.mxu0 %v1935
        %2297 = vmatprep.subr.mxu0 %v1940
        %2298 = vmatpush1.msra.mxu0 %v1939
        %2299 = vmatprep.subr.mxu0 %v1944
        %2300 = vmatpush1.msra.mxu0 %v1943
        %2301 = vmatprep.subr.mxu0 %v1948
        %2302 = vmatpush1.msra.mxu0 %v1947
        %2303 = vmatprep.subr.mxu0 %v1952
        %2304 = vmatpush1.msra.mxu0 %v1951
        %2305 = vmatprep.subr.mxu0 %v1956
        %2306 = vmatpush1.msra.mxu0 %v1955
        %2307 = vmatprep.subr.mxu0 %v1960
        %2308 = vmatpush1.msra.mxu0 %v1959
        %2309 = vmatprep.mubr.f32.mxu0 %v1560
        %2310 = vmatmul.mubr.f32.gmra.mrb[0].mxu0 %v1559
        %v2311 = vpop.f32.mrb[0].mxu0
        %v2312 = vadd.f32 %v2235, %v2311
        %v2313 = vpop.f32.mrb[0].mxu0
        %v2314 = vadd.f32 %v2237, %v2313
        %2315 = vmatprep.mubr.f32.mxu0 %v1568
        %2316 = vmatmul.mubr.f32.gmra.mrb[0].mxu0 %v1567
        %v2317 = vpop.f32.mrb[0].mxu0
        %v2318 = vadd.f32 %v2241, %v2317
        %v2319 = vpop.f32.mrb[0].mxu0
        %v2320 = vadd.f32 %v2243, %v2319
        %2321 = vdwg.mxu0
        %2322 = vmatprep.subr.mxu0 %v1964
        %2323 = vmatpush1.msra.mxu0 %v1963
        %2324 = vmatprep.subr.mxu0 %v1968
        %2325 = vmatpush1.msra.mxu0 %v1967
        %2326 = vmatprep.subr.mxu0 %v1972
        %2327 = vmatpush1.msra.mxu0 %v1971
        %2328 = vmatprep.subr.mxu0 %v1976
        %2329 = vmatpush1.msra.mxu0 %v1975
        %2330 = vmatprep.subr.mxu0 %v1980
        %2331 = vmatpush1.msra.mxu0 %v1979
        %2332 = vmatprep.subr.mxu0 %v1984
        %2333 = vmatpush1.msra.mxu0 %v1983
        %2334 = vmatprep.subr.mxu0 %v1988
        %2335 = vmatpush1.msra.mxu0 %v1987
        %2336 = vmatprep.subr.mxu0 %v1992
        %2337 = vmatpush1.msra.mxu0 %v1991
        %2338 = vmatprep.subr.mxu0 %v1996
        %2339 = vmatpush1.msra.mxu0 %v1995
        %2340 = vmatprep.subr.mxu0 %v2000
        %2341 = vmatpush1.msra.mxu0 %v1999
        %2342 = vmatprep.subr.mxu0 %v2004
        %2343 = vmatpush1.msra.mxu0 %v2003
        %2344 = vmatprep.subr.mxu0 %v2008
        %2345 = vmatpush1.msra.mxu0 %v2007
        %2346 = vmatprep.subr.mxu0 %v2012
        %2347 = vmatpush1.msra.mxu0 %v2011
        %2348 = vmatprep.subr.mxu0 %v2016
        %2349 = vmatpush1.msra.mxu0 %v2015
        %2350 = vmatprep.subr.mxu0 %v2020
        %2351 = vmatpush1.msra.mxu0 %v2019
        %2352 = vmatprep.subr.mxu0 %v2024
        %2353 = vmatpush1.msra.mxu0 %v2023
        %2354 = vmatprep.subr.mxu0 %v2028
        %2355 = vmatpush1.msra.mxu0 %v2027
        %2356 = vmatprep.subr.mxu0 %v2032
        %2357 = vmatpush1.msra.mxu0 %v2031
        %2358 = vmatprep.subr.mxu0 %v2036
        %2359 = vmatpush1.msra.mxu0 %v2035
        %2360 = vmatprep.subr.mxu0 %v2040
        %2361 = vmatpush1.msra.mxu0 %v2039
        %2362 = vmatprep.subr.mxu0 %v2044
        %2363 = vmatpush1.msra.mxu0 %v2043
        %2364 = vmatprep.subr.mxu0 %v2048
        %2365 = vmatpush1.msra.mxu0 %v2047
        %2366 = vmatprep.subr.mxu0 %v2052
        %2367 = vmatpush1.msra.mxu0 %v2051
        %2368 = vmatprep.subr.mxu0 %v2056
        %2369 = vmatpush1.msra.mxu0 %v2055
        %2370 = vmatprep.subr.mxu0 %v2060
        %2371 = vmatpush1.msra.mxu0 %v2059
        %2372 = vmatprep.subr.mxu0 %v2064
        %2373 = vmatpush1.msra.mxu0 %v2063
        %2374 = vmatprep.subr.mxu0 %v2068
        %2375 = vmatpush1.msra.mxu0 %v2067
        %2376 = vmatprep.subr.mxu0 %v2072
        %2377 = vmatpush1.msra.mxu0 %v2071
        %2378 = vmatprep.subr.mxu0 %v2076
        %2379 = vmatpush1.msra.mxu0 %v2075
        %2380 = vmatprep.subr.mxu0 %v2080
        %2381 = vmatpush1.msra.mxu0 %v2079
        %2382 = vmatprep.subr.mxu0 %v2084
        %2383 = vmatpush1.msra.mxu0 %v2083
        %2384 = vmatprep.subr.mxu0 %v2088
        %2385 = vmatpush1.msra.mxu0 %v2087
        %2386 = vmatprep.mubr.f32.mxu0 %v1562
        %2387 = vmatmul.mubr.f32.gmra.mrb[0].mxu0 %v1561
        %v2388 = vpop.f32.mrb[0].mxu0
        %v2389 = vadd.f32 %v2312, %v2388
        %v2390 = vpop.f32.mrb[0].mxu0
        %v2391 = vadd.f32 %v2314, %v2390
        %2392 = vmatprep.mubr.f32.mxu0 %v1570
        %2393 = vmatmul.mubr.f32.gmra.mrb[0].mxu0 %v1569
        %v2394 = vpop.f32.mrb[0].mxu0
        %v2395 = vadd.f32 %v2318, %v2394
        %v2396 = vpop.f32.mrb[0].mxu0
        %v2397 = vadd.f32 %v2320, %v2396
        %2398 = vdwg.mxu0
        %2399 = vmatprep.subr.mxu0 %v1582
        %2400 = vmatpush1.msra.mxu0 %v1581
        %2401 = vmatprep.subr.mxu0 %v1586
        %2402 = vmatpush1.msra.mxu0 %v1585
        %2403 = vmatprep.subr.mxu0 %v1590
        %2404 = vmatpush1.msra.mxu0 %v1589
        %2405 = vmatprep.subr.mxu0 %v1594
        %2406 = vmatpush1.msra.mxu0 %v1593
        %2407 = vmatprep.subr.mxu0 %v1598
        %2408 = vmatpush1.msra.mxu0 %v1597
        %2409 = vmatprep.subr.mxu0 %v1602
        %2410 = vmatpush1.msra.mxu0 %v1601
        %2411 = vmatprep.subr.mxu0 %v1606
        %2412 = vmatpush1.msra.mxu0 %v1605
        %2413 = vmatprep.subr.mxu0 %v1610
        %2414 = vmatpush1.msra.mxu0 %v1609
        %2415 = vmatprep.subr.mxu0 %v1614
        %2416 = vmatpush1.msra.mxu0 %v1613
        %2417 = vmatprep.subr.mxu0 %v1618
        %2418 = vmatpush1.msra.mxu0 %v1617
        %2419 = vmatprep.subr.mxu0 %v1622
        %2420 = vmatpush1.msra.mxu0 %v1621
        %2421 = vmatprep.subr.mxu0 %v1626
        %2422 = vmatpush1.msra.mxu0 %v1625
        %2423 = vmatprep.subr.mxu0 %v1630
        %2424 = vmatpush1.msra.mxu0 %v1629
        %2425 = vmatprep.subr.mxu0 %v1634
        %2426 = vmatpush1.msra.mxu0 %v1633
        %2427 = vmatprep.subr.mxu0 %v1638
        %2428 = vmatpush1.msra.mxu0 %v1637
        %2429 = vmatprep.subr.mxu0 %v1642
        %2430 = vmatpush1.msra.mxu0 %v1641
        %2431 = vmatprep.subr.mxu0 %v1646
        %2432 = vmatpush1.msra.mxu0 %v1645
        %2433 = vmatprep.subr.mxu0 %v1650
        %2434 = vmatpush1.msra.mxu0 %v1649
        %2435 = vmatprep.subr.mxu0 %v1654
        %2436 = vmatpush1.msra.mxu0 %v1653
        %2437 = vmatprep.subr.mxu0 %v1658
        %2438 = vmatpush1.msra.mxu0 %v1657
        %2439 = vmatprep.subr.mxu0 %v1662
        %2440 = vmatpush1.msra.mxu0 %v1661
        %2441 = vmatprep.subr.mxu0 %v1666
        %2442 = vmatpush1.msra.mxu0 %v1665
        %2443 = vmatprep.subr.mxu0 %v1670
        %2444 = vmatpush1.msra.mxu0 %v1669
        %2445 = vmatprep.subr.mxu0 %v1674
        %2446 = vmatpush1.msra.mxu0 %v1673
        %2447 = vmatprep.subr.mxu0 %v1678
        %2448 = vmatpush1.msra.mxu0 %v1677
        %2449 = vmatprep.subr.mxu0 %v1682
        %2450 = vmatpush1.msra.mxu0 %v1681
        %2451 = vmatprep.subr.mxu0 %v1686
        %2452 = vmatpush1.msra.mxu0 %v1685
        %2453 = vmatprep.subr.mxu0 %v1690
        %2454 = vmatpush1.msra.mxu0 %v1689
        %2455 = vmatprep.subr.mxu0 %v1694
        %2456 = vmatpush1.msra.mxu0 %v1693
        %2457 = vmatprep.subr.mxu0 %v1698
        %2458 = vmatpush1.msra.mxu0 %v1697
        %2459 = vmatprep.subr.mxu0 %v1702
        %2460 = vmatpush1.msra.mxu0 %v1701
        %2461 = vmatprep.subr.mxu0 %v1706
        %2462 = vmatpush1.msra.mxu0 %v1705
        %2463 = vmatprep.mubr.f32.mxu0 %v1556
        %2464 = vmatmul.mubr.f32.gmra.mrb[0].mxu0 %v1555
        %v2465 = vpop.f32.mrb[0].mxu0
        %v2466 = vadd.f32 0.0, %v2465
        %v2467 = vpop.f32.mrb[0].mxu0
        %v2468 = vadd.f32 0.0, %v2467
        %2469 = vmatprep.mubr.f32.mxu0 %v1564
        %2470 = vmatmul.mubr.f32.gmra.mrb[0].mxu0 %v1563
        %v2471 = vpop.f32.mrb[0].mxu0
        %v2472 = vadd.f32 0.0, %v2471
        %v2473 = vpop.f32.mrb[0].mxu0
        %v2474 = vadd.f32 0.0, %v2473
        %2475 = vdwg.mxu0
        %2476 = vmatprep.subr.mxu0 %v1710
        %2477 = vmatpush1.msra.mxu0 %v1709
        %2478 = vmatprep.subr.mxu0 %v1714
        %2479 = vmatpush1.msra.mxu0 %v1713
        %2480 = vmatprep.subr.mxu0 %v1718
        %2481 = vmatpush1.msra.mxu0 %v1717
        %2482 = vmatprep.subr.mxu0 %v1722
        %2483 = vmatpush1.msra.mxu0 %v1721
        %2484 = vmatprep.subr.mxu0 %v1726
        %2485 = vmatpush1.msra.mxu0 %v1725
        %2486 = vmatprep.subr.mxu0 %v1730
        %2487 = vmatpush1.msra.mxu0 %v1729
        %2488 = vmatprep.subr.mxu0 %v1734
        %2489 = vmatpush1.msra.mxu0 %v1733
        %2490 = vmatprep.subr.mxu0 %v1738
        %2491 = vmatpush1.msra.mxu0 %v1737
        %2492 = vmatprep.subr.mxu0 %v1742
        %2493 = vmatpush1.msra.mxu0 %v1741
        %2494 = vmatprep.subr.mxu0 %v1746
        %2495 = vmatpush1.msra.mxu0 %v1745
        %2496 = vmatprep.subr.mxu0 %v1750
        %2497 = vmatpush1.msra.mxu0 %v1749
        %2498 = vmatprep.subr.mxu0 %v1754
        %2499 = vmatpush1.msra.mxu0 %v1753
        %2500 = vmatprep.subr.mxu0 %v1758
        %2501 = vmatpush1.msra.mxu0 %v1757
        %2502 = vmatprep.subr.mxu0 %v1762
        %2503 = vmatpush1.msra.mxu0 %v1761
        %2504 = vmatprep.subr.mxu0 %v1766
        %2505 = vmatpush1.msra.mxu0 %v1765
        %2506 = vmatprep.subr.mxu0 %v1770
        %2507 = vmatpush1.msra.mxu0 %v1769
        %2508 = vmatprep.subr.mxu0 %v1774
        %2509 = vmatpush1.msra.mxu0 %v1773
        %2510 = vmatprep.subr.mxu0 %v1778
        %2511 = vmatpush1.msra.mxu0 %v1777
        %2512 = vmatprep.subr.mxu0 %v1782
        %2513 = vmatpush1.msra.mxu0 %v1781
        %2514 = vmatprep.subr.mxu0 %v1786
        %2515 = vmatpush1.msra.mxu0 %v1785
        %2516 = vmatprep.subr.mxu0 %v1790
        %2517 = vmatpush1.msra.mxu0 %v1789
        %2518 = vmatprep.subr.mxu0 %v1794
        %2519 = vmatpush1.msra.mxu0 %v1793
        %2520 = vmatprep.subr.mxu0 %v1798
        %2521 = vmatpush1.msra.mxu0 %v1797
        %2522 = vmatprep.subr.mxu0 %v1802
        %2523 = vmatpush1.msra.mxu0 %v1801
        %2524 = vmatprep.subr.mxu0 %v1806
        %2525 = vmatpush1.msra.mxu0 %v1805
        %2526 = vmatprep.subr.mxu0 %v1810
        %2527 = vmatpush1.msra.mxu0 %v1809
        %2528 = vmatprep.subr.mxu0 %v1814
        %2529 = vmatpush1.msra.mxu0 %v1813
        %2530 = vmatprep.subr.mxu0 %v1818
        %2531 = vmatpush1.msra.mxu0 %v1817
        %2532 = vmatprep.subr.mxu0 %v1822
        %2533 = vmatpush1.msra.mxu0 %v1821
        %2534 = vmatprep.subr.mxu0 %v1826
        %2535 = vmatpush1.msra.mxu0 %v1825
        %2536 = vmatprep.subr.mxu0 %v1830
        %2537 = vmatpush1.msra.mxu0 %v1829
        %2538 = vmatprep.subr.mxu0 %v1834
        %2539 = vmatpush1.msra.mxu0 %v1833
        %2540 = vmatprep.mubr.f32.mxu0 %v1558
        %2541 = vmatmul.mubr.f32.gmra.mrb[0].mxu0 %v1557
        %v2542 = vpop.f32.mrb[0].mxu0
        %v2543 = vadd.f32 %v2466, %v2542
        %v2544 = vpop.f32.mrb[0].mxu0
        %v2545 = vadd.f32 %v2468, %v2544
        %2546 = vmatprep.mubr.f32.mxu0 %v1566
        %2547 = vmatmul.mubr.f32.gmra.mrb[0].mxu0 %v1565
        %v2548 = vpop.f32.mrb[0].mxu0
        %v2549 = vadd.f32 %v2472, %v2548
        %v2550 = vpop.f32.mrb[0].mxu0
        %v2551 = vadd.f32 %v2474, %v2550
        %2552 = vdwg.mxu0
        %2553 = vmatprep.subr.mxu0 %v1838
        %2554 = vmatpush1.msra.mxu0 %v1837
        %2555 = vmatprep.subr.mxu0 %v1842
        %2556 = vmatpush1.msra.mxu0 %v1841
        %2557 = vmatprep.subr.mxu0 %v1846
        %2558 = vmatpush1.msra.mxu0 %v1845
        %2559 = vmatprep.subr.mxu0 %v1850
        %2560 = vmatpush1.msra.mxu0 %v1849
        %2561 = vmatprep.subr.mxu0 %v1854
        %2562 = vmatpush1.msra.mxu0 %v1853
        %2563 = vmatprep.subr.mxu0 %v1858
        %2564 = vmatpush1.msra.mxu0 %v1857
        %2565 = vmatprep.subr.mxu0 %v1862
        %2566 = vmatpush1.msra.mxu0 %v1861
        %2567 = vmatprep.subr.mxu0 %v1866
        %2568 = vmatpush1.msra.mxu0 %v1865
        %2569 = vmatprep.subr.mxu0 %v1870
        %2570 = vmatpush1.msra.mxu0 %v1869
        %2571 = vmatprep.subr.mxu0 %v1874
        %2572 = vmatpush1.msra.mxu0 %v1873
        %2573 = vmatprep.subr.mxu0 %v1878
        %2574 = vmatpush1.msra.mxu0 %v1877
        %2575 = vmatprep.subr.mxu0 %v1882
        %2576 = vmatpush1.msra.mxu0 %v1881
        %2577 = vmatprep.subr.mxu0 %v1886
        %2578 = vmatpush1.msra.mxu0 %v1885
        %2579 = vmatprep.subr.mxu0 %v1890
        %2580 = vmatpush1.msra.mxu0 %v1889
        %2581 = vmatprep.subr.mxu0 %v1894
        %2582 = vmatpush1.msra.mxu0 %v1893
        %2583 = vmatprep.subr.mxu0 %v1898
        %2584 = vmatpush1.msra.mxu0 %v1897
        %2585 = vmatprep.subr.mxu0 %v1902
        %2586 = vmatpush1.msra.mxu0 %v1901
        %2587 = vmatprep.subr.mxu0 %v1906
        %2588 = vmatpush1.msra.mxu0 %v1905
        %2589 = vmatprep.subr.mxu0 %v1910
        %2590 = vmatpush1.msra.mxu0 %v1909
        %2591 = vmatprep.subr.mxu0 %v1914
        %2592 = vmatpush1.msra.mxu0 %v1913
        %2593 = vmatprep.subr.mxu0 %v1918
        %2594 = vmatpush1.msra.mxu0 %v1917
        %2595 = vmatprep.subr.mxu0 %v1922
        %2596 = vmatpush1.msra.mxu0 %v1921
        %2597 = vmatprep.subr.mxu0 %v1926
        %2598 = vmatpush1.msra.mxu0 %v1925
        %2599 = vmatprep.subr.mxu0 %v1930
        %2600 = vmatpush1.msra.mxu0 %v1929
        %2601 = vmatprep.subr.mxu0 %v1934
        %2602 = vmatpush1.msra.mxu0 %v1933
        %2603 = vmatprep.subr.mxu0 %v1938
        %2604 = vmatpush1.msra.mxu0 %v1937
        %2605 = vmatprep.subr.mxu0 %v1942
        %2606 = vmatpush1.msra.mxu0 %v1941
        %2607 = vmatprep.subr.mxu0 %v1946
        %2608 = vmatpush1.msra.mxu0 %v1945
        %2609 = vmatprep.subr.mxu0 %v1950
        %2610 = vmatpush1.msra.mxu0 %v1949
        %2611 = vmatprep.subr.mxu0 %v1954
        %2612 = vmatpush1.msra.mxu0 %v1953
        %2613 = vmatprep.subr.mxu0 %v1958
        %2614 = vmatpush1.msra.mxu0 %v1957
        %2615 = vmatprep.subr.mxu0 %v1962
        %2616 = vmatpush1.msra.mxu0 %v1961
        %2617 = vmatprep.mubr.f32.mxu0 %v1560
        %2618 = vmatmul.mubr.f32.gmra.mrb[0].mxu0 %v1559
        %v2619 = vpop.f32.mrb[0].mxu0
        %v2620 = vadd.f32 %v2543, %v2619
        %v2621 = vpop.f32.mrb[0].mxu0
        %v2622 = vadd.f32 %v2545, %v2621
        %2623 = vmatprep.mubr.f32.mxu0 %v1568
        %2624 = vmatmul.mubr.f32.gmra.mrb[0].mxu0 %v1567
        %v2625 = vpop.f32.mrb[0].mxu0
        %v2626 = vadd.f32 %v2549, %v2625
        %v2627 = vpop.f32.mrb[0].mxu0
        %v2628 = vadd.f32 %v2551, %v2627
        %2629 = vdwg.mxu0
        %2630 = vmatprep.subr.mxu0 %v1966
        %2631 = vmatpush1.msra.mxu0 %v1965
        %2632 = vmatprep.subr.mxu0 %v1970
        %2633 = vmatpush1.msra.mxu0 %v1969
        %2634 = vmatprep.subr.mxu0 %v1974
        %2635 = vmatpush1.msra.mxu0 %v1973
        %2636 = vmatprep.subr.mxu0 %v1978
        %2637 = vmatpush1.msra.mxu0 %v1977
        %2638 = vmatprep.subr.mxu0 %v1982
        %2639 = vmatpush1.msra.mxu0 %v1981
        %2640 = vmatprep.subr.mxu0 %v1986
        %2641 = vmatpush1.msra.mxu0 %v1985
        %2642 = vmatprep.subr.mxu0 %v1990
        %2643 = vmatpush1.msra.mxu0 %v1989
        %2644 = vmatprep.subr.mxu0 %v1994
        %2645 = vmatpush1.msra.mxu0 %v1993
        %2646 = vmatprep.subr.mxu0 %v1998
        %2647 = vmatpush1.msra.mxu0 %v1997
        %2648 = vmatprep.subr.mxu0 %v2002
        %2649 = vmatpush1.msra.mxu0 %v2001
        %2650 = vmatprep.subr.mxu0 %v2006
        %2651 = vmatpush1.msra.mxu0 %v2005
        %2652 = vmatprep.subr.mxu0 %v2010
        %2653 = vmatpush1.msra.mxu0 %v2009
        %2654 = vmatprep.subr.mxu0 %v2014
        %2655 = vmatpush1.msra.mxu0 %v2013
        %2656 = vmatprep.subr.mxu0 %v2018
        %2657 = vmatpush1.msra.mxu0 %v2017
        %2658 = vmatprep.subr.mxu0 %v2022
        %2659 = vmatpush1.msra.mxu0 %v2021
        %2660 = vmatprep.subr.mxu0 %v2026
        %2661 = vmatpush1.msra.mxu0 %v2025
        %2662 = vmatprep.subr.mxu0 %v2030
        %2663 = vmatpush1.msra.mxu0 %v2029
        %2664 = vmatprep.subr.mxu0 %v2034
        %2665 = vmatpush1.msra.mxu0 %v2033
        %2666 = vmatprep.subr.mxu0 %v2038
        %2667 = vmatpush1.msra.mxu0 %v2037
        %2668 = vmatprep.subr.mxu0 %v2042
        %2669 = vmatpush1.msra.mxu0 %v2041
        %2670 = vmatprep.subr.mxu0 %v2046
        %2671 = vmatpush1.msra.mxu0 %v2045
        %2672 = vmatprep.subr.mxu0 %v2050
        %2673 = vmatpush1.msra.mxu0 %v2049
        %2674 = vmatprep.subr.mxu0 %v2054
        %2675 = vmatpush1.msra.mxu0 %v2053
        %2676 = vmatprep.subr.mxu0 %v2058
        %2677 = vmatpush1.msra.mxu0 %v2057
        %2678 = vmatprep.subr.mxu0 %v2062
        %2679 = vmatpush1.msra.mxu0 %v2061
        %2680 = vmatprep.subr.mxu0 %v2066
        %2681 = vmatpush1.msra.mxu0 %v2065
        %2682 = vmatprep.subr.mxu0 %v2070
        %2683 = vmatpush1.msra.mxu0 %v2069
        %2684 = vmatprep.subr.mxu0 %v2074
        %2685 = vmatpush1.msra.mxu0 %v2073
        %2686 = vmatprep.subr.mxu0 %v2078
        %2687 = vmatpush1.msra.mxu0 %v2077
        %2688 = vmatprep.subr.mxu0 %v2082
        %2689 = vmatpush1.msra.mxu0 %v2081
        %2690 = vmatprep.subr.mxu0 %v2086
        %2691 = vmatpush1.msra.mxu0 %v2085
        %2692 = vmatprep.subr.mxu0 %v2090
        %2693 = vmatpush1.msra.mxu0 %v2089
        %2694 = vmatprep.mubr.f32.mxu0 %v1562
        %2695 = vmatmul.mubr.f32.gmra.mrb[0].mxu0 %v1561
        %v2696 = vpop.f32.mrb[0].mxu0
        %v2697 = vadd.f32 %v2620, %v2696
        %v2698 = vpop.f32.mrb[0].mxu0
        %v2699 = vadd.f32 %v2622, %v2698
        %2700 = vmatprep.mubr.f32.mxu0 %v1570
        %2701 = vmatmul.mubr.f32.gmra.mrb[0].mxu0 %v1569
        %v2702 = vpop.f32.mrb[0].mxu0
        %v2703 = vadd.f32 %v2626, %v2702
        %v2704 = vpop.f32.mrb[0].mxu0
        %v2705 = vadd.f32 %v2628, %v2704
        %2706 = vdwg.mxu0
        %v2707 = vadd.f32 %v1571, %v2389
        %v2708 = vadd.f32 %v1572, %v2391
        %v2709 = vadd.f32 %v1573, %v2697
        %v2710 = vadd.f32 %v1574, %v2699
        %v2711 = vadd.f32 %v1575, %v2395
        %v2712 = vadd.f32 %v1576, %v2397
        %v2713 = vadd.f32 %v1577, %v2703
        %v2714 = vadd.f32 %v1578, %v2705
        %2715 = vst [vmem:[#allocation2] sm:$0xff] %v2707
        %2716 = vst [vmem:[#allocation2 + $0x8] sm:$0xff] %v2708
        %2717 = vst [vmem:[#allocation2 + $0x10] sm:$0xff] %v2709
        %2718 = vst [vmem:[#allocation2 + $0x18] sm:$0xff] %v2710
        %2719 = vst [vmem:[#allocation2 + $0x20] sm:$0xff] %v2711
        %2720 = vst [vmem:[#allocation2 + $0x28] sm:$0xff] %v2712
        %2721 = vst [vmem:[#allocation2 + $0x30] sm:$0xff] %v2713
        %2722 = vst [vmem:[#allocation2 + $0x38] sm:$0xff] %v2714
        %p2723 = scmp.eq.s32.totalorder %s29, 1
        // Predicated region
        $region65: #{tpu_custom_call.1} parent=39 // pred_check
          %p2724 = pneg %p2723
        $region66: #{tpu_custom_call.1} parent=39 // pred_check_branch
          %2726 = sbr.rel (%p2724) target = $region68
        $region67: #{tpu_custom_call.1} parent=39 // pred_region
          %v2727 = vld [vmem:[#allocation2] sm:$0xff]
          %v2728 = vld [vmem:[#allocation2 + $0x8] sm:$0xff]
          %v2729 = vld [vmem:[#allocation2 + $0x10] sm:$0xff]
          %v2730 = vld [vmem:[#allocation2 + $0x18] sm:$0xff]
          %v2731 = vld [vmem:[#allocation2 + $0x20] sm:$0xff]
          %v2732 = vld [vmem:[#allocation2 + $0x28] sm:$0xff]
          %v2733 = vld [vmem:[#allocation2 + $0x30] sm:$0xff]
          %v2734 = vld [vmem:[#allocation2 + $0x38] sm:$0xff]
          %v2735 = vld [vmem:[#allocation11] sm:$0xf]
          %v2737 = vlaneseq
          %v2738 = vshrl.u32 %v2737, 7
          %v2739 = vsub.s32 0, %v2738
          %v2740 = vrot.slane %v2735, %v2739
          %v2741 = vlaneseq
          %v2742 = vshrl.u32 %v2741, 7
          %v2743 = vsub.s32 1, %v2742
          %v2744 = vrot.slane %v2735, %v2743
          %v2745 = vlaneseq
          %v2746 = vshrl.u32 %v2745, 7
          %v2747 = vsub.s32 2, %v2746
          %v2748 = vrot.slane %v2735, %v2747
          %v2749 = vlaneseq
          %v2750 = vshrl.u32 %v2749, 7
          %v2751 = vsub.s32 3, %v2750
          %v2752 = vrot.slane %v2735, %v2751
          %v2757 = vadd.f32 %v2727, %v2740
          %v2758 = vadd.f32 %v2728, %v2744
          %v2759 = vadd.f32 %v2729, %v2748
          %v2760 = vadd.f32 %v2730, %v2752
          %v2761 = vadd.f32 %v2731, %v2740
          %v2762 = vadd.f32 %v2732, %v2744
          %v2763 = vadd.f32 %v2733, %v2748
          %v2764 = vadd.f32 %v2734, %v2752
          %2765 = vst [vmem:[#allocation12] sm:$0xff] %v2757
          %2766 = vst [vmem:[#allocation12 + $0x8] sm:$0xff] %v2758
          %2767 = vst [vmem:[#allocation12 + $0x10] sm:$0xff] %v2759
          %2768 = vst [vmem:[#allocation12 + $0x18] sm:$0xff] %v2760
          %2769 = vst [vmem:[#allocation12 + $0x20] sm:$0xff] %v2761
          %2770 = vst [vmem:[#allocation12 + $0x28] sm:$0xff] %v2762
          %2771 = vst [vmem:[#allocation12 + $0x30] sm:$0xff] %v2763
          %2772 = vst [vmem:[#allocation12 + $0x38] sm:$0xff] %v2764
        $region68: #{tpu_custom_call.1} parent=39 // pred_fallthru
          _
        // Predicated region
        $region69: #{tpu_custom_call.1} parent=39 // pred_check
          %p2773 = pneg %p179
        $region70: #{tpu_custom_call.1} parent=39 // pred_check_branch
          %2775 = sbr.rel (%p2773) target = $region72
        $region71: #{tpu_custom_call.1} parent=39 // pred_region
          %s2776 = smul.u32 2, %s28
          %s2778 = ssub.s32 1024, 1024
          %2779 = vsyncadd [#allocation5], %s2778
          %s2780 = smul.addr %s2776, 4
          %s2781 = smul.addr %s2780, 128
          %s2782 = scalar_lea.hbm %s5, %s2781
          %s2783 = sshll.u32 [#allocation12], 4
          %s2784 = int_to_ptr.vmem [resolvable:$true] %s2783
          %2789 = dma.vmem_to_hbm [thread:$0]  %s2784, 1024, %s2782, [#allocation5], 512, 512, 32
        $region72: #{tpu_custom_call.1} parent=39 // pred_fallthru
          _
        // Predicated region
        $region73: #{tpu_custom_call.1} parent=39 // pred_check
          %p2790 = pneg %p179
        $region74: #{tpu_custom_call.1} parent=39 // pred_check_branch
          %2792 = sbr.rel (%p2790) target = $region76
        $region75: #{tpu_custom_call.1} parent=39 // pred_region
          %2793 = dma.done [#allocation5], 1024
        $region76: #{tpu_custom_call.1} parent=39 // pred_fallthru
          _
      $region40: #{tpu_custom_call.1} parent=5 // pred_fallthru
        _
      %p2794 = scmp.le.s32.totalorder 2, %s19
      // Predicated region
      $region77: #{tpu_custom_call.1} parent=5 // pred_check
        %p2795 = pneg %p2794
      $region78: #{tpu_custom_call.1} parent=5 // pred_check_branch
        %2797 = sbr.rel (%p2795) target = $region80
      $region79: #{tpu_custom_call.1} parent=5 // pred_region
        %s2798 = ssub.s32 %s19, 2
      $region80: #{tpu_custom_call.1} parent=5 // pred_fallthru
        _
    $region6: #{tpu_custom_call.1} parent=1 // loop_footer
      %s23 = sadd.s32 1, %s19
    $region7: #{tpu_custom_call.1} parent=1 // loop_footer_branch
      %18 = sbr.rel target = $region3
    $region8: #{tpu_custom_call.1} parent=1 // loop_exit
      _
    %2799 = vsyncpa [#allocation4], 1
    %s2800 = scalar_lea.sflag [#allocation4], 1
    %2801 = vsyncpa %s2800, 1
    %2802 = vsyncpa [#allocation7], 1
    %s2803 = scalar_lea.sflag [#allocation7], 1
    %2804 = vsyncpa %s2803, 1
    %2805 = vsyncpa [#allocation10], 1
    %s2806 = scalar_lea.sflag [#allocation10], 1
    %2807 = vsyncpa %s2806, 1
    %2808 = vsyncpa [#allocation5], 1
    %s2809 = scalar_lea.sflag [#allocation5], 1
    %2810 = vsyncpa %s2809, 1

</llo_original>
